<compile_context>
chip_gen: v7x
topology: tpu7x:2x2x1
jax: 0.10.0
libtpu: 0.0.40
codegen_flags: <defaults>
</compile_context>

<pallas_src>
import functools
import numpy as np
import jax
import jax.numpy as jnp
from jax.experimental import pallas as pl
from jax.experimental.pallas import tpu as pltpu


def _round_up(x, m):
    return (x + m - 1) // m * m


# ---------------------------------------------------------------------------
# Pallas kernel
# ---------------------------------------------------------------------------

def _zero_border(pad_ref, hp, wp):
    """Zero only the 1-pixel halo of a (hp+2, wpad, cp) conv-input scratch.

    The interior [1:hp+1, 1:wp+1] is fully overwritten each step and columns
    beyond wp+1 (alignment padding) are never read, so this is all the
    zeroing needed -- O((H+W)*C) stores instead of O(H*W*C).
    """
    hpad, wpad, cp = pad_ref.shape
    dt = pad_ref.dtype
    pad_ref[0:1, :, :] = jnp.zeros((1, wpad, cp), dt)                 # top row
    pad_ref[hp + 1:hp + 2, :, :] = jnp.zeros((1, wpad, cp), dt)       # bottom row
    pad_ref[:, 0:1, :] = jnp.zeros((hpad, 1, cp), dt)                 # left col
    pad_ref[:, wp + 1:wp + 2, :] = jnp.zeros((hpad, 1, cp), dt)       # right col


def _conv3x3_bn_relu(pad_ref, w_ref, scale, bias, hp, wp):
    """3x3 'same' conv from a zero-haloed (hp+2, wpad, Cp) bf16 VMEM scratch.

    9 accumulating matmuls (one per tap) into one f32 accumulator; folded-BN
    affine + ReLU epilogue in f32.  Returns (hp*wp, Co_pad) f32.
    """
    cp = pad_ref.shape[-1]
    co = w_ref.shape[-1]
    acc = jnp.zeros((hp * wp, co), jnp.float32)
    for dy in range(3):
        for dx in range(3):
            tap = pad_ref[dy:dy + hp, dx:dx + wp, :].reshape(hp * wp, cp)
            acc += jnp.dot(tap, w_ref[dy * 3 + dx],          # bf16 x bf16 -> f32
                           preferred_element_type=jnp.float32)
    y = acc * scale + bias
    return jnp.maximum(y, 0.0)


def down_kernel(x_ref, w1_ref, s1_ref, b1_ref, w2_ref, s2_ref, b2_ref,
                o_ref, pad1_ref, pad2_ref, *, hp, wp):
    """x_ref : (1, hp, 2, wp, 2*Cin)  pooling-friendly NHWC view of one image
       w*_ref: (9, Cp_in, Cp_out)     per-tap conv weights, channel-padded, bf16
       s*/b* : (1, Cp_out)            folded BatchNorm scale / bias (f32)
       o_ref : (1, Cout, hp*wp)       NCHW output (lane-dense: lanes = hp*wp)
       pad*  : bf16 VMEM scratch holding the zero-haloed conv inputs."""
    cout = o_ref.shape[1]
    cin = x_ref.shape[-1] // 2
    cp1 = pad1_ref.shape[-1]
    cp2 = pad2_ref.shape[-1]

    # ---- MaxPool2d(2), resolved from the 5-D view [VPU] --------------------
    x = x_ref[0]                                   # (hp, 2, wp, 2*cin)
    x00 = x[:, 0, :, :cin]
    x01 = x[:, 0, :, cin:]
    x10 = x[:, 1, :, :cin]
    x11 = x[:, 1, :, cin:]
    pooled = jnp.maximum(jnp.maximum(x00, x01), jnp.maximum(x10, x11))

    # ---- conv1 + BN + ReLU (everything stays in VMEM) ----------------------
    _zero_border(pad1_ref, hp, wp)
    pad1_ref[1:hp + 1, 1:wp + 1, :cin] = pooled.astype(pad1_ref.dtype)
    if cp1 > cin:   # keep lane-padded channels exactly zero
        pad1_ref[1:hp + 1, 1:wp + 1, cin:] = jnp.zeros(
            (hp, wp, cp1 - cin), pad1_ref.dtype)
    y1 = _conv3x3_bn_relu(pad1_ref, w1_ref, s1_ref[...], b1_ref[...], hp, wp)

    # ---- conv2 + BN + ReLU --------------------------------------------------
    # y1's padded channels are exactly zero (scale/bias padded with zeros), so
    # the full padded width can be stored without extra zero fills.
    _zero_border(pad2_ref, hp, wp)
    pad2_ref[1:hp + 1, 1:wp + 1, :] = y1.reshape(hp, wp, cp2).astype(pad2_ref.dtype)
    y2 = _conv3x3_bn_relu(pad2_ref, w2_ref, s2_ref[...], b2_ref[...], hp, wp)

    # ---- write NCHW directly: (Cout, hp*wp), lane-dense store ---------------
    o_ref[0] = jnp.transpose(y2, (1, 0))[:cout].astype(o_ref.dtype)


# ---------------------------------------------------------------------------
# Wrapper
# ---------------------------------------------------------------------------

def fold_bn(gamma, beta, mean, var, eps=1e-5):
    scale = gamma / jnp.sqrt(var + eps)
    return scale, beta - mean * scale


def down_forward(x_nchw, params):
    """Equivalent of Down.forward(x): MaxPool2d(2) -> DoubleConv (inference BN)."""
    N, cin, H, W = x_nchw.shape
    hp, wp = H // 2, W // 2                      # MaxPool2d(2) floors odd sizes
    w1, w2 = params["w1"], params["w2"]          # HWIO
    cmid, cout = w1.shape[-1], w2.shape[-1]

    cp_in = _round_up(cin, 128)                  # lane-aligned channel counts
    cp_mid = _round_up(cmid, 128)
    cp_out = _round_up(cout, 128)
    wpad = _round_up(wp + 2, 8)                  # sublane-aligned padded width

    # NCHW -> pooling-friendly NHWC view (single input transpose; the output
    # side needs no transpose because the kernel writes NCHW directly).
    x_nhwc = jnp.transpose(x_nchw[:, :, :2 * hp, :2 * wp], (0, 2, 3, 1))
    xr = x_nhwc.reshape(N, hp, 2, wp, 2 * cin)

    def prep_w(w, cp_i, cp_o):                   # (3,3,ci,co) -> (9, cp_i, cp_o) bf16
        kh, kw, ci, co = w.shape
        w = w.reshape(kh * kw, ci, co)
        w = jnp.pad(w, ((0, 0), (0, cp_i - ci), (0, cp_o - co)))
        return w.astype(jnp.bfloat16)

    def prep_sb(v, cp):                          # zero-pad so padded channels stay 0
        return jnp.pad(v, (0, cp - v.shape[0])).reshape(1, cp).astype(jnp.float32)

    w1p = prep_w(w1, cp_in, cp_mid)
    w2p = prep_w(w2, cp_mid, cp_out)
    s1 = prep_sb(params["scale1"], cp_mid)
    b1 = prep_sb(params["bias1"], cp_mid)
    s2 = prep_sb(params["scale2"], cp_out)
    b2 = prep_sb(params["bias2"], cp_out)

    kernel = functools.partial(down_kernel, hp=hp, wp=wp)

    out = pl.pallas_call(
        kernel,
        out_shape=jax.ShapeDtypeStruct((N, cout, hp * wp), jnp.float32),
        grid=(N,),
        in_specs=[
            pl.BlockSpec((1, hp, 2, wp, 2 * cin), lambda n: (n, 0, 0, 0, 0)),
            pl.BlockSpec((9, cp_in, cp_mid), lambda n: (0, 0, 0)),
            pl.BlockSpec((1, cp_mid), lambda n: (0, 0)),
            pl.BlockSpec((1, cp_mid), lambda n: (0, 0)),
            pl.BlockSpec((9, cp_mid, cp_out), lambda n: (0, 0, 0)),
            pl.BlockSpec((1, cp_out), lambda n: (0, 0)),
            pl.BlockSpec((1, cp_out), lambda n: (0, 0)),
        ],
        out_specs=pl.BlockSpec((1, cout, hp * wp), lambda n: (n, 0, 0)),
        scratch_shapes=[
            pltpu.VMEM((hp + 2, wpad, cp_in), jnp.bfloat16),
            pltpu.VMEM((hp + 2, wpad, cp_mid), jnp.bfloat16),
        ],
        compiler_params=pltpu.CompilerParams(
            dimension_semantics=("parallel",),
            vmem_limit_bytes=64 * 1024 * 1024),
    )(xr, w1p, s1, b1, w2p, s2, b2)

    # Contiguous reshape only (no transpose, no extra HBM pass).
    return out.reshape(N, cout, hp, wp)


# ---------------------------------------------------------------------------
# Main
# ---------------------------------------------------------------------------

if __name__ == "__main__":
    key = jax.random.PRNGKey(0)
    k = jax.random.split(key, 11)

    # Down(input_channels=4, output_channels=8)
    N, Cin, H, W = 2, 4, 16, 16
    Cout = 8

    x = jax.random.normal(k[0], (N, Cin, H, W), jnp.float32)

    # Conv weights in HWIO layout (PyTorch OIHW weights would be transposed
    # with (2, 3, 1, 0) before use). bias=False convs.
    w1 = jax.random.normal(k[1], (3, 3, Cin, Cout), jnp.float32) * 0.1
    w2 = jax.random.normal(k[2], (3, 3, Cout, Cout), jnp.float32) * 0.1

    # BatchNorm running stats (inference semantics), folded to scale/bias.
    g1 = 1.0 + 0.1 * jax.random.normal(k[3], (Cout,), jnp.float32)
    be1 = 0.1 * jax.random.normal(k[4], (Cout,), jnp.float32)
    m1 = 0.1 * jax.random.normal(k[5], (Cout,), jnp.float32)
    v1 = jax.random.uniform(k[6], (Cout,), jnp.float32, 0.5, 1.5)
    g2 = 1.0 + 0.1 * jax.random.normal(k[7], (Cout,), jnp.float32)
    be2 = 0.1 * jax.random.normal(k[8], (Cout,), jnp.float32)
    m2 = 0.1 * jax.random.normal(k[9], (Cout,), jnp.float32)
    v2 = jax.random.uniform(k[10], (Cout,), jnp.float32, 0.5, 1.5)

    s1, b1 = fold_bn(g1, be1, m1, v1)
    s2, b2 = fold_bn(g2, be2, m2, v2)

    params = {"w1": w1, "scale1": s1, "bias1": b1,
              "w2": w2, "scale2": s2, "bias2": b2}

    out = jax.block_until_ready(down_forward(x, params))
    assert out.shape == (N, Cout, H // 2, W // 2), out.shape

    # Pure-JAX/XLA reference with the same inference-BN semantics (f32).
    def reference(x_nchw):
        xh = jnp.transpose(x_nchw, (0, 2, 3, 1))
        xh = jax.lax.reduce_window(xh, -jnp.inf, jax.lax.max,
                                   (1, 2, 2, 1), (1, 2, 2, 1), "VALID")

        def cbr(t, w, s, b):
            y = jax.lax.conv_general_dilated(
                t, w, (1, 1), "SAME",
                dimension_numbers=("NHWC", "HWIO", "NHWC"))
            return jnp.maximum(y * s + b, 0.0)

        xh = cbr(xh, w1, s1, b1)
        xh = cbr(xh, w2, s2, b2)
        return jnp.transpose(xh, (0, 3, 1, 2))

    ref = jax.block_until_ready(reference(x))
    # Tolerance accounts for bf16 MXU operands (f32 accumulation/epilogue).
    np.testing.assert_allclose(np.asarray(out), np.asarray(ref),
                               rtol=5e-2, atol=5e-2)
    print("KERNEL_OK")
</pallas_src>

<mosaic_0001>
module attributes {stable_mosaic.version = 11 : i64} {
  func.func @down_kernel(%arg0: i32, %arg1: memref<1x8x2x8x8xf32, #tpu.memory_space<vmem>>, %arg2: memref<9x128x128xbf16, #tpu.memory_space<vmem>>, %arg3: memref<1x128xf32, #tpu.memory_space<vmem>>, %arg4: memref<1x128xf32, #tpu.memory_space<vmem>>, %arg5: memref<9x128x128xbf16, #tpu.memory_space<vmem>>, %arg6: memref<1x128xf32, #tpu.memory_space<vmem>>, %arg7: memref<1x128xf32, #tpu.memory_space<vmem>>, %arg8: memref<1x8x64xf32, #tpu.memory_space<vmem>>, %arg9: memref<10x16x128xbf16, #tpu.memory_space<vmem>>, %arg10: memref<10x16x128xbf16, #tpu.memory_space<vmem>>) attributes {dimension_semantics = [#tpu.dimension_semantics<parallel>], iteration_bounds = array<i64: 2>, scalar_prefetch = 0 : i64, scratch_operands = 2 : i64, tpu.core_type = #tpu.core_type<tc>, window_params = [{transform_indices = @transform_0, window_bounds = array<i64: 1, 8, 2, 8, 8>}, {pipeline_mode = #tpu.pipeline_mode<synchronous>, transform_indices = @transform_1, window_bounds = array<i64: 9, 128, 128>}, {pipeline_mode = #tpu.pipeline_mode<synchronous>, transform_indices = @transform_2, window_bounds = array<i64: 1, 128>}, {pipeline_mode = #tpu.pipeline_mode<synchronous>, transform_indices = @transform_3, window_bounds = array<i64: 1, 128>}, {pipeline_mode = #tpu.pipeline_mode<synchronous>, transform_indices = @transform_4, window_bounds = array<i64: 9, 128, 128>}, {pipeline_mode = #tpu.pipeline_mode<synchronous>, transform_indices = @transform_5, window_bounds = array<i64: 1, 128>}, {pipeline_mode = #tpu.pipeline_mode<synchronous>, transform_indices = @transform_6, window_bounds = array<i64: 1, 128>}, {transform_indices = @transform_7, window_bounds = array<i64: 1, 8, 64>}]} {
    %c0 = arith.constant 0 : index
    %c0_0 = arith.constant 0 : index
    %c0_1 = arith.constant 0 : index
    %c0_2 = arith.constant 0 : index
    %c0_3 = arith.constant 0 : index
    %0 = vector.load %arg1[%c0, %c0_0, %c0_1, %c0_2, %c0_3] : memref<1x8x2x8x8xf32, #tpu.memory_space<vmem>>, vector<1x8x2x8x8xf32>
    %1 = vector.shape_cast %0 : vector<1x8x2x8x8xf32> to vector<8x2x8x8xf32>
    %2 = vector.extract_strided_slice %1 {offsets = [0, 0, 0, 0], sizes = [8, 1, 8, 4], strides = [1, 1, 1, 1]} : vector<8x2x8x8xf32> to vector<8x1x8x4xf32>
    %3 = vector.shape_cast %2 : vector<8x1x8x4xf32> to vector<8x8x4xf32>
    %4 = vector.extract_strided_slice %1 {offsets = [0, 0, 0, 4], sizes = [8, 1, 8, 4], strides = [1, 1, 1, 1]} : vector<8x2x8x8xf32> to vector<8x1x8x4xf32>
    %5 = vector.shape_cast %4 : vector<8x1x8x4xf32> to vector<8x8x4xf32>
    %6 = vector.extract_strided_slice %1 {offsets = [0, 1, 0, 0], sizes = [8, 1, 8, 4], strides = [1, 1, 1, 1]} : vector<8x2x8x8xf32> to vector<8x1x8x4xf32>
    %7 = vector.shape_cast %6 : vector<8x1x8x4xf32> to vector<8x8x4xf32>
    %8 = vector.extract_strided_slice %1 {offsets = [0, 1, 0, 4], sizes = [8, 1, 8, 4], strides = [1, 1, 1, 1]} : vector<8x2x8x8xf32> to vector<8x1x8x4xf32>
    %9 = vector.shape_cast %8 : vector<8x1x8x4xf32> to vector<8x8x4xf32>
    %10 = arith.maximumf %3, %5 : vector<8x8x4xf32>
    %11 = arith.maximumf %7, %9 : vector<8x8x4xf32>
    %12 = arith.maximumf %10, %11 : vector<8x8x4xf32>
    %cst = arith.constant 0.000000e+00 : bf16
    %13 = vector.broadcast %cst : bf16 to vector<1x16x128xbf16>
    %c0_4 = arith.constant 0 : index
    %c0_5 = arith.constant 0 : index
    %c0_6 = arith.constant 0 : index
    %14 = vector.load %arg9[%c0_4, %c0_5, %c0_6] : memref<10x16x128xbf16, #tpu.memory_space<vmem>>, vector<1x16x128xbf16>
    tpu.vector_store %arg9[%c0_4, %c0_5, %c0_6], %13 {strides = array<i32>} : memref<10x16x128xbf16, #tpu.memory_space<vmem>>, vector<1x16x128xbf16>,
    %cst_7 = arith.constant 0.000000e+00 : bf16
    %15 = vector.broadcast %cst_7 : bf16 to vector<1x16x128xbf16>
    %c9 = arith.constant 9 : index
    %c0_8 = arith.constant 0 : index
    %c0_9 = arith.constant 0 : index
    %16 = vector.load %arg9[%c9, %c0_8, %c0_9] : memref<10x16x128xbf16, #tpu.memory_space<vmem>>, vector<1x16x128xbf16>
    tpu.vector_store %arg9[%c9, %c0_8, %c0_9], %15 {strides = array<i32>} : memref<10x16x128xbf16, #tpu.memory_space<vmem>>, vector<1x16x128xbf16>,
    %cst_10 = arith.constant 0.000000e+00 : bf16
    %17 = vector.broadcast %cst_10 : bf16 to vector<10x1x128xbf16>
    %c0_11 = arith.constant 0 : index
    %c0_12 = arith.constant 0 : index
    %c0_13 = arith.constant 0 : index
    %18 = vector.load %arg9[%c0_11, %c0_12, %c0_13] : memref<10x16x128xbf16, #tpu.memory_space<vmem>>, vector<10x1x128xbf16>
    tpu.vector_store %arg9[%c0_11, %c0_12, %c0_13], %17 {strides = array<i32>} : memref<10x16x128xbf16, #tpu.memory_space<vmem>>, vector<10x1x128xbf16>,
    %cst_14 = arith.constant 0.000000e+00 : bf16
    %19 = vector.broadcast %cst_14 : bf16 to vector<10x1x128xbf16>
    %c0_15 = arith.constant 0 : index
    %c9_16 = arith.constant 9 : index
    %c0_17 = arith.constant 0 : index
    %20 = vector.load %arg9[%c0_15, %c9_16, %c0_17] : memref<10x16x128xbf16, #tpu.memory_space<vmem>>, vector<10x1x128xbf16>
    tpu.vector_store %arg9[%c0_15, %c9_16, %c0_17], %19 {strides = array<i32>} : memref<10x16x128xbf16, #tpu.memory_space<vmem>>, vector<10x1x128xbf16>,
    %21 = arith.truncf %12 : vector<8x8x4xf32> to vector<8x8x4xbf16>
    %c1 = arith.constant 1 : index
    %c1_18 = arith.constant 1 : index
    %c0_19 = arith.constant 0 : index
    %22 = vector.load %arg9[%c1, %c1_18, %c0_19] : memref<10x16x128xbf16, #tpu.memory_space<vmem>>, vector<8x8x4xbf16>
    tpu.vector_store %arg9[%c1, %c1_18, %c0_19], %21 {strides = array<i32>} : memref<10x16x128xbf16, #tpu.memory_space<vmem>>, vector<8x8x4xbf16>,
    %cst_20 = arith.constant 0.000000e+00 : bf16
    %23 = vector.broadcast %cst_20 : bf16 to vector<8x8x124xbf16>
    %c1_21 = arith.constant 1 : index
    %c1_22 = arith.constant 1 : index
    %c4 = arith.constant 4 : index
    %24 = vector.load %arg9[%c1_21, %c1_22, %c4] : memref<10x16x128xbf16, #tpu.memory_space<vmem>>, vector<8x8x124xbf16>
    tpu.vector_store %arg9[%c1_21, %c1_22, %c4], %23 {strides = array<i32>} : memref<10x16x128xbf16, #tpu.memory_space<vmem>>, vector<8x8x124xbf16>,
    %c0_23 = arith.constant 0 : index
    %c0_24 = arith.constant 0 : index
    %25 = vector.load %arg3[%c0_23, %c0_24] : memref<1x128xf32, #tpu.memory_space<vmem>>, vector<1x128xf32>
    %c0_25 = arith.constant 0 : index
    %c0_26 = arith.constant 0 : index
    %26 = vector.load %arg4[%c0_25, %c0_26] : memref<1x128xf32, #tpu.memory_space<vmem>>, vector<1x128xf32>
    %cst_27 = arith.constant 0.000000e+00 : f32
    %27 = vector.broadcast %cst_27 : f32 to vector<64x128xf32>
    %c0_28 = arith.constant 0 : index
    %c0_29 = arith.constant 0 : index
    %c0_30 = arith.constant 0 : index
    %28 = vector.load %arg9[%c0_28, %c0_29, %c0_30] : memref<10x16x128xbf16, #tpu.memory_space<vmem>>, vector<8x8x128xbf16>
    %29 = vector.shape_cast %28 : vector<8x8x128xbf16> to vector<64x128xbf16>
    %c0_31 = arith.constant 0 : index
    %c0_32 = arith.constant 0 : index
    %c0_33 = arith.constant 0 : index
    %30 = vector.load %arg2[%c0_31, %c0_32, %c0_33] : memref<9x128x128xbf16, #tpu.memory_space<vmem>>, vector<1x128x128xbf16>
    %31 = vector.shape_cast %30 : vector<1x128x128xbf16> to vector<128x128xbf16>
    %cst_34 = arith.constant dense<0.000000e+00> : vector<64x128xf32>
    %32 = tpu.matmul %29, %31, %cst_34 {dimension_numbers = #tpu.dot_dimension_numbers<[1], [0], [0], [1], [0, 0, 1, 1], [], []>} : vector<64x128xbf16>, vector<128x128xbf16>, vector<64x128xf32> -> vector<64x128xf32>
    %33 = arith.addf %27, %32 : vector<64x128xf32>
    %c0_35 = arith.constant 0 : index
    %c1_36 = arith.constant 1 : index
    %c0_37 = arith.constant 0 : index
    %34 = vector.load %arg9[%c0_35, %c1_36, %c0_37] : memref<10x16x128xbf16, #tpu.memory_space<vmem>>, vector<8x8x128xbf16>
    %35 = vector.shape_cast %34 : vector<8x8x128xbf16> to vector<64x128xbf16>
    %c1_38 = arith.constant 1 : index
    %c0_39 = arith.constant 0 : index
    %c0_40 = arith.constant 0 : index
    %36 = vector.load %arg2[%c1_38, %c0_39, %c0_40] : memref<9x128x128xbf16, #tpu.memory_space<vmem>>, vector<1x128x128xbf16>
    %37 = vector.shape_cast %36 : vector<1x128x128xbf16> to vector<128x128xbf16>
    %cst_41 = arith.constant dense<0.000000e+00> : vector<64x128xf32>
    %38 = tpu.matmul %35, %37, %cst_41 {dimension_numbers = #tpu.dot_dimension_numbers<[1], [0], [0], [1], [0, 0, 1, 1], [], []>} : vector<64x128xbf16>, vector<128x128xbf16>, vector<64x128xf32> -> vector<64x128xf32>
    %39 = arith.addf %33, %38 : vector<64x128xf32>
    %c0_42 = arith.constant 0 : index
    %c2 = arith.constant 2 : index
    %c0_43 = arith.constant 0 : index
    %40 = vector.load %arg9[%c0_42, %c2, %c0_43] : memref<10x16x128xbf16, #tpu.memory_space<vmem>>, vector<8x8x128xbf16>
    %41 = vector.shape_cast %40 : vector<8x8x128xbf16> to vector<64x128xbf16>
    %c2_44 = arith.constant 2 : index
    %c0_45 = arith.constant 0 : index
    %c0_46 = arith.constant 0 : index
    %42 = vector.load %arg2[%c2_44, %c0_45, %c0_46] : memref<9x128x128xbf16, #tpu.memory_space<vmem>>, vector<1x128x128xbf16>
    %43 = vector.shape_cast %42 : vector<1x128x128xbf16> to vector<128x128xbf16>
    %cst_47 = arith.constant dense<0.000000e+00> : vector<64x128xf32>
    %44 = tpu.matmul %41, %43, %cst_47 {dimension_numbers = #tpu.dot_dimension_numbers<[1], [0], [0], [1], [0, 0, 1, 1], [], []>} : vector<64x128xbf16>, vector<128x128xbf16>, vector<64x128xf32> -> vector<64x128xf32>
    %45 = arith.addf %39, %44 : vector<64x128xf32>
    %c1_48 = arith.constant 1 : index
    %c0_49 = arith.constant 0 : index
    %c0_50 = arith.constant 0 : index
    %46 = vector.load %arg9[%c1_48, %c0_49, %c0_50] : memref<10x16x128xbf16, #tpu.memory_space<vmem>>, vector<8x8x128xbf16>
    %47 = vector.shape_cast %46 : vector<8x8x128xbf16> to vector<64x128xbf16>
    %c3 = arith.constant 3 : index
    %c0_51 = arith.constant 0 : index
    %c0_52 = arith.constant 0 : index
    %48 = vector.load %arg2[%c3, %c0_51, %c0_52] : memref<9x128x128xbf16, #tpu.memory_space<vmem>>, vector<1x128x128xbf16>
    %49 = vector.shape_cast %48 : vector<1x128x128xbf16> to vector<128x128xbf16>
    %cst_53 = arith.constant dense<0.000000e+00> : vector<64x128xf32>
    %50 = tpu.matmul %47, %49, %cst_53 {dimension_numbers = #tpu.dot_dimension_numbers<[1], [0], [0], [1], [0, 0, 1, 1], [], []>} : vector<64x128xbf16>, vector<128x128xbf16>, vector<64x128xf32> -> vector<64x128xf32>
    %51 = arith.addf %45, %50 : vector<64x128xf32>
    %c1_54 = arith.constant 1 : index
    %c1_55 = arith.constant 1 : index
    %c0_56 = arith.constant 0 : index
    %52 = vector.load %arg9[%c1_54, %c1_55, %c0_56] : memref<10x16x128xbf16, #tpu.memory_space<vmem>>, vector<8x8x128xbf16>
    %53 = vector.shape_cast %52 : vector<8x8x128xbf16> to vector<64x128xbf16>
    %c4_57 = arith.constant 4 : index
    %c0_58 = arith.constant 0 : index
    %c0_59 = arith.constant 0 : index
    %54 = vector.load %arg2[%c4_57, %c0_58, %c0_59] : memref<9x128x128xbf16, #tpu.memory_space<vmem>>, vector<1x128x128xbf16>
    %55 = vector.shape_cast %54 : vector<1x128x128xbf16> to vector<128x128xbf16>
    %cst_60 = arith.constant dense<0.000000e+00> : vector<64x128xf32>
    %56 = tpu.matmul %53, %55, %cst_60 {dimension_numbers = #tpu.dot_dimension_numbers<[1], [0], [0], [1], [0, 0, 1, 1], [], []>} : vector<64x128xbf16>, vector<128x128xbf16>, vector<64x128xf32> -> vector<64x128xf32>
    %57 = arith.addf %51, %56 : vector<64x128xf32>
    %c1_61 = arith.constant 1 : index
    %c2_62 = arith.constant 2 : index
    %c0_63 = arith.constant 0 : index
    %58 = vector.load %arg9[%c1_61, %c2_62, %c0_63] : memref<10x16x128xbf16, #tpu.memory_space<vmem>>, vector<8x8x128xbf16>
    %59 = vector.shape_cast %58 : vector<8x8x128xbf16> to vector<64x128xbf16>
    %c5 = arith.constant 5 : index
    %c0_64 = arith.constant 0 : index
    %c0_65 = arith.constant 0 : index
    %60 = vector.load %arg2[%c5, %c0_64, %c0_65] : memref<9x128x128xbf16, #tpu.memory_space<vmem>>, vector<1x128x128xbf16>
    %61 = vector.shape_cast %60 : vector<1x128x128xbf16> to vector<128x128xbf16>
    %cst_66 = arith.constant dense<0.000000e+00> : vector<64x128xf32>
    %62 = tpu.matmul %59, %61, %cst_66 {dimension_numbers = #tpu.dot_dimension_numbers<[1], [0], [0], [1], [0, 0, 1, 1], [], []>} : vector<64x128xbf16>, vector<128x128xbf16>, vector<64x128xf32> -> vector<64x128xf32>
    %63 = arith.addf %57, %62 : vector<64x128xf32>
    %c2_67 = arith.constant 2 : index
    %c0_68 = arith.constant 0 : index
    %c0_69 = arith.constant 0 : index
    %64 = vector.load %arg9[%c2_67, %c0_68, %c0_69] : memref<10x16x128xbf16, #tpu.memory_space<vmem>>, vector<8x8x128xbf16>
    %65 = vector.shape_cast %64 : vector<8x8x128xbf16> to vector<64x128xbf16>
    %c6 = arith.constant 6 : index
    %c0_70 = arith.constant 0 : index
    %c0_71 = arith.constant 0 : index
    %66 = vector.load %arg2[%c6, %c0_70, %c0_71] : memref<9x128x128xbf16, #tpu.memory_space<vmem>>, vector<1x128x128xbf16>
    %67 = vector.shape_cast %66 : vector<1x128x128xbf16> to vector<128x128xbf16>
    %cst_72 = arith.constant dense<0.000000e+00> : vector<64x128xf32>
    %68 = tpu.matmul %65, %67, %cst_72 {dimension_numbers = #tpu.dot_dimension_numbers<[1], [0], [0], [1], [0, 0, 1, 1], [], []>} : vector<64x128xbf16>, vector<128x128xbf16>, vector<64x128xf32> -> vector<64x128xf32>
    %69 = arith.addf %63, %68 : vector<64x128xf32>
    %c2_73 = arith.constant 2 : index
    %c1_74 = arith.constant 1 : index
    %c0_75 = arith.constant 0 : index
    %70 = vector.load %arg9[%c2_73, %c1_74, %c0_75] : memref<10x16x128xbf16, #tpu.memory_space<vmem>>, vector<8x8x128xbf16>
    %71 = vector.shape_cast %70 : vector<8x8x128xbf16> to vector<64x128xbf16>
    %c7 = arith.constant 7 : index
    %c0_76 = arith.constant 0 : index
    %c0_77 = arith.constant 0 : index
    %72 = vector.load %arg2[%c7, %c0_76, %c0_77] : memref<9x128x128xbf16, #tpu.memory_space<vmem>>, vector<1x128x128xbf16>
    %73 = vector.shape_cast %72 : vector<1x128x128xbf16> to vector<128x128xbf16>
    %cst_78 = arith.constant dense<0.000000e+00> : vector<64x128xf32>
    %74 = tpu.matmul %71, %73, %cst_78 {dimension_numbers = #tpu.dot_dimension_numbers<[1], [0], [0], [1], [0, 0, 1, 1], [], []>} : vector<64x128xbf16>, vector<128x128xbf16>, vector<64x128xf32> -> vector<64x128xf32>
    %75 = arith.addf %69, %74 : vector<64x128xf32>
    %c2_79 = arith.constant 2 : index
    %c2_80 = arith.constant 2 : index
    %c0_81 = arith.constant 0 : index
    %76 = vector.load %arg9[%c2_79, %c2_80, %c0_81] : memref<10x16x128xbf16, #tpu.memory_space<vmem>>, vector<8x8x128xbf16>
    %77 = vector.shape_cast %76 : vector<8x8x128xbf16> to vector<64x128xbf16>
    %c8 = arith.constant 8 : index
    %c0_82 = arith.constant 0 : index
    %c0_83 = arith.constant 0 : index
    %78 = vector.load %arg2[%c8, %c0_82, %c0_83] : memref<9x128x128xbf16, #tpu.memory_space<vmem>>, vector<1x128x128xbf16>
    %79 = vector.shape_cast %78 : vector<1x128x128xbf16> to vector<128x128xbf16>
    %cst_84 = arith.constant dense<0.000000e+00> : vector<64x128xf32>
    %80 = tpu.matmul %77, %79, %cst_84 {dimension_numbers = #tpu.dot_dimension_numbers<[1], [0], [0], [1], [0, 0, 1, 1], [], []>} : vector<64x128xbf16>, vector<128x128xbf16>, vector<64x128xf32> -> vector<64x128xf32>
    %81 = arith.addf %75, %80 : vector<64x128xf32>
    %82 = vector.broadcast %25 : vector<1x128xf32> to vector<64x128xf32>
    %83 = arith.mulf %81, %82 : vector<64x128xf32>
    %84 = vector.broadcast %26 : vector<1x128xf32> to vector<64x128xf32>
    %85 = arith.addf %83, %84 : vector<64x128xf32>
    %cst_85 = arith.constant 0.000000e+00 : f32
    %86 = vector.broadcast %cst_85 : f32 to vector<64x128xf32>
    %87 = arith.maximumf %85, %86 : vector<64x128xf32>
    %cst_86 = arith.constant 0.000000e+00 : bf16
    %88 = vector.broadcast %cst_86 : bf16 to vector<1x16x128xbf16>
    %c0_87 = arith.constant 0 : index
    %c0_88 = arith.constant 0 : index
    %c0_89 = arith.constant 0 : index
    %89 = vector.load %arg10[%c0_87, %c0_88, %c0_89] : memref<10x16x128xbf16, #tpu.memory_space<vmem>>, vector<1x16x128xbf16>
    tpu.vector_store %arg10[%c0_87, %c0_88, %c0_89], %88 {strides = array<i32>} : memref<10x16x128xbf16, #tpu.memory_space<vmem>>, vector<1x16x128xbf16>,
    %cst_90 = arith.constant 0.000000e+00 : bf16
    %90 = vector.broadcast %cst_90 : bf16 to vector<1x16x128xbf16>
    %c9_91 = arith.constant 9 : index
    %c0_92 = arith.constant 0 : index
    %c0_93 = arith.constant 0 : index
    %91 = vector.load %arg10[%c9_91, %c0_92, %c0_93] : memref<10x16x128xbf16, #tpu.memory_space<vmem>>, vector<1x16x128xbf16>
    tpu.vector_store %arg10[%c9_91, %c0_92, %c0_93], %90 {strides = array<i32>} : memref<10x16x128xbf16, #tpu.memory_space<vmem>>, vector<1x16x128xbf16>,
    %cst_94 = arith.constant 0.000000e+00 : bf16
    %92 = vector.broadcast %cst_94 : bf16 to vector<10x1x128xbf16>
    %c0_95 = arith.constant 0 : index
    %c0_96 = arith.constant 0 : index
    %c0_97 = arith.constant 0 : index
    %93 = vector.load %arg10[%c0_95, %c0_96, %c0_97] : memref<10x16x128xbf16, #tpu.memory_space<vmem>>, vector<10x1x128xbf16>
    tpu.vector_store %arg10[%c0_95, %c0_96, %c0_97], %92 {strides = array<i32>} : memref<10x16x128xbf16, #tpu.memory_space<vmem>>, vector<10x1x128xbf16>,
    %cst_98 = arith.constant 0.000000e+00 : bf16
    %94 = vector.broadcast %cst_98 : bf16 to vector<10x1x128xbf16>
    %c0_99 = arith.constant 0 : index
    %c9_100 = arith.constant 9 : index
    %c0_101 = arith.constant 0 : index
    %95 = vector.load %arg10[%c0_99, %c9_100, %c0_101] : memref<10x16x128xbf16, #tpu.memory_space<vmem>>, vector<10x1x128xbf16>
    tpu.vector_store %arg10[%c0_99, %c9_100, %c0_101], %94 {strides = array<i32>} : memref<10x16x128xbf16, #tpu.memory_space<vmem>>, vector<10x1x128xbf16>,
    %96 = vector.shape_cast %87 : vector<64x128xf32> to vector<8x8x128xf32>
    %97 = arith.truncf %96 : vector<8x8x128xf32> to vector<8x8x128xbf16>
    %c1_102 = arith.constant 1 : index
    %c1_103 = arith.constant 1 : index
    %c0_104 = arith.constant 0 : index
    %98 = vector.load %arg10[%c1_102, %c1_103, %c0_104] : memref<10x16x128xbf16, #tpu.memory_space<vmem>>, vector<8x8x128xbf16>
    tpu.vector_store %arg10[%c1_102, %c1_103, %c0_104], %97 {strides = array<i32>} : memref<10x16x128xbf16, #tpu.memory_space<vmem>>, vector<8x8x128xbf16>,
    %c0_105 = arith.constant 0 : index
    %c0_106 = arith.constant 0 : index
    %99 = vector.load %arg6[%c0_105, %c0_106] : memref<1x128xf32, #tpu.memory_space<vmem>>, vector<1x128xf32>
    %c0_107 = arith.constant 0 : index
    %c0_108 = arith.constant 0 : index
    %100 = vector.load %arg7[%c0_107, %c0_108] : memref<1x128xf32, #tpu.memory_space<vmem>>, vector<1x128xf32>
    %cst_109 = arith.constant 0.000000e+00 : f32
    %101 = vector.broadcast %cst_109 : f32 to vector<64x128xf32>
    %c0_110 = arith.constant 0 : index
    %c0_111 = arith.constant 0 : index
    %c0_112 = arith.constant 0 : index
    %102 = vector.load %arg10[%c0_110, %c0_111, %c0_112] : memref<10x16x128xbf16, #tpu.memory_space<vmem>>, vector<8x8x128xbf16>
    %103 = vector.shape_cast %102 : vector<8x8x128xbf16> to vector<64x128xbf16>
    %c0_113 = arith.constant 0 : index
    %c0_114 = arith.constant 0 : index
    %c0_115 = arith.constant 0 : index
    %104 = vector.load %arg5[%c0_113, %c0_114, %c0_115] : memref<9x128x128xbf16, #tpu.memory_space<vmem>>, vector<1x128x128xbf16>
    %105 = vector.shape_cast %104 : vector<1x128x128xbf16> to vector<128x128xbf16>
    %cst_116 = arith.constant dense<0.000000e+00> : vector<64x128xf32>
    %106 = tpu.matmul %103, %105, %cst_116 {dimension_numbers = #tpu.dot_dimension_numbers<[1], [0], [0], [1], [0, 0, 1, 1], [], []>} : vector<64x128xbf16>, vector<128x128xbf16>, vector<64x128xf32> -> vector<64x128xf32>
    %107 = arith.addf %101, %106 : vector<64x128xf32>
    %c0_117 = arith.constant 0 : index
    %c1_118 = arith.constant 1 : index
    %c0_119 = arith.constant 0 : index
    %108 = vector.load %arg10[%c0_117, %c1_118, %c0_119] : memref<10x16x128xbf16, #tpu.memory_space<vmem>>, vector<8x8x128xbf16>
    %109 = vector.shape_cast %108 : vector<8x8x128xbf16> to vector<64x128xbf16>
    %c1_120 = arith.constant 1 : index
    %c0_121 = arith.constant 0 : index
    %c0_122 = arith.constant 0 : index
    %110 = vector.load %arg5[%c1_120, %c0_121, %c0_122] : memref<9x128x128xbf16, #tpu.memory_space<vmem>>, vector<1x128x128xbf16>
    %111 = vector.shape_cast %110 : vector<1x128x128xbf16> to vector<128x128xbf16>
    %cst_123 = arith.constant dense<0.000000e+00> : vector<64x128xf32>
    %112 = tpu.matmul %109, %111, %cst_123 {dimension_numbers = #tpu.dot_dimension_numbers<[1], [0], [0], [1], [0, 0, 1, 1], [], []>} : vector<64x128xbf16>, vector<128x128xbf16>, vector<64x128xf32> -> vector<64x128xf32>
    %113 = arith.addf %107, %112 : vector<64x128xf32>
    %c0_124 = arith.constant 0 : index
    %c2_125 = arith.constant 2 : index
    %c0_126 = arith.constant 0 : index
    %114 = vector.load %arg10[%c0_124, %c2_125, %c0_126] : memref<10x16x128xbf16, #tpu.memory_space<vmem>>, vector<8x8x128xbf16>
    %115 = vector.shape_cast %114 : vector<8x8x128xbf16> to vector<64x128xbf16>
    %c2_127 = arith.constant 2 : index
    %c0_128 = arith.constant 0 : index
    %c0_129 = arith.constant 0 : index
    %116 = vector.load %arg5[%c2_127, %c0_128, %c0_129] : memref<9x128x128xbf16, #tpu.memory_space<vmem>>, vector<1x128x128xbf16>
    %117 = vector.shape_cast %116 : vector<1x128x128xbf16> to vector<128x128xbf16>
    %cst_130 = arith.constant dense<0.000000e+00> : vector<64x128xf32>
    %118 = tpu.matmul %115, %117, %cst_130 {dimension_numbers = #tpu.dot_dimension_numbers<[1], [0], [0], [1], [0, 0, 1, 1], [], []>} : vector<64x128xbf16>, vector<128x128xbf16>, vector<64x128xf32> -> vector<64x128xf32>
    %119 = arith.addf %113, %118 : vector<64x128xf32>
    %c1_131 = arith.constant 1 : index
    %c0_132 = arith.constant 0 : index
    %c0_133 = arith.constant 0 : index
    %120 = vector.load %arg10[%c1_131, %c0_132, %c0_133] : memref<10x16x128xbf16, #tpu.memory_space<vmem>>, vector<8x8x128xbf16>
    %121 = vector.shape_cast %120 : vector<8x8x128xbf16> to vector<64x128xbf16>
    %c3_134 = arith.constant 3 : index
    %c0_135 = arith.constant 0 : index
    %c0_136 = arith.constant 0 : index
    %122 = vector.load %arg5[%c3_134, %c0_135, %c0_136] : memref<9x128x128xbf16, #tpu.memory_space<vmem>>, vector<1x128x128xbf16>
    %123 = vector.shape_cast %122 : vector<1x128x128xbf16> to vector<128x128xbf16>
    %cst_137 = arith.constant dense<0.000000e+00> : vector<64x128xf32>
    %124 = tpu.matmul %121, %123, %cst_137 {dimension_numbers = #tpu.dot_dimension_numbers<[1], [0], [0], [1], [0, 0, 1, 1], [], []>} : vector<64x128xbf16>, vector<128x128xbf16>, vector<64x128xf32> -> vector<64x128xf32>
    %125 = arith.addf %119, %124 : vector<64x128xf32>
    %c1_138 = arith.constant 1 : index
    %c1_139 = arith.constant 1 : index
    %c0_140 = arith.constant 0 : index
    %126 = vector.load %arg10[%c1_138, %c1_139, %c0_140] : memref<10x16x128xbf16, #tpu.memory_space<vmem>>, vector<8x8x128xbf16>
    %127 = vector.shape_cast %126 : vector<8x8x128xbf16> to vector<64x128xbf16>
    %c4_141 = arith.constant 4 : index
    %c0_142 = arith.constant 0 : index
    %c0_143 = arith.constant 0 : index
    %128 = vector.load %arg5[%c4_141, %c0_142, %c0_143] : memref<9x128x128xbf16, #tpu.memory_space<vmem>>, vector<1x128x128xbf16>
    %129 = vector.shape_cast %128 : vector<1x128x128xbf16> to vector<128x128xbf16>
    %cst_144 = arith.constant dense<0.000000e+00> : vector<64x128xf32>
    %130 = tpu.matmul %127, %129, %cst_144 {dimension_numbers = #tpu.dot_dimension_numbers<[1], [0], [0], [1], [0, 0, 1, 1], [], []>} : vector<64x128xbf16>, vector<128x128xbf16>, vector<64x128xf32> -> vector<64x128xf32>
    %131 = arith.addf %125, %130 : vector<64x128xf32>
    %c1_145 = arith.constant 1 : index
    %c2_146 = arith.constant 2 : index
    %c0_147 = arith.constant 0 : index
    %132 = vector.load %arg10[%c1_145, %c2_146, %c0_147] : memref<10x16x128xbf16, #tpu.memory_space<vmem>>, vector<8x8x128xbf16>
    %133 = vector.shape_cast %132 : vector<8x8x128xbf16> to vector<64x128xbf16>
    %c5_148 = arith.constant 5 : index
    %c0_149 = arith.constant 0 : index
    %c0_150 = arith.constant 0 : index
    %134 = vector.load %arg5[%c5_148, %c0_149, %c0_150] : memref<9x128x128xbf16, #tpu.memory_space<vmem>>, vector<1x128x128xbf16>
    %135 = vector.shape_cast %134 : vector<1x128x128xbf16> to vector<128x128xbf16>
    %cst_151 = arith.constant dense<0.000000e+00> : vector<64x128xf32>
    %136 = tpu.matmul %133, %135, %cst_151 {dimension_numbers = #tpu.dot_dimension_numbers<[1], [0], [0], [1], [0, 0, 1, 1], [], []>} : vector<64x128xbf16>, vector<128x128xbf16>, vector<64x128xf32> -> vector<64x128xf32>
    %137 = arith.addf %131, %136 : vector<64x128xf32>
    %c2_152 = arith.constant 2 : index
    %c0_153 = arith.constant 0 : index
    %c0_154 = arith.constant 0 : index
    %138 = vector.load %arg10[%c2_152, %c0_153, %c0_154] : memref<10x16x128xbf16, #tpu.memory_space<vmem>>, vector<8x8x128xbf16>
    %139 = vector.shape_cast %138 : vector<8x8x128xbf16> to vector<64x128xbf16>
    %c6_155 = arith.constant 6 : index
    %c0_156 = arith.constant 0 : index
    %c0_157 = arith.constant 0 : index
    %140 = vector.load %arg5[%c6_155, %c0_156, %c0_157] : memref<9x128x128xbf16, #tpu.memory_space<vmem>>, vector<1x128x128xbf16>
    %141 = vector.shape_cast %140 : vector<1x128x128xbf16> to vector<128x128xbf16>
    %cst_158 = arith.constant dense<0.000000e+00> : vector<64x128xf32>
    %142 = tpu.matmul %139, %141, %cst_158 {dimension_numbers = #tpu.dot_dimension_numbers<[1], [0], [0], [1], [0, 0, 1, 1], [], []>} : vector<64x128xbf16>, vector<128x128xbf16>, vector<64x128xf32> -> vector<64x128xf32>
    %143 = arith.addf %137, %142 : vector<64x128xf32>
    %c2_159 = arith.constant 2 : index
    %c1_160 = arith.constant 1 : index
    %c0_161 = arith.constant 0 : index
    %144 = vector.load %arg10[%c2_159, %c1_160, %c0_161] : memref<10x16x128xbf16, #tpu.memory_space<vmem>>, vector<8x8x128xbf16>
    %145 = vector.shape_cast %144 : vector<8x8x128xbf16> to vector<64x128xbf16>
    %c7_162 = arith.constant 7 : index
    %c0_163 = arith.constant 0 : index
    %c0_164 = arith.constant 0 : index
    %146 = vector.load %arg5[%c7_162, %c0_163, %c0_164] : memref<9x128x128xbf16, #tpu.memory_space<vmem>>, vector<1x128x128xbf16>
    %147 = vector.shape_cast %146 : vector<1x128x128xbf16> to vector<128x128xbf16>
    %cst_165 = arith.constant dense<0.000000e+00> : vector<64x128xf32>
    %148 = tpu.matmul %145, %147, %cst_165 {dimension_numbers = #tpu.dot_dimension_numbers<[1], [0], [0], [1], [0, 0, 1, 1], [], []>} : vector<64x128xbf16>, vector<128x128xbf16>, vector<64x128xf32> -> vector<64x128xf32>
    %149 = arith.addf %143, %148 : vector<64x128xf32>
    %c2_166 = arith.constant 2 : index
    %c2_167 = arith.constant 2 : index
    %c0_168 = arith.constant 0 : index
    %150 = vector.load %arg10[%c2_166, %c2_167, %c0_168] : memref<10x16x128xbf16, #tpu.memory_space<vmem>>, vector<8x8x128xbf16>
    %151 = vector.shape_cast %150 : vector<8x8x128xbf16> to vector<64x128xbf16>
    %c8_169 = arith.constant 8 : index
    %c0_170 = arith.constant 0 : index
    %c0_171 = arith.constant 0 : index
    %152 = vector.load %arg5[%c8_169, %c0_170, %c0_171] : memref<9x128x128xbf16, #tpu.memory_space<vmem>>, vector<1x128x128xbf16>
    %153 = vector.shape_cast %152 : vector<1x128x128xbf16> to vector<128x128xbf16>
    %cst_172 = arith.constant dense<0.000000e+00> : vector<64x128xf32>
    %154 = tpu.matmul %151, %153, %cst_172 {dimension_numbers = #tpu.dot_dimension_numbers<[1], [0], [0], [1], [0, 0, 1, 1], [], []>} : vector<64x128xbf16>, vector<128x128xbf16>, vector<64x128xf32> -> vector<64x128xf32>
    %155 = arith.addf %149, %154 : vector<64x128xf32>
    %156 = vector.broadcast %99 : vector<1x128xf32> to vector<64x128xf32>
    %157 = arith.mulf %155, %156 : vector<64x128xf32>
    %158 = vector.broadcast %100 : vector<1x128xf32> to vector<64x128xf32>
    %159 = arith.addf %157, %158 : vector<64x128xf32>
    %cst_173 = arith.constant 0.000000e+00 : f32
    %160 = vector.broadcast %cst_173 : f32 to vector<64x128xf32>
    %161 = arith.maximumf %159, %160 : vector<64x128xf32>
    %162 = tpu.transpose %161, [1, 0] : vector<64x128xf32> -> vector<128x64xf32>
    %163 = vector.extract_strided_slice %162 {offsets = [0, 0], sizes = [8, 64], strides = [1, 1]} : vector<128x64xf32> to vector<8x64xf32>
    %c0_174 = arith.constant 0 : index
    %c0_175 = arith.constant 0 : index
    %c0_176 = arith.constant 0 : index
    %164 = vector.load %arg8[%c0_174, %c0_175, %c0_176] : memref<1x8x64xf32, #tpu.memory_space<vmem>>, vector<1x8x64xf32>
    %165 = vector.shape_cast %164 : vector<1x8x64xf32> to vector<8x64xf32>
    %166 = vector.shape_cast %163 : vector<8x64xf32> to vector<1x8x64xf32>
    tpu.vector_store %arg8[%c0_174, %c0_175, %c0_176], %166 {strides = array<i32>} : memref<1x8x64xf32, #tpu.memory_space<vmem>>, vector<1x8x64xf32>,
    return
  }
  func.func @transform_0(%arg0: i32) -> (i32, i32, i32, i32, i32) {
    %c0_i32 = arith.constant 0 : i32
    %c0_i32_0 = arith.constant 0 : i32
    %c0_i32_1 = arith.constant 0 : i32
    %c0_i32_2 = arith.constant 0 : i32
    %c0_i32_3 = arith.constant 0 : i32
    return %arg0, %c0_i32, %c0_i32_0, %c0_i32_1, %c0_i32_2 : i32, i32, i32, i32, i32
  }
  func.func @transform_1(%arg0: i32) -> (i32, i32, i32) {
    %c0_i32 = arith.constant 0 : i32
    %c0_i32_0 = arith.constant 0 : i32
    %c0_i32_1 = arith.constant 0 : i32
    %c0_i32_2 = arith.constant 0 : i32
    return %c0_i32, %c0_i32_0, %c0_i32_1 : i32, i32, i32
  }
  func.func @transform_2(%arg0: i32) -> (i32, i32) {
    %c0_i32 = arith.constant 0 : i32
    %c0_i32_0 = arith.constant 0 : i32
    %c0_i32_1 = arith.constant 0 : i32
    return %c0_i32, %c0_i32_0 : i32, i32
  }
  func.func @transform_3(%arg0: i32) -> (i32, i32) {
    %c0_i32 = arith.constant 0 : i32
    %c0_i32_0 = arith.constant 0 : i32
    %c0_i32_1 = arith.constant 0 : i32
    return %c0_i32, %c0_i32_0 : i32, i32
  }
  func.func @transform_4(%arg0: i32) -> (i32, i32, i32) {
    %c0_i32 = arith.constant 0 : i32
    %c0_i32_0 = arith.constant 0 : i32
    %c0_i32_1 = arith.constant 0 : i32
    %c0_i32_2 = arith.constant 0 : i32
    return %c0_i32, %c0_i32_0, %c0_i32_1 : i32, i32, i32
  }
  func.func @transform_5(%arg0: i32) -> (i32, i32) {
    %c0_i32 = arith.constant 0 : i32
    %c0_i32_0 = arith.constant 0 : i32
    %c0_i32_1 = arith.constant 0 : i32
    return %c0_i32, %c0_i32_0 : i32, i32
  }
  func.func @transform_6(%arg0: i32) -> (i32, i32) {
    %c0_i32 = arith.constant 0 : i32
    %c0_i32_0 = arith.constant 0 : i32
    %c0_i32_1 = arith.constant 0 : i32
    return %c0_i32, %c0_i32_0 : i32, i32
  }
  func.func @transform_7(%arg0: i32) -> (i32, i32, i32) {
    %c0_i32 = arith.constant 0 : i32
    %c0_i32_0 = arith.constant 0 : i32
    %c0_i32_1 = arith.constant 0 : i32
    return %arg0, %c0_i32, %c0_i32_0 : i32, i32, i32
  }
}

</mosaic_0001>

<llo_original>
// kernel: tpu_custom_call.1
$region0: #{tpu_custom_call.1}
  #allocation0 [shape = 'u32[]', space=smem, size = 0x4, offset = 0x4, fixed_abs, tag = 'smem constant byte address 0x4 - core index']
  #allocation1 [shape = 'u32[144,128]{1,0:T(1,128)}', space=vmem, size = 0x12000, scoped, tag = 'internal scratch']
  #allocation2 [shape = 'bf16[10,16,128]{2,1,0:T(16,128)(2,1)}', space=vmem, size = 0xa000, scoped, tag = 'scratch operand']
  #allocation3 [shape = 'bf16[10,16,128]{2,1,0:T(16,128)(2,1)}', space=vmem, size = 0xa000, scoped, tag = 'scratch operand']
  %s0 = inlined_call_operand.hbm [shape: f32[2,8,2,8,8], index: 0, kind: input, shape index: {}]
  %s1 = inlined_call_operand.hbm [shape: bf16[9,128,128], index: 1, kind: input, shape index: {}]
  %s2 = inlined_call_operand.hbm [shape: f32[1,128], index: 2, kind: input, shape index: {}]
  %s3 = inlined_call_operand.hbm [shape: f32[1,128], index: 3, kind: input, shape index: {}]
  %s4 = inlined_call_operand.hbm [shape: bf16[9,128,128], index: 4, kind: input, shape index: {}]
  %s5 = inlined_call_operand.hbm [shape: f32[1,128], index: 5, kind: input, shape index: {}]
  %s6 = inlined_call_operand.hbm [shape: f32[1,128], index: 6, kind: input, shape index: {}]
  %s7 = inlined_call_operand.hbm [shape: f32[2,8,64], index: 7, kind: output, shape index: {}]
  %s8 = sld [smem:[#allocation0]]
  $region89: #{tpu_custom_call.1} parent=0
    _
  %s10 = ssub.s32 1, %s8
  %s11 = scalar_select 0, %s10, %s8
  $region1: #{tpu_custom_call.1} parent=0
    #allocation4 [shape = 'u8[131072]{0}', space=vmem, size = 0x20000, scoped, tag = 'input window, operand 0']
    #allocation5 [shape = 's32[2]{0}', space=sflag, size = 0x8, scoped, tag = 'scoped memory for tpu_custom_call.1']
    #allocation6 [shape = 's32[2]{0}', space=sflag, size = 0x8, scoped, tag = 'scoped memory for tpu_custom_call.1']
    #allocation7 [shape = 'u8[294912]{0}', space=vmem, size = 0x48000, scoped, tag = 'input window, operand 1, single buffered']
    #allocation8 [shape = 's32[1]{0}', space=sflag, size = 0x4, scoped, tag = 'scoped memory for tpu_custom_call.1']
    #allocation9 [shape = 'u8[512]{0}', space=vmem, size = 0x400, scoped, tag = 'input window, operand 2, single buffered']
    #allocation10 [shape = 'u8[512]{0}', space=vmem, size = 0x400, scoped, tag = 'input window, operand 3, single buffered']
    #allocation11 [shape = 's32[1]{0}', space=sflag, size = 0x4, scoped, tag = 'scoped memory for tpu_custom_call.1']
    #allocation12 [shape = 'u8[294912]{0}', space=vmem, size = 0x48000, scoped, tag = 'input window, operand 4, single buffered']
    #allocation13 [shape = 'u8[512]{0}', space=vmem, size = 0x400, scoped, tag = 'input window, operand 5, single buffered']
    #allocation14 [shape = 's32[1]{0}', space=sflag, size = 0x4, scoped, tag = 'scoped memory for tpu_custom_call.1']
    #allocation15 [shape = 'u8[512]{0}', space=vmem, size = 0x400, scoped, tag = 'input window, operand 6, single buffered']
    #allocation16 [shape = 'u8[8192]{0}', space=vmem, size = 0x2000, scoped, tag = 'output window, operand 0']
    %12 = vsyncpa [#allocation5], 0
    %s13 = scalar_lea.sflag [#allocation5], 1
    %14 = vsyncpa %s13, 0
    %15 = vsyncpa [#allocation8], 0
    %16 = vsyncpa [#allocation11], 0
    %17 = vsyncpa [#allocation14], 0
    %18 = vsyncpa [#allocation6], 0
    %s19 = scalar_lea.sflag [#allocation6], 1
    %20 = vsyncpa %s19, 0
    loop: start=0, step=1, limit=4
    $region2: #{tpu_custom_call.1} parent=1 // loop_pre_header
      _
    $region3: #{tpu_custom_call.1} parent=1 // loop_header
      %s22 = sphi 0, %s26
      %p23 = scmp.ge.s32.totalorder %s22, 4
      %s32 = sphi 0, %s34
      %s35 = sphi 0, %s32
      %s36 = sphi 0, %s35
      %s52 = sphi 0, %s36
      %s56 = sphi 0, %s56
      %s58 = sphi 0, %s56
      %s59 = sphi 0, %s58
      %s73 = sphi 0, %s59
      %s77 = sphi 0, %s77
      %s79 = sphi 0, %s77
      %s80 = sphi 0, %s79
      %s94 = sphi 0, %s80
      %s98 = sphi 0, %s98
      %s100 = sphi 0, %s98
      %s101 = sphi 0, %s100
      %s115 = sphi 0, %s101
      %s119 = sphi 0, %s119
      %s121 = sphi 0, %s119
      %s122 = sphi 0, %s121
      %s136 = sphi 0, %s122
      %s140 = sphi 0, %s140
      %s142 = sphi 0, %s140
      %s143 = sphi 0, %s142
      %s157 = sphi 0, %s143
      %s161 = sphi 0, %s161
      %s163 = sphi 0, %s161
      %s164 = sphi 0, %s163
      %s178 = sphi 0, %s164
      %s184 = sphi 0, %s186
      %s187 = sphi 0, %s184
      %s188 = sphi 0, %s187
      %s204 = sphi 0, %s188
    $region4: #{tpu_custom_call.1} parent=1 // loop_header_branch
      %25 = sbr.rel (%p23) target = $region8
    $region5: #{tpu_custom_call.1} parent=1 // loop_body
      %s27 = ssub.s32 %s22, 1
      %s28 = ssub.s32 %s22, 2
      %s29 = sadd.s32 %s22, 1
      %s30 = ssub.s32 %s22, %s29
      %p31 = scmp.eq.s32.totalorder %s30, 0
      %s33 = sadd.s32 %s32, 1
      %s34 = scalar_select %p31, %s32, %s33
      %p37 = pneg %p31
      %p38 = scmp.eq.s32.totalorder %s22, 1
      %p39 = por %p37, %p38
      %p40 = scmp.ne.s32.totalorder %s32, %s35
      %p41 = scmp.eq.s32.totalorder %s22, 0
      %p42 = por %p40, %p41
      %p43 = scmp.ne.s32.totalorder %s32, %s35
      %p44 = scmp.eq.s32.totalorder %s27, 1
      %p45 = por %p43, %p44
      %p46 = scmp.ne.s32.totalorder %s35, %s36
      %p47 = scmp.eq.s32.totalorder %s27, 0
      %p48 = por %p46, %p47
      %p49 = scmp.ne.s32.totalorder %s35, %s36
      %p50 = scmp.eq.s32.totalorder %s28, 1
      %p51 = por %p49, %p50
      %p53 = scmp.ne.s32.totalorder %s36, %s52
      %p54 = scmp.eq.s32.totalorder %s28, 0
      %p55 = por %p53, %p54
      %s57 = sadd.s32 %s56, 1
      %p60 = scmp.eq.s32.totalorder %s22, 1
      %p61 = scmp.ne.s32.totalorder %s56, %s58
      %p62 = scmp.eq.s32.totalorder %s22, 0
      %p63 = por %p61, %p62
      %p64 = scmp.ne.s32.totalorder %s56, %s58
      %p65 = scmp.eq.s32.totalorder %s27, 1
      %p66 = por %p64, %p65
      %p67 = scmp.ne.s32.totalorder %s58, %s59
      %p68 = scmp.eq.s32.totalorder %s27, 0
      %p69 = por %p67, %p68
      %p70 = scmp.ne.s32.totalorder %s58, %s59
      %p71 = scmp.eq.s32.totalorder %s28, 1
      %p72 = por %p70, %p71
      %p74 = scmp.ne.s32.totalorder %s59, %s73
      %p75 = scmp.eq.s32.totalorder %s28, 0
      %p76 = por %p74, %p75
      %s78 = sadd.s32 %s77, 1
      %p81 = scmp.eq.s32.totalorder %s22, 1
      %p82 = scmp.ne.s32.totalorder %s77, %s79
      %p83 = scmp.eq.s32.totalorder %s22, 0
      %p84 = por %p82, %p83
      %p85 = scmp.ne.s32.totalorder %s77, %s79
      %p86 = scmp.eq.s32.totalorder %s27, 1
      %p87 = por %p85, %p86
      %p88 = scmp.ne.s32.totalorder %s79, %s80
      %p89 = scmp.eq.s32.totalorder %s27, 0
      %p90 = por %p88, %p89
      %p91 = scmp.ne.s32.totalorder %s79, %s80
      %p92 = scmp.eq.s32.totalorder %s28, 1
      %p93 = por %p91, %p92
      %p95 = scmp.ne.s32.totalorder %s80, %s94
      %p96 = scmp.eq.s32.totalorder %s28, 0
      %p97 = por %p95, %p96
      %s99 = sadd.s32 %s98, 1
      %p102 = scmp.eq.s32.totalorder %s22, 1
      %p103 = scmp.ne.s32.totalorder %s98, %s100
      %p104 = scmp.eq.s32.totalorder %s22, 0
      %p105 = por %p103, %p104
      %p106 = scmp.ne.s32.totalorder %s98, %s100
      %p107 = scmp.eq.s32.totalorder %s27, 1
      %p108 = por %p106, %p107
      %p109 = scmp.ne.s32.totalorder %s100, %s101
      %p110 = scmp.eq.s32.totalorder %s27, 0
      %p111 = por %p109, %p110
      %p112 = scmp.ne.s32.totalorder %s100, %s101
      %p113 = scmp.eq.s32.totalorder %s28, 1
      %p114 = por %p112, %p113
      %p116 = scmp.ne.s32.totalorder %s101, %s115
      %p117 = scmp.eq.s32.totalorder %s28, 0
      %p118 = por %p116, %p117
      %s120 = sadd.s32 %s119, 1
      %p123 = scmp.eq.s32.totalorder %s22, 1
      %p124 = scmp.ne.s32.totalorder %s119, %s121
      %p125 = scmp.eq.s32.totalorder %s22, 0
      %p126 = por %p124, %p125
      %p127 = scmp.ne.s32.totalorder %s119, %s121
      %p128 = scmp.eq.s32.totalorder %s27, 1
      %p129 = por %p127, %p128
      %p130 = scmp.ne.s32.totalorder %s121, %s122
      %p131 = scmp.eq.s32.totalorder %s27, 0
      %p132 = por %p130, %p131
      %p133 = scmp.ne.s32.totalorder %s121, %s122
      %p134 = scmp.eq.s32.totalorder %s28, 1
      %p135 = por %p133, %p134
      %p137 = scmp.ne.s32.totalorder %s122, %s136
      %p138 = scmp.eq.s32.totalorder %s28, 0
      %p139 = por %p137, %p138
      %s141 = sadd.s32 %s140, 1
      %p144 = scmp.eq.s32.totalorder %s22, 1
      %p145 = scmp.ne.s32.totalorder %s140, %s142
      %p146 = scmp.eq.s32.totalorder %s22, 0
      %p147 = por %p145, %p146
      %p148 = scmp.ne.s32.totalorder %s140, %s142
      %p149 = scmp.eq.s32.totalorder %s27, 1
      %p150 = por %p148, %p149
      %p151 = scmp.ne.s32.totalorder %s142, %s143
      %p152 = scmp.eq.s32.totalorder %s27, 0
      %p153 = por %p151, %p152
      %p154 = scmp.ne.s32.totalorder %s142, %s143
      %p155 = scmp.eq.s32.totalorder %s28, 1
      %p156 = por %p154, %p155
      %p158 = scmp.ne.s32.totalorder %s143, %s157
      %p159 = scmp.eq.s32.totalorder %s28, 0
      %p160 = por %p158, %p159
      %s162 = sadd.s32 %s161, 1
      %p165 = scmp.eq.s32.totalorder %s22, 1
      %p166 = scmp.ne.s32.totalorder %s161, %s163
      %p167 = scmp.eq.s32.totalorder %s22, 0
      %p168 = por %p166, %p167
      %p169 = scmp.ne.s32.totalorder %s161, %s163
      %p170 = scmp.eq.s32.totalorder %s27, 1
      %p171 = por %p169, %p170
      %p172 = scmp.ne.s32.totalorder %s163, %s164
      %p173 = scmp.eq.s32.totalorder %s27, 0
      %p174 = por %p172, %p173
      %p175 = scmp.ne.s32.totalorder %s163, %s164
      %p176 = scmp.eq.s32.totalorder %s28, 1
      %p177 = por %p175, %p176
      %p179 = scmp.ne.s32.totalorder %s164, %s178
      %p180 = scmp.eq.s32.totalorder %s28, 0
      %p181 = por %p179, %p180
      %s182 = ssub.s32 %s22, %s29
      %p183 = scmp.eq.s32.totalorder %s182, 0
      %s185 = sadd.s32 %s184, 1
      %s186 = scalar_select %p183, %s184, %s185
      %p189 = pneg %p183
      %p190 = scmp.eq.s32.totalorder %s22, 1
      %p191 = por %p189, %p190
      %p192 = scmp.ne.s32.totalorder %s184, %s187
      %p193 = scmp.eq.s32.totalorder %s22, 0
      %p194 = por %p192, %p193
      %p195 = scmp.ne.s32.totalorder %s184, %s187
      %p196 = scmp.eq.s32.totalorder %s27, 1
      %p197 = por %p195, %p196
      %p198 = scmp.ne.s32.totalorder %s187, %s188
      %p199 = scmp.eq.s32.totalorder %s27, 0
      %p200 = por %p198, %p199
      %p201 = scmp.ne.s32.totalorder %s187, %s188
      %p202 = scmp.eq.s32.totalorder %s28, 1
      %p203 = por %p201, %p202
      %p205 = scmp.ne.s32.totalorder %s188, %s204
      %p206 = scmp.eq.s32.totalorder %s28, 0
      %p207 = por %p205, %p206
      %p208 = scmp.le.s32.totalorder 1, %s22
      %p209 = scmp.lt.s32.totalorder %s22, 3
      %p210 = pnand %p208, %p209
      %p211 = pneg %p210
      // Predicated region
      $region9: #{tpu_custom_call.1} parent=5 // pred_check
        _
      $region10: #{tpu_custom_call.1} parent=5 // pred_check_branch
        %213 = sbr.rel (%p210) target = $region12
      $region11: #{tpu_custom_call.1} parent=5 // pred_region
        %s214 = ssub.s32 %s22, 1
        // Predicated region
        $region13: #{tpu_custom_call.1} parent=11 // pred_check
          %p215 = pneg %p69
        $region14: #{tpu_custom_call.1} parent=11 // pred_check_branch
          %217 = sbr.rel (%p215) target = $region16
        $region15: #{tpu_custom_call.1} parent=11 // pred_region
          %s219 = ssub.s32 9216, 9216
          %220 = vsyncadd [#allocation8], %s219
          %s221 = sshll.u32 [#allocation7], 4
          %s222 = int_to_ptr.vmem [resolvable:$true] %s221
          %227 = dma.hbm_to_vmem [thread:$0]  %s1, 9216, %s222, [#allocation8], 64, 64, 4
        $region16: #{tpu_custom_call.1} parent=11 // pred_fallthru
          _
        // Predicated region
        $region17: #{tpu_custom_call.1} parent=11 // pred_check
          %p228 = pneg %p90
        $region18: #{tpu_custom_call.1} parent=11 // pred_check_branch
          %230 = sbr.rel (%p228) target = $region20
        $region19: #{tpu_custom_call.1} parent=11 // pred_region
          %s232 = ssub.s32 16, 16
          %233 = vsyncadd [#allocation8], %s232
          %s235 = sshll.u32 [#allocation9], 4
          %s236 = int_to_ptr.vmem [resolvable:$true] %s235
          %238 = dma.hbm_to_vmem [thread:$0]  %s2, 16, %s236, [#allocation8]
        $region20: #{tpu_custom_call.1} parent=11 // pred_fallthru
          _
        // Predicated region
        $region21: #{tpu_custom_call.1} parent=11 // pred_check
          %p239 = pneg %p111
        $region22: #{tpu_custom_call.1} parent=11 // pred_check_branch
          %241 = sbr.rel (%p239) target = $region24
        $region23: #{tpu_custom_call.1} parent=11 // pred_region
          %s243 = ssub.s32 16, 16
          %244 = vsyncadd [#allocation11], %s243
          %s246 = sshll.u32 [#allocation10], 4
          %s247 = int_to_ptr.vmem [resolvable:$true] %s246
          %249 = dma.hbm_to_vmem [thread:$0]  %s3, 16, %s247, [#allocation11]
        $region24: #{tpu_custom_call.1} parent=11 // pred_fallthru
          _
        // Predicated region
        $region25: #{tpu_custom_call.1} parent=11 // pred_check
          %p250 = pneg %p132
        $region26: #{tpu_custom_call.1} parent=11 // pred_check_branch
          %252 = sbr.rel (%p250) target = $region28
        $region27: #{tpu_custom_call.1} parent=11 // pred_region
          %s254 = ssub.s32 9216, 9216
          %255 = vsyncadd [#allocation11], %s254
          %s256 = sshll.u32 [#allocation12], 4
          %s257 = int_to_ptr.vmem [resolvable:$true] %s256
          %262 = dma.hbm_to_vmem [thread:$0]  %s4, 9216, %s257, [#allocation11], 64, 64, 4
        $region28: #{tpu_custom_call.1} parent=11 // pred_fallthru
          _
        // Predicated region
        $region29: #{tpu_custom_call.1} parent=11 // pred_check
          %p263 = pneg %p153
        $region30: #{tpu_custom_call.1} parent=11 // pred_check_branch
          %265 = sbr.rel (%p263) target = $region32
        $region31: #{tpu_custom_call.1} parent=11 // pred_region
          %s267 = ssub.s32 16, 16
          %268 = vsyncadd [#allocation14], %s267
          %s270 = sshll.u32 [#allocation13], 4
          %s271 = int_to_ptr.vmem [resolvable:$true] %s270
          %273 = dma.hbm_to_vmem [thread:$0]  %s5, 16, %s271, [#allocation14]
        $region32: #{tpu_custom_call.1} parent=11 // pred_fallthru
          _
        // Predicated region
        $region33: #{tpu_custom_call.1} parent=11 // pred_check
          %p274 = pneg %p174
        $region34: #{tpu_custom_call.1} parent=11 // pred_check_branch
          %276 = sbr.rel (%p274) target = $region36
        $region35: #{tpu_custom_call.1} parent=11 // pred_region
          %s278 = ssub.s32 16, 16
          %279 = vsyncadd [#allocation14], %s278
          %s281 = sshll.u32 [#allocation15], 4
          %s282 = int_to_ptr.vmem [resolvable:$true] %s281
          %284 = dma.hbm_to_vmem [thread:$0]  %s6, 16, %s282, [#allocation14]
        $region36: #{tpu_custom_call.1} parent=11 // pred_fallthru
          _
      $region12: #{tpu_custom_call.1} parent=5 // pred_fallthru
        _
      %p285 = scmp.lt.s32.totalorder %s22, 2
      // Predicated region
      $region37: #{tpu_custom_call.1} parent=5 // pred_check
        %p286 = pneg %p285
      $region38: #{tpu_custom_call.1} parent=5 // pred_check_branch
        %288 = sbr.rel (%p286) target = $region40
      $region39: #{tpu_custom_call.1} parent=5 // pred_region
        // Predicated region
        $region41: #{tpu_custom_call.1} parent=39 // pred_check
          %p289 = pneg %p42
        $region42: #{tpu_custom_call.1} parent=39 // pred_check_branch
          %291 = sbr.rel (%p289) target = $region44
        $region43: #{tpu_custom_call.1} parent=39 // pred_region
          %s292 = sand.u32 %s32, 1
          %s293 = scalar_lea.sflag [#allocation5], %s292
          %s294 = sand.u32 %s32, 1
          %s295 = smul.addr %s294, 128
          %s296 = scalar_lea.vmem [#allocation4], %s295
          %s298 = ssub.s32 2048, 2048
          %299 = vsyncadd %s293, %s298
          %s300 = smul.addr %s22, 16
          %s301 = smul.addr %s300, 128
          %s302 = scalar_lea.hbm %s0, %s301
          %s303 = sshll.u32 %s296, 4
          %s304 = int_to_ptr.vmem [resolvable:$true] %s303
          %309 = dma.hbm_to_vmem [thread:$0]  %s302, 2048, %s304, %s293, 128, 128, 8
        $region44: #{tpu_custom_call.1} parent=39 // pred_fallthru
          _
      $region40: #{tpu_custom_call.1} parent=5 // pred_fallthru
        _
      %p310 = scmp.le.s32.totalorder 1, %s22
      %p311 = scmp.lt.s32.totalorder %s22, 3
      %p312 = pnand %p310, %p311
      %p313 = pneg %p312
      // Predicated region
      $region45: #{tpu_custom_call.1} parent=5 // pred_check
        _
      $region46: #{tpu_custom_call.1} parent=5 // pred_check_branch
        %315 = sbr.rel (%p312) target = $region48
      $region47: #{tpu_custom_call.1} parent=5 // pred_region
        %s316 = ssub.s32 %s22, 1
        %s317 = sand.u32 %s35, 1
        %s318 = scalar_lea.sflag [#allocation5], %s317
        %s319 = sand.u32 %s35, 1
        %s320 = smul.addr %s319, 128
        %s321 = scalar_lea.vmem [#allocation4], %s320
        // Predicated region
        $region49: #{tpu_custom_call.1} parent=47 // pred_check
          %p322 = pneg %p48
        $region50: #{tpu_custom_call.1} parent=47 // pred_check_branch
          %324 = sbr.rel (%p322) target = $region52
        $region51: #{tpu_custom_call.1} parent=47 // pred_region
          %325 = dma.done %s318, 2048
        $region52: #{tpu_custom_call.1} parent=47 // pred_fallthru
          _
        // Predicated region
        $region53: #{tpu_custom_call.1} parent=47 // pred_check
          %p326 = pneg %p69
        $region54: #{tpu_custom_call.1} parent=47 // pred_check_branch
          %328 = sbr.rel (%p326) target = $region56
        $region55: #{tpu_custom_call.1} parent=47 // pred_region
          %329 = dma.done [#allocation8], 9216
        $region56: #{tpu_custom_call.1} parent=47 // pred_fallthru
          _
        // Predicated region
        $region57: #{tpu_custom_call.1} parent=47 // pred_check
          %p330 = pneg %p90
        $region58: #{tpu_custom_call.1} parent=47 // pred_check_branch
          %332 = sbr.rel (%p330) target = $region60
        $region59: #{tpu_custom_call.1} parent=47 // pred_region
          %333 = dma.done [#allocation8], 16
        $region60: #{tpu_custom_call.1} parent=47 // pred_fallthru
          _
        // Predicated region
        $region61: #{tpu_custom_call.1} parent=47 // pred_check
          %p334 = pneg %p111
        $region62: #{tpu_custom_call.1} parent=47 // pred_check_branch
          %336 = sbr.rel (%p334) target = $region64
        $region63: #{tpu_custom_call.1} parent=47 // pred_region
          %337 = dma.done [#allocation11], 16
        $region64: #{tpu_custom_call.1} parent=47 // pred_fallthru
          _
        // Predicated region
        $region65: #{tpu_custom_call.1} parent=47 // pred_check
          %p338 = pneg %p132
        $region66: #{tpu_custom_call.1} parent=47 // pred_check_branch
          %340 = sbr.rel (%p338) target = $region68
        $region67: #{tpu_custom_call.1} parent=47 // pred_region
          %341 = dma.done [#allocation11], 9216
        $region68: #{tpu_custom_call.1} parent=47 // pred_fallthru
          _
        // Predicated region
        $region69: #{tpu_custom_call.1} parent=47 // pred_check
          %p342 = pneg %p153
        $region70: #{tpu_custom_call.1} parent=47 // pred_check_branch
          %344 = sbr.rel (%p342) target = $region72
        $region71: #{tpu_custom_call.1} parent=47 // pred_region
          %345 = dma.done [#allocation14], 16
        $region72: #{tpu_custom_call.1} parent=47 // pred_fallthru
          _
        // Predicated region
        $region73: #{tpu_custom_call.1} parent=47 // pred_check
          %p346 = pneg %p174
        $region74: #{tpu_custom_call.1} parent=47 // pred_check_branch
          %348 = sbr.rel (%p346) target = $region76
        $region75: #{tpu_custom_call.1} parent=47 // pred_region
          %349 = dma.done [#allocation14], 16
        $region76: #{tpu_custom_call.1} parent=47 // pred_fallthru
          _
        %s350 = sand.u32 %s35, 1
        %s351 = scalar_lea.sflag [#allocation5], %s350
        %s352 = sand.u32 %s35, 1
        %s353 = smul.addr %s352, 128
        %s354 = scalar_lea.vmem [#allocation4], %s353
        %p355 = pneg %p48
        %p356 = pneg %p45
        %p357 = pneg %p69
        %p358 = pneg %p66
        %p359 = pneg %p90
        %p360 = pneg %p87
        %p361 = pneg %p111
        %p362 = pneg %p108
        %p363 = pneg %p132
        %p364 = pneg %p129
        %p365 = pneg %p153
        %p366 = pneg %p150
        %p367 = pneg %p174
        %p368 = pneg %p171
        %p369 = pneg %p200
        %p370 = pneg %p197
        %s371 = sand.u32 %s187, 1
        %s372 = scalar_lea.sflag [#allocation6], %s371
        %s373 = sand.u32 %s187, 1
        %s374 = smul.addr %s373, 8
        %s375 = scalar_lea.vmem [#allocation16], %s374
        %v377 = vld [vmem:[%s321] sm:$0xff]
        %v378 = vld [vmem:[%s321 + $0x8] sm:$0xff]
        %v379 = vld [vmem:[%s321 + $0x10] sm:$0xff]
        %v380 = vld [vmem:[%s321 + $0x18] sm:$0xff]
        %v381 = vld [vmem:[%s321 + $0x20] sm:$0xff]
        %v382 = vld [vmem:[%s321 + $0x28] sm:$0xff]
        %v383 = vld [vmem:[%s321 + $0x30] sm:$0xff]
        %v384 = vld [vmem:[%s321 + $0x38] sm:$0xff]
        %v385 = vld [vmem:[%s321 + $0x40] sm:$0xff]
        %v386 = vld [vmem:[%s321 + $0x48] sm:$0xff]
        %v387 = vld [vmem:[%s321 + $0x50] sm:$0xff]
        %v388 = vld [vmem:[%s321 + $0x58] sm:$0xff]
        %v389 = vld [vmem:[%s321 + $0x60] sm:$0xff]
        %v390 = vld [vmem:[%s321 + $0x68] sm:$0xff]
        %v391 = vld [vmem:[%s321 + $0x70] sm:$0xff]
        %v392 = vld [vmem:[%s321 + $0x78] sm:$0xff]
        %401 = vrot.lane.b32.xlu0 %v377, 124
        %v402 = vpop.permute.xlu0 %401
        %403 = vrot.lane.b32.xlu0 %v379, 124
        %v404 = vpop.permute.xlu0 %403
        %405 = vrot.lane.b32.xlu0 %v381, 124
        %v406 = vpop.permute.xlu0 %405
        %407 = vrot.lane.b32.xlu0 %v383, 124
        %v408 = vpop.permute.xlu0 %407
        %409 = vrot.lane.b32.xlu0 %v385, 124
        %v410 = vpop.permute.xlu0 %409
        %411 = vrot.lane.b32.xlu0 %v387, 124
        %v412 = vpop.permute.xlu0 %411
        %413 = vrot.lane.b32.xlu0 %v389, 124
        %v414 = vpop.permute.xlu0 %413
        %415 = vrot.lane.b32.xlu0 %v391, 124
        %v416 = vpop.permute.xlu0 %415
        %v425 = vmax.f32 %v377, %v402
        %v426 = vmax.f32 %v379, %v404
        %v427 = vmax.f32 %v381, %v406
        %v428 = vmax.f32 %v383, %v408
        %v429 = vmax.f32 %v385, %v410
        %v430 = vmax.f32 %v387, %v412
        %v431 = vmax.f32 %v389, %v414
        %v432 = vmax.f32 %v391, %v416
        %441 = vrot.lane.b32.xlu0 %v378, 124
        %v442 = vpop.permute.xlu0 %441
        %443 = vrot.lane.b32.xlu0 %v380, 124
        %v444 = vpop.permute.xlu0 %443
        %445 = vrot.lane.b32.xlu0 %v382, 124
        %v446 = vpop.permute.xlu0 %445
        %447 = vrot.lane.b32.xlu0 %v384, 124
        %v448 = vpop.permute.xlu0 %447
        %449 = vrot.lane.b32.xlu0 %v386, 124
        %v450 = vpop.permute.xlu0 %449
        %451 = vrot.lane.b32.xlu0 %v388, 124
        %v452 = vpop.permute.xlu0 %451
        %453 = vrot.lane.b32.xlu0 %v390, 124
        %v454 = vpop.permute.xlu0 %453
        %455 = vrot.lane.b32.xlu0 %v392, 124
        %v456 = vpop.permute.xlu0 %455
        %v465 = vmax.f32 %v378, %v442
        %v466 = vmax.f32 %v380, %v444
        %v467 = vmax.f32 %v382, %v446
        %v468 = vmax.f32 %v384, %v448
        %v469 = vmax.f32 %v386, %v450
        %v470 = vmax.f32 %v388, %v452
        %v471 = vmax.f32 %v390, %v454
        %v472 = vmax.f32 %v392, %v456
        %v473 = vmax.f32 %v425, %v465
        %v474 = vmax.f32 %v426, %v466
        %v475 = vmax.f32 %v427, %v467
        %v476 = vmax.f32 %v428, %v468
        %v477 = vmax.f32 %v429, %v469
        %v478 = vmax.f32 %v430, %v470
        %v479 = vmax.f32 %v431, %v471
        %v480 = vmax.f32 %v432, %v472
        %481 = vst [vmem:[#allocation2] sm:$0xff] 0
        %s482 = scalar_lea.vmem [#allocation2], 72
        %483 = vst [vmem:[%s482] sm:$0xff] 0
        %vm484 = vcmask 1040384
        %vm485 = vsmask.f32 256
        %vm486 = vmand %vm484, %vm485
        %v487 = vld [vmem:[#allocation2] sm:$0x1]
        %v488 = vsel %vm486, 0, %v487
        %489 = vst [vmem:[#allocation2] sm:$0x1] %v488
        %v490 = vld [vmem:[#allocation2 + $0x8] sm:$0x1]
        %v491 = vsel %vm486, 0, %v490
        %492 = vst [vmem:[#allocation2 + $0x8] sm:$0x1] %v491
        %v493 = vld [vmem:[#allocation2 + $0x10] sm:$0x1]
        %v494 = vsel %vm486, 0, %v493
        %495 = vst [vmem:[#allocation2 + $0x10] sm:$0x1] %v494
        %v496 = vld [vmem:[#allocation2 + $0x18] sm:$0x1]
        %v497 = vsel %vm486, 0, %v496
        %498 = vst [vmem:[#allocation2 + $0x18] sm:$0x1] %v497
        %v499 = vld [vmem:[#allocation2 + $0x20] sm:$0x1]
        %v500 = vsel %vm486, 0, %v499
        %501 = vst [vmem:[#allocation2 + $0x20] sm:$0x1] %v500
        %v502 = vld [vmem:[#allocation2 + $0x28] sm:$0x1]
        %v503 = vsel %vm486, 0, %v502
        %504 = vst [vmem:[#allocation2 + $0x28] sm:$0x1] %v503
        %v505 = vld [vmem:[#allocation2 + $0x30] sm:$0x1]
        %v506 = vsel %vm486, 0, %v505
        %507 = vst [vmem:[#allocation2 + $0x30] sm:$0x1] %v506
        %v508 = vld [vmem:[#allocation2 + $0x38] sm:$0x1]
        %v509 = vsel %vm486, 0, %v508
        %510 = vst [vmem:[#allocation2 + $0x38] sm:$0x1] %v509
        %v511 = vld [vmem:[#allocation2 + $0x40] sm:$0x1]
        %v512 = vsel %vm486, 0, %v511
        %513 = vst [vmem:[#allocation2 + $0x40] sm:$0x1] %v512
        %v514 = vld [vmem:[#allocation2 + $0x48] sm:$0x1]
        %v515 = vsel %vm486, 0, %v514
        %516 = vst [vmem:[#allocation2 + $0x48] sm:$0x1] %v515
        %vm517 = vcmask 1044484
        %vm518 = vsmask.f32 7954
        %vm519 = vmand %vm517, %vm518
        %v520 = vld [vmem:[#allocation2] sm:$0x10]
        %v521 = vsel %vm519, 0, %v520
        %522 = vst [vmem:[#allocation2] sm:$0x10] %v521
        %v523 = vld [vmem:[#allocation2 + $0x8] sm:$0x10]
        %v524 = vsel %vm519, 0, %v523
        %525 = vst [vmem:[#allocation2 + $0x8] sm:$0x10] %v524
        %v526 = vld [vmem:[#allocation2 + $0x10] sm:$0x10]
        %v527 = vsel %vm519, 0, %v526
        %528 = vst [vmem:[#allocation2 + $0x10] sm:$0x10] %v527
        %v529 = vld [vmem:[#allocation2 + $0x18] sm:$0x10]
        %v530 = vsel %vm519, 0, %v529
        %531 = vst [vmem:[#allocation2 + $0x18] sm:$0x10] %v530
        %v532 = vld [vmem:[#allocation2 + $0x20] sm:$0x10]
        %v533 = vsel %vm519, 0, %v532
        %534 = vst [vmem:[#allocation2 + $0x20] sm:$0x10] %v533
        %v535 = vld [vmem:[#allocation2 + $0x28] sm:$0x10]
        %v536 = vsel %vm519, 0, %v535
        %537 = vst [vmem:[#allocation2 + $0x28] sm:$0x10] %v536
        %v538 = vld [vmem:[#allocation2 + $0x30] sm:$0x10]
        %v539 = vsel %vm519, 0, %v538
        %540 = vst [vmem:[#allocation2 + $0x30] sm:$0x10] %v539
        %v541 = vld [vmem:[#allocation2 + $0x38] sm:$0x10]
        %v542 = vsel %vm519, 0, %v541
        %543 = vst [vmem:[#allocation2 + $0x38] sm:$0x10] %v542
        %v544 = vld [vmem:[#allocation2 + $0x40] sm:$0x10]
        %v545 = vsel %vm519, 0, %v544
        %546 = vst [vmem:[#allocation2 + $0x40] sm:$0x10] %v545
        %v547 = vld [vmem:[#allocation2 + $0x48] sm:$0x10]
        %v548 = vsel %vm519, 0, %v547
        %549 = vst [vmem:[#allocation2 + $0x48] sm:$0x10] %v548
        %v550 = vpack.c.bf16 %v473, %v473
        %v551 = vpack.c.bf16 %v474, %v474
        %v552 = vpack.c.bf16 %v475, %v475
        %v553 = vpack.c.bf16 %v476, %v476
        %v554 = vpack.c.bf16 %v477, %v477
        %v555 = vpack.c.bf16 %v478, %v478
        %v556 = vpack.c.bf16 %v479, %v479
        %v557 = vpack.c.bf16 %v480, %v480
        %v559 = vshrl.u32 %v550, 16
        %v561 = vrot.slane %v559, 7
        %v562 = vshll.u32 %v550, 16
        %v564 = vor.u32 %v561, %v562
        %v566 = vshrl.u32 %v551, 16
        %v568 = vrot.slane %v566, 7
        %v569 = vshll.u32 %v551, 16
        %v571 = vor.u32 %v568, %v569
        %v573 = vshrl.u32 %v552, 16
        %v575 = vrot.slane %v573, 7
        %v576 = vshll.u32 %v552, 16
        %v578 = vor.u32 %v575, %v576
        %v580 = vshrl.u32 %v553, 16
        %v582 = vrot.slane %v580, 7
        %v583 = vshll.u32 %v553, 16
        %v585 = vor.u32 %v582, %v583
        %v587 = vshrl.u32 %v554, 16
        %v589 = vrot.slane %v587, 7
        %v590 = vshll.u32 %v554, 16
        %v592 = vor.u32 %v589, %v590
        %v594 = vshrl.u32 %v555, 16
        %v596 = vrot.slane %v594, 7
        %v597 = vshll.u32 %v555, 16
        %v599 = vor.u32 %v596, %v597
        %v601 = vshrl.u32 %v556, 16
        %v603 = vrot.slane %v601, 7
        %v604 = vshll.u32 %v556, 16
        %v606 = vor.u32 %v603, %v604
        %v608 = vshrl.u32 %v557, 16
        %v610 = vrot.slane %v608, 7
        %v611 = vshll.u32 %v557, 16
        %v613 = vor.u32 %v610, %v611
        %s622 = scalar_lea.vmem [#allocation2], 8
        %vm623 = vcmask 28672
        %vm624 = vsmask.f32 4354
        %vm625 = vmand %vm623, %vm624
        %v626 = vld [vmem:[%s622] sm:$0x1f]
        %v627 = vsel %vm625, %v564, %v626
        %628 = vst [vmem:[%s622] sm:$0x1f] %v627
        %v629 = vld [vmem:[%s622 + $0x8] sm:$0x1f]
        %v630 = vsel %vm625, %v571, %v629
        %631 = vst [vmem:[%s622 + $0x8] sm:$0x1f] %v630
        %v632 = vld [vmem:[%s622 + $0x10] sm:$0x1f]
        %v633 = vsel %vm625, %v578, %v632
        %634 = vst [vmem:[%s622 + $0x10] sm:$0x1f] %v633
        %v635 = vld [vmem:[%s622 + $0x18] sm:$0x1f]
        %v636 = vsel %vm625, %v585, %v635
        %637 = vst [vmem:[%s622 + $0x18] sm:$0x1f] %v636
        %v638 = vld [vmem:[%s622 + $0x20] sm:$0x1f]
        %v639 = vsel %vm625, %v592, %v638
        %640 = vst [vmem:[%s622 + $0x20] sm:$0x1f] %v639
        %v641 = vld [vmem:[%s622 + $0x28] sm:$0x1f]
        %v642 = vsel %vm625, %v599, %v641
        %643 = vst [vmem:[%s622 + $0x28] sm:$0x1f] %v642
        %v644 = vld [vmem:[%s622 + $0x30] sm:$0x1f]
        %v645 = vsel %vm625, %v606, %v644
        %646 = vst [vmem:[%s622 + $0x30] sm:$0x1f] %v645
        %v647 = vld [vmem:[%s622 + $0x38] sm:$0x1f]
        %v648 = vsel %vm625, %v613, %v647
        %649 = vst [vmem:[%s622 + $0x38] sm:$0x1f] %v648
        %vm650 = vcmask 1044512
        %vm651 = vmand %vm650, %vm624
        %v652 = vld [vmem:[%s622] sm:$0x1f]
        %v653 = vsel %vm651, 0, %v652
        %654 = vst [vmem:[%s622] sm:$0x1f] %v653
        %v655 = vld [vmem:[%s622 + $0x8] sm:$0x1f]
        %v656 = vsel %vm651, 0, %v655
        %657 = vst [vmem:[%s622 + $0x8] sm:$0x1f] %v656
        %v658 = vld [vmem:[%s622 + $0x10] sm:$0x1f]
        %v659 = vsel %vm651, 0, %v658
        %660 = vst [vmem:[%s622 + $0x10] sm:$0x1f] %v659
        %v661 = vld [vmem:[%s622 + $0x18] sm:$0x1f]
        %v662 = vsel %vm651, 0, %v661
        %663 = vst [vmem:[%s622 + $0x18] sm:$0x1f] %v662
        %v664 = vld [vmem:[%s622 + $0x20] sm:$0x1f]
        %v665 = vsel %vm651, 0, %v664
        %666 = vst [vmem:[%s622 + $0x20] sm:$0x1f] %v665
        %v667 = vld [vmem:[%s622 + $0x28] sm:$0x1f]
        %v668 = vsel %vm651, 0, %v667
        %669 = vst [vmem:[%s622 + $0x28] sm:$0x1f] %v668
        %v670 = vld [vmem:[%s622 + $0x30] sm:$0x1f]
        %v671 = vsel %vm651, 0, %v670
        %672 = vst [vmem:[%s622 + $0x30] sm:$0x1f] %v671
        %v673 = vld [vmem:[%s622 + $0x38] sm:$0x1f]
        %v674 = vsel %vm651, 0, %v673
        %675 = vst [vmem:[%s622 + $0x38] sm:$0x1f] %v674
        %v676 = vld [vmem:[#allocation9] sm:$0x1]
        %v677 = vld [vmem:[#allocation10] sm:$0x1]
        %v678 = vld [vmem:[#allocation2] sm:$0xf]
        %v679 = vld [vmem:[#allocation2 + $0x8] sm:$0xf]
        %v680 = vld [vmem:[#allocation2 + $0x10] sm:$0xf]
        %v681 = vld [vmem:[#allocation2 + $0x18] sm:$0xf]
        %v682 = vld [vmem:[#allocation2 + $0x20] sm:$0xf]
        %v683 = vld [vmem:[#allocation2 + $0x28] sm:$0xf]
        %v684 = vld [vmem:[#allocation2 + $0x30] sm:$0xf]
        %v685 = vld [vmem:[#allocation2 + $0x38] sm:$0xf]
        %v686 = vld [vmem:[#allocation7] sm:$0xf]
        %v687 = vld [vmem:[#allocation7 + $0x4] sm:$0xf]
        %v688 = vld [vmem:[#allocation7 + $0x8] sm:$0xf]
        %v689 = vld [vmem:[#allocation7 + $0xc] sm:$0xf]
        %v690 = vld [vmem:[#allocation7 + $0x10] sm:$0xf]
        %v691 = vld [vmem:[#allocation7 + $0x14] sm:$0xf]
        %v692 = vld [vmem:[#allocation7 + $0x18] sm:$0xf]
        %v693 = vld [vmem:[#allocation7 + $0x1c] sm:$0xf]
        %v694 = vld [vmem:[#allocation7 + $0x20] sm:$0xf]
        %v695 = vld [vmem:[#allocation7 + $0x24] sm:$0xf]
        %v696 = vld [vmem:[#allocation7 + $0x28] sm:$0xf]
        %v697 = vld [vmem:[#allocation7 + $0x2c] sm:$0xf]
        %v698 = vld [vmem:[#allocation7 + $0x30] sm:$0xf]
        %v699 = vld [vmem:[#allocation7 + $0x34] sm:$0xf]
        %v700 = vld [vmem:[#allocation7 + $0x38] sm:$0xf]
        %v701 = vld [vmem:[#allocation7 + $0x3c] sm:$0xf]
        %v702 = vld [vmem:[#allocation2] sm:$0x1f]
        %v703 = vld [vmem:[#allocation2 + $0x8] sm:$0x1f]
        %v704 = vld [vmem:[#allocation2 + $0x10] sm:$0x1f]
        %v705 = vld [vmem:[#allocation2 + $0x18] sm:$0x1f]
        %v706 = vld [vmem:[#allocation2 + $0x20] sm:$0x1f]
        %v707 = vld [vmem:[#allocation2 + $0x28] sm:$0x1f]
        %v708 = vld [vmem:[#allocation2 + $0x30] sm:$0x1f]
        %v709 = vld [vmem:[#allocation2 + $0x38] sm:$0x1f]
        %v718 = vunpack.c.l.b16 %v702
        %v719 = vunpack.c.h.b16 %v702
        %v720 = vunpack.c.l.b16 %v703
        %v721 = vunpack.c.h.b16 %v703
        %v722 = vunpack.c.l.b16 %v704
        %v723 = vunpack.c.h.b16 %v704
        %v724 = vunpack.c.l.b16 %v705
        %v725 = vunpack.c.h.b16 %v705
        %v726 = vunpack.c.l.b16 %v706
        %v727 = vunpack.c.h.b16 %v706
        %v728 = vunpack.c.l.b16 %v707
        %v729 = vunpack.c.h.b16 %v707
        %v730 = vunpack.c.l.b16 %v708
        %v731 = vunpack.c.h.b16 %v708
        %v732 = vunpack.c.l.b16 %v709
        %v733 = vunpack.c.h.b16 %v709
        %v734 = vpack.c.b16 %v718, %v718
        %v735 = vpack.c.b16 %v719, %v719
        %v736 = vpack.c.b16 %v720, %v720
        %v737 = vpack.c.b16 %v721, %v721
        %v738 = vpack.c.b16 %v722, %v722
        %v739 = vpack.c.b16 %v723, %v723
        %v740 = vpack.c.b16 %v724, %v724
        %v741 = vpack.c.b16 %v725, %v725
        %v742 = vpack.c.b16 %v726, %v726
        %v743 = vpack.c.b16 %v727, %v727
        %v744 = vpack.c.b16 %v728, %v728
        %v745 = vpack.c.b16 %v729, %v729
        %v746 = vpack.c.b16 %v730, %v730
        %v747 = vpack.c.b16 %v731, %v731
        %v748 = vpack.c.b16 %v732, %v732
        %v749 = vpack.c.b16 %v733, %v733
        %vm750 = vsmask.f32 3328
        %vm751 = vsmask.f32 7440
        %vm752 = vmor %vm750, %vm751
        %v754 = vshrl.u32 %v734, 16
        %v756 = vrot.slane %v754, 4
        %v757 = vshll.u32 %v734, 16
        %v759 = vrot.slane %v757, 5
        %v760 = vor.u32 %v756, %v759
        %v761 = vrot.slane %v760, 4
        %v763 = vshll.u32 %v735, 16
        %v765 = vrot.slane %v763, 5
        %v766 = vsel %vm752, %v761, %v765
        %v768 = vshrl.u32 %v736, 16
        %v770 = vrot.slane %v768, 4
        %v771 = vshll.u32 %v736, 16
        %v773 = vrot.slane %v771, 5
        %v774 = vor.u32 %v770, %v773
        %v775 = vrot.slane %v774, 4
        %v777 = vshll.u32 %v737, 16
        %v779 = vrot.slane %v777, 5
        %v780 = vsel %vm752, %v775, %v779
        %v782 = vshrl.u32 %v738, 16
        %v784 = vrot.slane %v782, 4
        %v785 = vshll.u32 %v738, 16
        %v787 = vrot.slane %v785, 5
        %v788 = vor.u32 %v784, %v787
        %v789 = vrot.slane %v788, 4
        %v791 = vshll.u32 %v739, 16
        %v793 = vrot.slane %v791, 5
        %v794 = vsel %vm752, %v789, %v793
        %v796 = vshrl.u32 %v740, 16
        %v798 = vrot.slane %v796, 4
        %v799 = vshll.u32 %v740, 16
        %v801 = vrot.slane %v799, 5
        %v802 = vor.u32 %v798, %v801
        %v803 = vrot.slane %v802, 4
        %v805 = vshll.u32 %v741, 16
        %v807 = vrot.slane %v805, 5
        %v808 = vsel %vm752, %v803, %v807
        %v810 = vshrl.u32 %v742, 16
        %v812 = vrot.slane %v810, 4
        %v813 = vshll.u32 %v742, 16
        %v815 = vrot.slane %v813, 5
        %v816 = vor.u32 %v812, %v815
        %v817 = vrot.slane %v816, 4
        %v819 = vshll.u32 %v743, 16
        %v821 = vrot.slane %v819, 5
        %v822 = vsel %vm752, %v817, %v821
        %v824 = vshrl.u32 %v744, 16
        %v826 = vrot.slane %v824, 4
        %v827 = vshll.u32 %v744, 16
        %v829 = vrot.slane %v827, 5
        %v830 = vor.u32 %v826, %v829
        %v831 = vrot.slane %v830, 4
        %v833 = vshll.u32 %v745, 16
        %v835 = vrot.slane %v833, 5
        %v836 = vsel %vm752, %v831, %v835
        %v838 = vshrl.u32 %v746, 16
        %v840 = vrot.slane %v838, 4
        %v841 = vshll.u32 %v746, 16
        %v843 = vrot.slane %v841, 5
        %v844 = vor.u32 %v840, %v843
        %v845 = vrot.slane %v844, 4
        %v847 = vshll.u32 %v747, 16
        %v849 = vrot.slane %v847, 5
        %v850 = vsel %vm752, %v845, %v849
        %v852 = vshrl.u32 %v748, 16
        %v854 = vrot.slane %v852, 4
        %v855 = vshll.u32 %v748, 16
        %v857 = vrot.slane %v855, 5
        %v858 = vor.u32 %v854, %v857
        %v859 = vrot.slane %v858, 4
        %v861 = vshll.u32 %v749, 16
        %v863 = vrot.slane %v861, 5
        %v864 = vsel %vm752, %v859, %v863
        %s865 = scalar_lea.vmem [#allocation7], 64
        %v866 = vld [vmem:[%s865] sm:$0xf]
        %v867 = vld [vmem:[%s865 + $0x4] sm:$0xf]
        %v868 = vld [vmem:[%s865 + $0x8] sm:$0xf]
        %v869 = vld [vmem:[%s865 + $0xc] sm:$0xf]
        %v870 = vld [vmem:[%s865 + $0x10] sm:$0xf]
        %v871 = vld [vmem:[%s865 + $0x14] sm:$0xf]
        %v872 = vld [vmem:[%s865 + $0x18] sm:$0xf]
        %v873 = vld [vmem:[%s865 + $0x1c] sm:$0xf]
        %v874 = vld [vmem:[%s865 + $0x20] sm:$0xf]
        %v875 = vld [vmem:[%s865 + $0x24] sm:$0xf]
        %v876 = vld [vmem:[%s865 + $0x28] sm:$0xf]
        %v877 = vld [vmem:[%s865 + $0x2c] sm:$0xf]
        %v878 = vld [vmem:[%s865 + $0x30] sm:$0xf]
        %v879 = vld [vmem:[%s865 + $0x34] sm:$0xf]
        %v880 = vld [vmem:[%s865 + $0x38] sm:$0xf]
        %v881 = vld [vmem:[%s865 + $0x3c] sm:$0xf]
        %v882 = vunpack.c.l.b16 %v766
        %v883 = vunpack.c.l.b16 %v780
        %v884 = vunpack.c.l.b16 %v794
        %v885 = vunpack.c.l.b16 %v808
        %v886 = vunpack.c.l.b16 %v822
        %v887 = vunpack.c.l.b16 %v836
        %v888 = vunpack.c.l.b16 %v850
        %v889 = vunpack.c.l.b16 %v864
        %v890 = vpack.c.b16 %v883, %v882
        %v891 = vpack.c.b16 %v885, %v884
        %v892 = vpack.c.b16 %v887, %v886
        %v893 = vpack.c.b16 %v889, %v888
        %v914 = vunpack.c.l.b16 %v866
        %v915 = vunpack.c.l.b16 %v867
        %v916 = vunpack.c.l.b16 %v868
        %v917 = vunpack.c.l.b16 %v869
        %v918 = vunpack.c.l.b16 %v870
        %v919 = vunpack.c.l.b16 %v871
        %v920 = vunpack.c.l.b16 %v872
        %v921 = vunpack.c.l.b16 %v873
        %v922 = vunpack.c.l.b16 %v874
        %v923 = vunpack.c.l.b16 %v875
        %v924 = vunpack.c.l.b16 %v876
        %v925 = vunpack.c.l.b16 %v877
        %v926 = vunpack.c.l.b16 %v878
        %v927 = vunpack.c.l.b16 %v879
        %v928 = vunpack.c.l.b16 %v880
        %v929 = vunpack.c.l.b16 %v881
        %v930 = vpack.c.b16 %v915, %v914
        %v931 = vpack.c.b16 %v917, %v916
        %v932 = vpack.c.b16 %v919, %v918
        %v933 = vpack.c.b16 %v921, %v920
        %v934 = vpack.c.b16 %v923, %v922
        %v935 = vpack.c.b16 %v925, %v924
        %v936 = vpack.c.b16 %v927, %v926
        %v937 = vpack.c.b16 %v929, %v928
        %946 = vmatprep.subr.bf16.mxu0 0
        %947 = vmatpush1.bf16.msra.mxu0 %v930
        %948 = vmatprep.subr.bf16.mxu0 0
        %949 = vmatpush1.bf16.msra.mxu0 %v931
        %950 = vmatprep.subr.bf16.mxu0 0
        %951 = vmatpush1.bf16.msra.mxu0 %v932
        %952 = vmatprep.subr.bf16.mxu0 0
        %953 = vmatpush1.bf16.msra.mxu0 %v933
        %954 = vmatprep.subr.bf16.mxu0 0
        %955 = vmatpush1.bf16.msra.mxu0 %v934
        %956 = vmatprep.subr.bf16.mxu0 0
        %957 = vmatpush1.bf16.msra.mxu0 %v935
        %958 = vmatprep.subr.bf16.mxu0 0
        %959 = vmatpush1.bf16.msra.mxu0 %v936
        %960 = vmatprep.subr.bf16.mxu0 0
        %961 = vmatpush1.bf16.msra.mxu0 %v937
        %962 = vmatprep.subr.bf16.mxu0 0
        %963 = vmatpush1.bf16.msra.mxu0 0
        %964 = vmatprep.subr.bf16.mxu0 0
        %965 = vmatpush1.bf16.msra.mxu0 0
        %966 = vmatprep.subr.bf16.mxu0 0
        %967 = vmatpush1.bf16.msra.mxu0 0
        %968 = vmatprep.subr.bf16.mxu0 0
        %969 = vmatpush1.bf16.msra.mxu0 0
        %970 = vmatprep.subr.bf16.mxu0 0
        %971 = vmatpush1.bf16.msra.mxu0 0
        %972 = vmatprep.subr.bf16.mxu0 0
        %973 = vmatpush1.bf16.msra.mxu0 0
        %974 = vmatprep.subr.bf16.mxu0 0
        %975 = vmatpush1.bf16.msra.mxu0 0
        %976 = vmatprep.subr.bf16.mxu0 0
        %977 = vmatpush1.bf16.msra.mxu0 0
        %978 = vmatprep.mubr.bf16.mxu0 0
        %979 = vmatmul.mubr.bf16.gmra.mrb[0].mxu0 %v890
        %v980 = vpop.f32.mrb[0].mxu0
        %v981 = vadd.f32 0.0, %v980
        %v982 = vpop.f32.mrb[0].mxu0
        %v983 = vpop.f32.mrb[0].mxu0
        %v984 = vadd.f32 0.0, %v983
        %v985 = vpop.f32.mrb[0].mxu0
        %986 = vmatprep.mubr.bf16.mxu0 0
        %987 = vmatmul.mubr.bf16.gmra.mrb[0].mxu0 %v891
        %v988 = vpop.f32.mrb[0].mxu0
        %v989 = vadd.f32 0.0, %v988
        %v990 = vpop.f32.mrb[0].mxu0
        %v991 = vpop.f32.mrb[0].mxu0
        %v992 = vadd.f32 0.0, %v991
        %v993 = vpop.f32.mrb[0].mxu0
        %994 = vmatprep.mubr.bf16.mxu0 0
        %995 = vmatmul.mubr.bf16.gmra.mrb[0].mxu0 %v892
        %v996 = vpop.f32.mrb[0].mxu0
        %v997 = vadd.f32 0.0, %v996
        %v998 = vpop.f32.mrb[0].mxu0
        %v999 = vpop.f32.mrb[0].mxu0
        %v1000 = vadd.f32 0.0, %v999
        %v1001 = vpop.f32.mrb[0].mxu0
        %1002 = vmatprep.mubr.bf16.mxu0 0
        %1003 = vmatmul.mubr.bf16.gmra.mrb[0].mxu0 %v893
        %v1004 = vpop.f32.mrb[0].mxu0
        %v1005 = vadd.f32 0.0, %v1004
        %v1006 = vpop.f32.mrb[0].mxu0
        %v1007 = vpop.f32.mrb[0].mxu0
        %v1008 = vadd.f32 0.0, %v1007
        %v1009 = vpop.f32.mrb[0].mxu0
        %1010 = vdwg.mxu0
        %v1019 = vunpack.c.l.b16 %v678
        %v1020 = vunpack.c.l.b16 %v679
        %v1021 = vunpack.c.l.b16 %v680
        %v1022 = vunpack.c.l.b16 %v681
        %v1023 = vunpack.c.l.b16 %v682
        %v1024 = vunpack.c.l.b16 %v683
        %v1025 = vunpack.c.l.b16 %v684
        %v1026 = vunpack.c.l.b16 %v685
        %v1027 = vpack.c.b16 %v1020, %v1019
        %v1028 = vpack.c.b16 %v1022, %v1021
        %v1029 = vpack.c.b16 %v1024, %v1023
        %v1030 = vpack.c.b16 %v1026, %v1025
        %v1051 = vunpack.c.l.b16 %v686
        %v1052 = vunpack.c.l.b16 %v687
        %v1053 = vunpack.c.l.b16 %v688
        %v1054 = vunpack.c.l.b16 %v689
        %v1055 = vunpack.c.l.b16 %v690
        %v1056 = vunpack.c.l.b16 %v691
        %v1057 = vunpack.c.l.b16 %v692
        %v1058 = vunpack.c.l.b16 %v693
        %v1059 = vunpack.c.l.b16 %v694
        %v1060 = vunpack.c.l.b16 %v695
        %v1061 = vunpack.c.l.b16 %v696
        %v1062 = vunpack.c.l.b16 %v697
        %v1063 = vunpack.c.l.b16 %v698
        %v1064 = vunpack.c.l.b16 %v699
        %v1065 = vunpack.c.l.b16 %v700
        %v1066 = vunpack.c.l.b16 %v701
        %v1067 = vpack.c.b16 %v1052, %v1051
        %v1068 = vpack.c.b16 %v1054, %v1053
        %v1069 = vpack.c.b16 %v1056, %v1055
        %v1070 = vpack.c.b16 %v1058, %v1057
        %v1071 = vpack.c.b16 %v1060, %v1059
        %v1072 = vpack.c.b16 %v1062, %v1061
        %v1073 = vpack.c.b16 %v1064, %v1063
        %v1074 = vpack.c.b16 %v1066, %v1065
        %1083 = vmatprep.subr.bf16.mxu0 0
        %1084 = vmatpush1.bf16.msra.mxu0 %v1067
        %1085 = vmatprep.subr.bf16.mxu0 0
        %1086 = vmatpush1.bf16.msra.mxu0 %v1068
        %1087 = vmatprep.subr.bf16.mxu0 0
        %1088 = vmatpush1.bf16.msra.mxu0 %v1069
        %1089 = vmatprep.subr.bf16.mxu0 0
        %1090 = vmatpush1.bf16.msra.mxu0 %v1070
        %1091 = vmatprep.subr.bf16.mxu0 0
        %1092 = vmatpush1.bf16.msra.mxu0 %v1071
        %1093 = vmatprep.subr.bf16.mxu0 0
        %1094 = vmatpush1.bf16.msra.mxu0 %v1072
        %1095 = vmatprep.subr.bf16.mxu0 0
        %1096 = vmatpush1.bf16.msra.mxu0 %v1073
        %1097 = vmatprep.subr.bf16.mxu0 0
        %1098 = vmatpush1.bf16.msra.mxu0 %v1074
        %1099 = vmatprep.subr.bf16.mxu0 0
        %1100 = vmatpush1.bf16.msra.mxu0 0
        %1101 = vmatprep.subr.bf16.mxu0 0
        %1102 = vmatpush1.bf16.msra.mxu0 0
        %1103 = vmatprep.subr.bf16.mxu0 0
        %1104 = vmatpush1.bf16.msra.mxu0 0
        %1105 = vmatprep.subr.bf16.mxu0 0
        %1106 = vmatpush1.bf16.msra.mxu0 0
        %1107 = vmatprep.subr.bf16.mxu0 0
        %1108 = vmatpush1.bf16.msra.mxu0 0
        %1109 = vmatprep.subr.bf16.mxu0 0
        %1110 = vmatpush1.bf16.msra.mxu0 0
        %1111 = vmatprep.subr.bf16.mxu0 0
        %1112 = vmatpush1.bf16.msra.mxu0 0
        %1113 = vmatprep.subr.bf16.mxu0 0
        %1114 = vmatpush1.bf16.msra.mxu0 0
        %1115 = vmatprep.mubr.bf16.mxu0 0
        %1116 = vmatmul.mubr.bf16.gmra.mrb[0].mxu0 %v1027
        %v1117 = vpop.f32.mrb[0].mxu0
        %v1118 = vadd.f32 %v981, %v1117
        %v1119 = vpop.f32.mrb[0].mxu0
        %v1120 = vpop.f32.mrb[0].mxu0
        %v1121 = vadd.f32 %v984, %v1120
        %v1122 = vpop.f32.mrb[0].mxu0
        %1123 = vmatprep.mubr.bf16.mxu0 0
        %1124 = vmatmul.mubr.bf16.gmra.mrb[0].mxu0 %v1028
        %v1125 = vpop.f32.mrb[0].mxu0
        %v1126 = vadd.f32 %v989, %v1125
        %v1127 = vpop.f32.mrb[0].mxu0
        %v1128 = vpop.f32.mrb[0].mxu0
        %v1129 = vadd.f32 %v992, %v1128
        %v1130 = vpop.f32.mrb[0].mxu0
        %1131 = vmatprep.mubr.bf16.mxu0 0
        %1132 = vmatmul.mubr.bf16.gmra.mrb[0].mxu0 %v1029
        %v1133 = vpop.f32.mrb[0].mxu0
        %v1134 = vadd.f32 %v997, %v1133
        %v1135 = vpop.f32.mrb[0].mxu0
        %v1136 = vpop.f32.mrb[0].mxu0
        %v1137 = vadd.f32 %v1000, %v1136
        %v1138 = vpop.f32.mrb[0].mxu0
        %1139 = vmatprep.mubr.bf16.mxu0 0
        %1140 = vmatmul.mubr.bf16.gmra.mrb[0].mxu0 %v1030
        %v1141 = vpop.f32.mrb[0].mxu0
        %v1142 = vadd.f32 %v1005, %v1141
        %v1143 = vpop.f32.mrb[0].mxu0
        %v1144 = vpop.f32.mrb[0].mxu0
        %v1145 = vadd.f32 %v1008, %v1144
        %v1146 = vpop.f32.mrb[0].mxu0
        %1147 = vdwg.mxu0
        %v1148 = vld [vmem:[#allocation2] sm:$0x1e]
        %v1149 = vld [vmem:[#allocation2 + $0x8] sm:$0x1e]
        %v1150 = vld [vmem:[#allocation2 + $0x10] sm:$0x1e]
        %v1151 = vld [vmem:[#allocation2 + $0x18] sm:$0x1e]
        %v1152 = vld [vmem:[#allocation2 + $0x20] sm:$0x1e]
        %v1153 = vld [vmem:[#allocation2 + $0x28] sm:$0x1e]
        %v1154 = vld [vmem:[#allocation2 + $0x30] sm:$0x1e]
        %v1155 = vld [vmem:[#allocation2 + $0x38] sm:$0x1e]
        %v1164 = vunpack.c.l.b16 %v1148
        %v1165 = vunpack.c.h.b16 %v1148
        %v1166 = vunpack.c.l.b16 %v1149
        %v1167 = vunpack.c.h.b16 %v1149
        %v1168 = vunpack.c.l.b16 %v1150
        %v1169 = vunpack.c.h.b16 %v1150
        %v1170 = vunpack.c.l.b16 %v1151
        %v1171 = vunpack.c.h.b16 %v1151
        %v1172 = vunpack.c.l.b16 %v1152
        %v1173 = vunpack.c.h.b16 %v1152
        %v1174 = vunpack.c.l.b16 %v1153
        %v1175 = vunpack.c.h.b16 %v1153
        %v1176 = vunpack.c.l.b16 %v1154
        %v1177 = vunpack.c.h.b16 %v1154
        %v1178 = vunpack.c.l.b16 %v1155
        %v1179 = vunpack.c.h.b16 %v1155
        %v1180 = vpack.c.b16 %v1164, %v1164
        %v1181 = vpack.c.b16 %v1165, %v1165
        %v1182 = vpack.c.b16 %v1166, %v1166
        %v1183 = vpack.c.b16 %v1167, %v1167
        %v1184 = vpack.c.b16 %v1168, %v1168
        %v1185 = vpack.c.b16 %v1169, %v1169
        %v1186 = vpack.c.b16 %v1170, %v1170
        %v1187 = vpack.c.b16 %v1171, %v1171
        %v1188 = vpack.c.b16 %v1172, %v1172
        %v1189 = vpack.c.b16 %v1173, %v1173
        %v1190 = vpack.c.b16 %v1174, %v1174
        %v1191 = vpack.c.b16 %v1175, %v1175
        %v1192 = vpack.c.b16 %v1176, %v1176
        %v1193 = vpack.c.b16 %v1177, %v1177
        %v1194 = vpack.c.b16 %v1178, %v1178
        %v1195 = vpack.c.b16 %v1179, %v1179
        %vm1196 = vcmask 1042432
        %vm1197 = vcmask 1046532
        %vm1198 = vmor %vm1196, %vm1197
        %v1199 = vrot.slane %v1180, 5
        %v1200 = vrot.slane %v1199, 4
        %v1201 = vrot.slane %v1181, 5
        %v1202 = vsel %vm1198, %v1200, %v1201
        %v1203 = vrot.slane %v1182, 5
        %v1204 = vrot.slane %v1203, 4
        %v1205 = vrot.slane %v1183, 5
        %v1206 = vsel %vm1198, %v1204, %v1205
        %v1207 = vrot.slane %v1184, 5
        %v1208 = vrot.slane %v1207, 4
        %v1209 = vrot.slane %v1185, 5
        %v1210 = vsel %vm1198, %v1208, %v1209
        %v1211 = vrot.slane %v1186, 5
        %v1212 = vrot.slane %v1211, 4
        %v1213 = vrot.slane %v1187, 5
        %v1214 = vsel %vm1198, %v1212, %v1213
        %v1215 = vrot.slane %v1188, 5
        %v1216 = vrot.slane %v1215, 4
        %v1217 = vrot.slane %v1189, 5
        %v1218 = vsel %vm1198, %v1216, %v1217
        %v1219 = vrot.slane %v1190, 5
        %v1220 = vrot.slane %v1219, 4
        %v1221 = vrot.slane %v1191, 5
        %v1222 = vsel %vm1198, %v1220, %v1221
        %v1223 = vrot.slane %v1192, 5
        %v1224 = vrot.slane %v1223, 4
        %v1225 = vrot.slane %v1193, 5
        %v1226 = vsel %vm1198, %v1224, %v1225
        %v1227 = vrot.slane %v1194, 5
        %v1228 = vrot.slane %v1227, 4
        %v1229 = vrot.slane %v1195, 5
        %v1230 = vsel %vm1198, %v1228, %v1229
        %s1231 = scalar_lea.vmem [#allocation7], 128
        %v1232 = vld [vmem:[%s1231] sm:$0xf]
        %v1233 = vld [vmem:[%s1231 + $0x4] sm:$0xf]
        %v1234 = vld [vmem:[%s1231 + $0x8] sm:$0xf]
        %v1235 = vld [vmem:[%s1231 + $0xc] sm:$0xf]
        %v1236 = vld [vmem:[%s1231 + $0x10] sm:$0xf]
        %v1237 = vld [vmem:[%s1231 + $0x14] sm:$0xf]
        %v1238 = vld [vmem:[%s1231 + $0x18] sm:$0xf]
        %v1239 = vld [vmem:[%s1231 + $0x1c] sm:$0xf]
        %v1240 = vld [vmem:[%s1231 + $0x20] sm:$0xf]
        %v1241 = vld [vmem:[%s1231 + $0x24] sm:$0xf]
        %v1242 = vld [vmem:[%s1231 + $0x28] sm:$0xf]
        %v1243 = vld [vmem:[%s1231 + $0x2c] sm:$0xf]
        %v1244 = vld [vmem:[%s1231 + $0x30] sm:$0xf]
        %v1245 = vld [vmem:[%s1231 + $0x34] sm:$0xf]
        %v1246 = vld [vmem:[%s1231 + $0x38] sm:$0xf]
        %v1247 = vld [vmem:[%s1231 + $0x3c] sm:$0xf]
        %v1248 = vunpack.c.l.b16 %v1202
        %v1249 = vunpack.c.l.b16 %v1206
        %v1250 = vunpack.c.l.b16 %v1210
        %v1251 = vunpack.c.l.b16 %v1214
        %v1252 = vunpack.c.l.b16 %v1218
        %v1253 = vunpack.c.l.b16 %v1222
        %v1254 = vunpack.c.l.b16 %v1226
        %v1255 = vunpack.c.l.b16 %v1230
        %v1256 = vpack.c.b16 %v1249, %v1248
        %v1257 = vpack.c.b16 %v1251, %v1250
        %v1258 = vpack.c.b16 %v1253, %v1252
        %v1259 = vpack.c.b16 %v1255, %v1254
        %v1280 = vunpack.c.l.b16 %v1232
        %v1281 = vunpack.c.l.b16 %v1233
        %v1282 = vunpack.c.l.b16 %v1234
        %v1283 = vunpack.c.l.b16 %v1235
        %v1284 = vunpack.c.l.b16 %v1236
        %v1285 = vunpack.c.l.b16 %v1237
        %v1286 = vunpack.c.l.b16 %v1238
        %v1287 = vunpack.c.l.b16 %v1239
        %v1288 = vunpack.c.l.b16 %v1240
        %v1289 = vunpack.c.l.b16 %v1241
        %v1290 = vunpack.c.l.b16 %v1242
        %v1291 = vunpack.c.l.b16 %v1243
        %v1292 = vunpack.c.l.b16 %v1244
        %v1293 = vunpack.c.l.b16 %v1245
        %v1294 = vunpack.c.l.b16 %v1246
        %v1295 = vunpack.c.l.b16 %v1247
        %v1296 = vpack.c.b16 %v1281, %v1280
        %v1297 = vpack.c.b16 %v1283, %v1282
        %v1298 = vpack.c.b16 %v1285, %v1284
        %v1299 = vpack.c.b16 %v1287, %v1286
        %v1300 = vpack.c.b16 %v1289, %v1288
        %v1301 = vpack.c.b16 %v1291, %v1290
        %v1302 = vpack.c.b16 %v1293, %v1292
        %v1303 = vpack.c.b16 %v1295, %v1294
        %1312 = vmatprep.subr.bf16.mxu0 0
        %1313 = vmatpush1.bf16.msra.mxu0 %v1296
        %1314 = vmatprep.subr.bf16.mxu0 0
        %1315 = vmatpush1.bf16.msra.mxu0 %v1297
        %1316 = vmatprep.subr.bf16.mxu0 0
        %1317 = vmatpush1.bf16.msra.mxu0 %v1298
        %1318 = vmatprep.subr.bf16.mxu0 0
        %1319 = vmatpush1.bf16.msra.mxu0 %v1299
        %1320 = vmatprep.subr.bf16.mxu0 0
        %1321 = vmatpush1.bf16.msra.mxu0 %v1300
        %1322 = vmatprep.subr.bf16.mxu0 0
        %1323 = vmatpush1.bf16.msra.mxu0 %v1301
        %1324 = vmatprep.subr.bf16.mxu0 0
        %1325 = vmatpush1.bf16.msra.mxu0 %v1302
        %1326 = vmatprep.subr.bf16.mxu0 0
        %1327 = vmatpush1.bf16.msra.mxu0 %v1303
        %1328 = vmatprep.subr.bf16.mxu0 0
        %1329 = vmatpush1.bf16.msra.mxu0 0
        %1330 = vmatprep.subr.bf16.mxu0 0
        %1331 = vmatpush1.bf16.msra.mxu0 0
        %1332 = vmatprep.subr.bf16.mxu0 0
        %1333 = vmatpush1.bf16.msra.mxu0 0
        %1334 = vmatprep.subr.bf16.mxu0 0
        %1335 = vmatpush1.bf16.msra.mxu0 0
        %1336 = vmatprep.subr.bf16.mxu0 0
        %1337 = vmatpush1.bf16.msra.mxu0 0
        %1338 = vmatprep.subr.bf16.mxu0 0
        %1339 = vmatpush1.bf16.msra.mxu0 0
        %1340 = vmatprep.subr.bf16.mxu0 0
        %1341 = vmatpush1.bf16.msra.mxu0 0
        %1342 = vmatprep.subr.bf16.mxu0 0
        %1343 = vmatpush1.bf16.msra.mxu0 0
        %1344 = vmatprep.mubr.bf16.mxu0 0
        %1345 = vmatmul.mubr.bf16.gmra.mrb[0].mxu0 %v1256
        %v1346 = vpop.f32.mrb[0].mxu0
        %v1347 = vadd.f32 0.0, %v1346
        %v1348 = vpop.f32.mrb[0].mxu0
        %v1349 = vpop.f32.mrb[0].mxu0
        %v1350 = vadd.f32 0.0, %v1349
        %v1351 = vpop.f32.mrb[0].mxu0
        %1352 = vmatprep.mubr.bf16.mxu0 0
        %1353 = vmatmul.mubr.bf16.gmra.mrb[0].mxu0 %v1257
        %v1354 = vpop.f32.mrb[0].mxu0
        %v1355 = vadd.f32 0.0, %v1354
        %v1356 = vpop.f32.mrb[0].mxu0
        %v1357 = vpop.f32.mrb[0].mxu0
        %v1358 = vadd.f32 0.0, %v1357
        %v1359 = vpop.f32.mrb[0].mxu0
        %1360 = vmatprep.mubr.bf16.mxu0 0
        %1361 = vmatmul.mubr.bf16.gmra.mrb[0].mxu0 %v1258
        %v1362 = vpop.f32.mrb[0].mxu0
        %v1363 = vadd.f32 0.0, %v1362
        %v1364 = vpop.f32.mrb[0].mxu0
        %v1365 = vpop.f32.mrb[0].mxu0
        %v1366 = vadd.f32 0.0, %v1365
        %v1367 = vpop.f32.mrb[0].mxu0
        %1368 = vmatprep.mubr.bf16.mxu0 0
        %1369 = vmatmul.mubr.bf16.gmra.mrb[0].mxu0 %v1259
        %v1370 = vpop.f32.mrb[0].mxu0
        %v1371 = vadd.f32 0.0, %v1370
        %v1372 = vpop.f32.mrb[0].mxu0
        %v1373 = vpop.f32.mrb[0].mxu0
        %v1374 = vadd.f32 0.0, %v1373
        %v1375 = vpop.f32.mrb[0].mxu0
        %1376 = vdwg.mxu0
        %v1377 = vadd.f32 %v1118, %v1347
        %v1378 = vadd.f32 %v1121, %v1350
        %v1379 = vadd.f32 %v1126, %v1355
        %v1380 = vadd.f32 %v1129, %v1358
        %v1381 = vadd.f32 %v1134, %v1363
        %v1382 = vadd.f32 %v1137, %v1366
        %v1383 = vadd.f32 %v1142, %v1371
        %v1384 = vadd.f32 %v1145, %v1374
        %v1385 = vld [vmem:[%s622] sm:$0xf]
        %v1386 = vld [vmem:[%s622 + $0x8] sm:$0xf]
        %v1387 = vld [vmem:[%s622 + $0x10] sm:$0xf]
        %v1388 = vld [vmem:[%s622 + $0x18] sm:$0xf]
        %v1389 = vld [vmem:[%s622 + $0x20] sm:$0xf]
        %v1390 = vld [vmem:[%s622 + $0x28] sm:$0xf]
        %v1391 = vld [vmem:[%s622 + $0x30] sm:$0xf]
        %v1392 = vld [vmem:[%s622 + $0x38] sm:$0xf]
        %s1393 = scalar_lea.vmem [#allocation7], 192
        %v1394 = vld [vmem:[%s1393] sm:$0xf]
        %v1395 = vld [vmem:[%s1393 + $0x4] sm:$0xf]
        %v1396 = vld [vmem:[%s1393 + $0x8] sm:$0xf]
        %v1397 = vld [vmem:[%s1393 + $0xc] sm:$0xf]
        %v1398 = vld [vmem:[%s1393 + $0x10] sm:$0xf]
        %v1399 = vld [vmem:[%s1393 + $0x14] sm:$0xf]
        %v1400 = vld [vmem:[%s1393 + $0x18] sm:$0xf]
        %v1401 = vld [vmem:[%s1393 + $0x1c] sm:$0xf]
        %v1402 = vld [vmem:[%s1393 + $0x20] sm:$0xf]
        %v1403 = vld [vmem:[%s1393 + $0x24] sm:$0xf]
        %v1404 = vld [vmem:[%s1393 + $0x28] sm:$0xf]
        %v1405 = vld [vmem:[%s1393 + $0x2c] sm:$0xf]
        %v1406 = vld [vmem:[%s1393 + $0x30] sm:$0xf]
        %v1407 = vld [vmem:[%s1393 + $0x34] sm:$0xf]
        %v1408 = vld [vmem:[%s1393 + $0x38] sm:$0xf]
        %v1409 = vld [vmem:[%s1393 + $0x3c] sm:$0xf]
        %v1418 = vunpack.c.l.b16 %v1385
        %v1419 = vunpack.c.l.b16 %v1386
        %v1420 = vunpack.c.l.b16 %v1387
        %v1421 = vunpack.c.l.b16 %v1388
        %v1422 = vunpack.c.l.b16 %v1389
        %v1423 = vunpack.c.l.b16 %v1390
        %v1424 = vunpack.c.l.b16 %v1391
        %v1425 = vunpack.c.l.b16 %v1392
        %v1426 = vpack.c.b16 %v1419, %v1418
        %v1427 = vpack.c.b16 %v1421, %v1420
        %v1428 = vpack.c.b16 %v1423, %v1422
        %v1429 = vpack.c.b16 %v1425, %v1424
        %v1450 = vunpack.c.l.b16 %v1394
        %v1451 = vunpack.c.l.b16 %v1395
        %v1452 = vunpack.c.l.b16 %v1396
        %v1453 = vunpack.c.l.b16 %v1397
        %v1454 = vunpack.c.l.b16 %v1398
        %v1455 = vunpack.c.l.b16 %v1399
        %v1456 = vunpack.c.l.b16 %v1400
        %v1457 = vunpack.c.l.b16 %v1401
        %v1458 = vunpack.c.l.b16 %v1402
        %v1459 = vunpack.c.l.b16 %v1403
        %v1460 = vunpack.c.l.b16 %v1404
        %v1461 = vunpack.c.l.b16 %v1405
        %v1462 = vunpack.c.l.b16 %v1406
        %v1463 = vunpack.c.l.b16 %v1407
        %v1464 = vunpack.c.l.b16 %v1408
        %v1465 = vunpack.c.l.b16 %v1409
        %v1466 = vpack.c.b16 %v1451, %v1450
        %v1467 = vpack.c.b16 %v1453, %v1452
        %v1468 = vpack.c.b16 %v1455, %v1454
        %v1469 = vpack.c.b16 %v1457, %v1456
        %v1470 = vpack.c.b16 %v1459, %v1458
        %v1471 = vpack.c.b16 %v1461, %v1460
        %v1472 = vpack.c.b16 %v1463, %v1462
        %v1473 = vpack.c.b16 %v1465, %v1464
        %1482 = vmatprep.subr.bf16.mxu0 0
        %1483 = vmatpush1.bf16.msra.mxu0 %v1466
        %1484 = vmatprep.subr.bf16.mxu0 0
        %1485 = vmatpush1.bf16.msra.mxu0 %v1467
        %1486 = vmatprep.subr.bf16.mxu0 0
        %1487 = vmatpush1.bf16.msra.mxu0 %v1468
        %1488 = vmatprep.subr.bf16.mxu0 0
        %1489 = vmatpush1.bf16.msra.mxu0 %v1469
        %1490 = vmatprep.subr.bf16.mxu0 0
        %1491 = vmatpush1.bf16.msra.mxu0 %v1470
        %1492 = vmatprep.subr.bf16.mxu0 0
        %1493 = vmatpush1.bf16.msra.mxu0 %v1471
        %1494 = vmatprep.subr.bf16.mxu0 0
        %1495 = vmatpush1.bf16.msra.mxu0 %v1472
        %1496 = vmatprep.subr.bf16.mxu0 0
        %1497 = vmatpush1.bf16.msra.mxu0 %v1473
        %1498 = vmatprep.subr.bf16.mxu0 0
        %1499 = vmatpush1.bf16.msra.mxu0 0
        %1500 = vmatprep.subr.bf16.mxu0 0
        %1501 = vmatpush1.bf16.msra.mxu0 0
        %1502 = vmatprep.subr.bf16.mxu0 0
        %1503 = vmatpush1.bf16.msra.mxu0 0
        %1504 = vmatprep.subr.bf16.mxu0 0
        %1505 = vmatpush1.bf16.msra.mxu0 0
        %1506 = vmatprep.subr.bf16.mxu0 0
        %1507 = vmatpush1.bf16.msra.mxu0 0
        %1508 = vmatprep.subr.bf16.mxu0 0
        %1509 = vmatpush1.bf16.msra.mxu0 0
        %1510 = vmatprep.subr.bf16.mxu0 0
        %1511 = vmatpush1.bf16.msra.mxu0 0
        %1512 = vmatprep.subr.bf16.mxu0 0
        %1513 = vmatpush1.bf16.msra.mxu0 0
        %1514 = vmatprep.mubr.bf16.mxu0 0
        %1515 = vmatmul.mubr.bf16.gmra.mrb[0].mxu0 %v1426
        %v1516 = vpop.f32.mrb[0].mxu0
        %v1517 = vadd.f32 0.0, %v1516
        %v1518 = vpop.f32.mrb[0].mxu0
        %v1519 = vpop.f32.mrb[0].mxu0
        %v1520 = vadd.f32 0.0, %v1519
        %v1521 = vpop.f32.mrb[0].mxu0
        %1522 = vmatprep.mubr.bf16.mxu0 0
        %1523 = vmatmul.mubr.bf16.gmra.mrb[0].mxu0 %v1427
        %v1524 = vpop.f32.mrb[0].mxu0
        %v1525 = vadd.f32 0.0, %v1524
        %v1526 = vpop.f32.mrb[0].mxu0
        %v1527 = vpop.f32.mrb[0].mxu0
        %v1528 = vadd.f32 0.0, %v1527
        %v1529 = vpop.f32.mrb[0].mxu0
        %1530 = vmatprep.mubr.bf16.mxu0 0
        %1531 = vmatmul.mubr.bf16.gmra.mrb[0].mxu0 %v1428
        %v1532 = vpop.f32.mrb[0].mxu0
        %v1533 = vadd.f32 0.0, %v1532
        %v1534 = vpop.f32.mrb[0].mxu0
        %v1535 = vpop.f32.mrb[0].mxu0
        %v1536 = vadd.f32 0.0, %v1535
        %v1537 = vpop.f32.mrb[0].mxu0
        %1538 = vmatprep.mubr.bf16.mxu0 0
        %1539 = vmatmul.mubr.bf16.gmra.mrb[0].mxu0 %v1429
        %v1540 = vpop.f32.mrb[0].mxu0
        %v1541 = vadd.f32 0.0, %v1540
        %v1542 = vpop.f32.mrb[0].mxu0
        %v1543 = vpop.f32.mrb[0].mxu0
        %v1544 = vadd.f32 0.0, %v1543
        %v1545 = vpop.f32.mrb[0].mxu0
        %1546 = vdwg.mxu0
        %v1547 = vadd.f32 %v1377, %v1517
        %v1548 = vadd.f32 %v1378, %v1520
        %v1549 = vadd.f32 %v1379, %v1525
        %v1550 = vadd.f32 %v1380, %v1528
        %v1551 = vadd.f32 %v1381, %v1533
        %v1552 = vadd.f32 %v1382, %v1536
        %v1553 = vadd.f32 %v1383, %v1541
        %v1554 = vadd.f32 %v1384, %v1544
        %v1555 = vld [vmem:[%s622] sm:$0x1f]
        %v1556 = vld [vmem:[%s622 + $0x8] sm:$0x1f]
        %v1557 = vld [vmem:[%s622 + $0x10] sm:$0x1f]
        %v1558 = vld [vmem:[%s622 + $0x18] sm:$0x1f]
        %v1559 = vld [vmem:[%s622 + $0x20] sm:$0x1f]
        %v1560 = vld [vmem:[%s622 + $0x28] sm:$0x1f]
        %v1561 = vld [vmem:[%s622 + $0x30] sm:$0x1f]
        %v1562 = vld [vmem:[%s622 + $0x38] sm:$0x1f]
        %v1571 = vunpack.c.l.b16 %v1555
        %v1572 = vunpack.c.h.b16 %v1555
        %v1573 = vunpack.c.l.b16 %v1556
        %v1574 = vunpack.c.h.b16 %v1556
        %v1575 = vunpack.c.l.b16 %v1557
        %v1576 = vunpack.c.h.b16 %v1557
        %v1577 = vunpack.c.l.b16 %v1558
        %v1578 = vunpack.c.h.b16 %v1558
        %v1579 = vunpack.c.l.b16 %v1559
        %v1580 = vunpack.c.h.b16 %v1559
        %v1581 = vunpack.c.l.b16 %v1560
        %v1582 = vunpack.c.h.b16 %v1560
        %v1583 = vunpack.c.l.b16 %v1561
        %v1584 = vunpack.c.h.b16 %v1561
        %v1585 = vunpack.c.l.b16 %v1562
        %v1586 = vunpack.c.h.b16 %v1562
        %v1587 = vpack.c.b16 %v1571, %v1571
        %v1588 = vpack.c.b16 %v1572, %v1572
        %v1589 = vpack.c.b16 %v1573, %v1573
        %v1590 = vpack.c.b16 %v1574, %v1574
        %v1591 = vpack.c.b16 %v1575, %v1575
        %v1592 = vpack.c.b16 %v1576, %v1576
        %v1593 = vpack.c.b16 %v1577, %v1577
        %v1594 = vpack.c.b16 %v1578, %v1578
        %v1595 = vpack.c.b16 %v1579, %v1579
        %v1596 = vpack.c.b16 %v1580, %v1580
        %v1597 = vpack.c.b16 %v1581, %v1581
        %v1598 = vpack.c.b16 %v1582, %v1582
        %v1599 = vpack.c.b16 %v1583, %v1583
        %v1600 = vpack.c.b16 %v1584, %v1584
        %v1601 = vpack.c.b16 %v1585, %v1585
        %v1602 = vpack.c.b16 %v1586, %v1586
        %v1604 = vshrl.u32 %v1587, 16
        %v1606 = vrot.slane %v1604, 4
        %v1607 = vshll.u32 %v1587, 16
        %v1609 = vrot.slane %v1607, 5
        %v1610 = vor.u32 %v1606, %v1609
        %v1611 = vrot.slane %v1610, 4
        %v1613 = vshll.u32 %v1588, 16
        %v1615 = vrot.slane %v1613, 5
        %v1616 = vsel %vm752, %v1611, %v1615
        %v1618 = vshrl.u32 %v1589, 16
        %v1620 = vrot.slane %v1618, 4
        %v1621 = vshll.u32 %v1589, 16
        %v1623 = vrot.slane %v1621, 5
        %v1624 = vor.u32 %v1620, %v1623
        %v1625 = vrot.slane %v1624, 4
        %v1627 = vshll.u32 %v1590, 16
        %v1629 = vrot.slane %v1627, 5
        %v1630 = vsel %vm752, %v1625, %v1629
        %v1632 = vshrl.u32 %v1591, 16
        %v1634 = vrot.slane %v1632, 4
        %v1635 = vshll.u32 %v1591, 16
        %v1637 = vrot.slane %v1635, 5
        %v1638 = vor.u32 %v1634, %v1637
        %v1639 = vrot.slane %v1638, 4
        %v1641 = vshll.u32 %v1592, 16
        %v1643 = vrot.slane %v1641, 5
        %v1644 = vsel %vm752, %v1639, %v1643
        %v1646 = vshrl.u32 %v1593, 16
        %v1648 = vrot.slane %v1646, 4
        %v1649 = vshll.u32 %v1593, 16
        %v1651 = vrot.slane %v1649, 5
        %v1652 = vor.u32 %v1648, %v1651
        %v1653 = vrot.slane %v1652, 4
        %v1655 = vshll.u32 %v1594, 16
        %v1657 = vrot.slane %v1655, 5
        %v1658 = vsel %vm752, %v1653, %v1657
        %v1660 = vshrl.u32 %v1595, 16
        %v1662 = vrot.slane %v1660, 4
        %v1663 = vshll.u32 %v1595, 16
        %v1665 = vrot.slane %v1663, 5
        %v1666 = vor.u32 %v1662, %v1665
        %v1667 = vrot.slane %v1666, 4
        %v1669 = vshll.u32 %v1596, 16
        %v1671 = vrot.slane %v1669, 5
        %v1672 = vsel %vm752, %v1667, %v1671
        %v1674 = vshrl.u32 %v1597, 16
        %v1676 = vrot.slane %v1674, 4
        %v1677 = vshll.u32 %v1597, 16
        %v1679 = vrot.slane %v1677, 5
        %v1680 = vor.u32 %v1676, %v1679
        %v1681 = vrot.slane %v1680, 4
        %v1683 = vshll.u32 %v1598, 16
        %v1685 = vrot.slane %v1683, 5
        %v1686 = vsel %vm752, %v1681, %v1685
        %v1688 = vshrl.u32 %v1599, 16
        %v1690 = vrot.slane %v1688, 4
        %v1691 = vshll.u32 %v1599, 16
        %v1693 = vrot.slane %v1691, 5
        %v1694 = vor.u32 %v1690, %v1693
        %v1695 = vrot.slane %v1694, 4
        %v1697 = vshll.u32 %v1600, 16
        %v1699 = vrot.slane %v1697, 5
        %v1700 = vsel %vm752, %v1695, %v1699
        %v1702 = vshrl.u32 %v1601, 16
        %v1704 = vrot.slane %v1702, 4
        %v1705 = vshll.u32 %v1601, 16
        %v1707 = vrot.slane %v1705, 5
        %v1708 = vor.u32 %v1704, %v1707
        %v1709 = vrot.slane %v1708, 4
        %v1711 = vshll.u32 %v1602, 16
        %v1713 = vrot.slane %v1711, 5
        %v1714 = vsel %vm752, %v1709, %v1713
        %s1715 = scalar_lea.vmem [#allocation7], 256
        %v1716 = vld [vmem:[%s1715] sm:$0xf]
        %v1717 = vld [vmem:[%s1715 + $0x4] sm:$0xf]
        %v1718 = vld [vmem:[%s1715 + $0x8] sm:$0xf]
        %v1719 = vld [vmem:[%s1715 + $0xc] sm:$0xf]
        %v1720 = vld [vmem:[%s1715 + $0x10] sm:$0xf]
        %v1721 = vld [vmem:[%s1715 + $0x14] sm:$0xf]
        %v1722 = vld [vmem:[%s1715 + $0x18] sm:$0xf]
        %v1723 = vld [vmem:[%s1715 + $0x1c] sm:$0xf]
        %v1724 = vld [vmem:[%s1715 + $0x20] sm:$0xf]
        %v1725 = vld [vmem:[%s1715 + $0x24] sm:$0xf]
        %v1726 = vld [vmem:[%s1715 + $0x28] sm:$0xf]
        %v1727 = vld [vmem:[%s1715 + $0x2c] sm:$0xf]
        %v1728 = vld [vmem:[%s1715 + $0x30] sm:$0xf]
        %v1729 = vld [vmem:[%s1715 + $0x34] sm:$0xf]
        %v1730 = vld [vmem:[%s1715 + $0x38] sm:$0xf]
        %v1731 = vld [vmem:[%s1715 + $0x3c] sm:$0xf]
        %v1732 = vunpack.c.l.b16 %v1616
        %v1733 = vunpack.c.l.b16 %v1630
        %v1734 = vunpack.c.l.b16 %v1644
        %v1735 = vunpack.c.l.b16 %v1658
        %v1736 = vunpack.c.l.b16 %v1672
        %v1737 = vunpack.c.l.b16 %v1686
        %v1738 = vunpack.c.l.b16 %v1700
        %v1739 = vunpack.c.l.b16 %v1714
        %v1740 = vpack.c.b16 %v1733, %v1732
        %v1741 = vpack.c.b16 %v1735, %v1734
        %v1742 = vpack.c.b16 %v1737, %v1736
        %v1743 = vpack.c.b16 %v1739, %v1738
        %v1764 = vunpack.c.l.b16 %v1716
        %v1765 = vunpack.c.l.b16 %v1717
        %v1766 = vunpack.c.l.b16 %v1718
        %v1767 = vunpack.c.l.b16 %v1719
        %v1768 = vunpack.c.l.b16 %v1720
        %v1769 = vunpack.c.l.b16 %v1721
        %v1770 = vunpack.c.l.b16 %v1722
        %v1771 = vunpack.c.l.b16 %v1723
        %v1772 = vunpack.c.l.b16 %v1724
        %v1773 = vunpack.c.l.b16 %v1725
        %v1774 = vunpack.c.l.b16 %v1726
        %v1775 = vunpack.c.l.b16 %v1727
        %v1776 = vunpack.c.l.b16 %v1728
        %v1777 = vunpack.c.l.b16 %v1729
        %v1778 = vunpack.c.l.b16 %v1730
        %v1779 = vunpack.c.l.b16 %v1731
        %v1780 = vpack.c.b16 %v1765, %v1764
        %v1781 = vpack.c.b16 %v1767, %v1766
        %v1782 = vpack.c.b16 %v1769, %v1768
        %v1783 = vpack.c.b16 %v1771, %v1770
        %v1784 = vpack.c.b16 %v1773, %v1772
        %v1785 = vpack.c.b16 %v1775, %v1774
        %v1786 = vpack.c.b16 %v1777, %v1776
        %v1787 = vpack.c.b16 %v1779, %v1778
        %1796 = vmatprep.subr.bf16.mxu0 0
        %1797 = vmatpush1.bf16.msra.mxu0 %v1780
        %1798 = vmatprep.subr.bf16.mxu0 0
        %1799 = vmatpush1.bf16.msra.mxu0 %v1781
        %1800 = vmatprep.subr.bf16.mxu0 0
        %1801 = vmatpush1.bf16.msra.mxu0 %v1782
        %1802 = vmatprep.subr.bf16.mxu0 0
        %1803 = vmatpush1.bf16.msra.mxu0 %v1783
        %1804 = vmatprep.subr.bf16.mxu0 0
        %1805 = vmatpush1.bf16.msra.mxu0 %v1784
        %1806 = vmatprep.subr.bf16.mxu0 0
        %1807 = vmatpush1.bf16.msra.mxu0 %v1785
        %1808 = vmatprep.subr.bf16.mxu0 0
        %1809 = vmatpush1.bf16.msra.mxu0 %v1786
        %1810 = vmatprep.subr.bf16.mxu0 0
        %1811 = vmatpush1.bf16.msra.mxu0 %v1787
        %1812 = vmatprep.subr.bf16.mxu0 0
        %1813 = vmatpush1.bf16.msra.mxu0 0
        %1814 = vmatprep.subr.bf16.mxu0 0
        %1815 = vmatpush1.bf16.msra.mxu0 0
        %1816 = vmatprep.subr.bf16.mxu0 0
        %1817 = vmatpush1.bf16.msra.mxu0 0
        %1818 = vmatprep.subr.bf16.mxu0 0
        %1819 = vmatpush1.bf16.msra.mxu0 0
        %1820 = vmatprep.subr.bf16.mxu0 0
        %1821 = vmatpush1.bf16.msra.mxu0 0
        %1822 = vmatprep.subr.bf16.mxu0 0
        %1823 = vmatpush1.bf16.msra.mxu0 0
        %1824 = vmatprep.subr.bf16.mxu0 0
        %1825 = vmatpush1.bf16.msra.mxu0 0
        %1826 = vmatprep.subr.bf16.mxu0 0
        %1827 = vmatpush1.bf16.msra.mxu0 0
        %1828 = vmatprep.mubr.bf16.mxu0 0
        %1829 = vmatmul.mubr.bf16.gmra.mrb[0].mxu0 %v1740
        %v1830 = vpop.f32.mrb[0].mxu0
        %v1831 = vadd.f32 0.0, %v1830
        %v1832 = vpop.f32.mrb[0].mxu0
        %v1833 = vpop.f32.mrb[0].mxu0
        %v1834 = vadd.f32 0.0, %v1833
        %v1835 = vpop.f32.mrb[0].mxu0
        %1836 = vmatprep.mubr.bf16.mxu0 0
        %1837 = vmatmul.mubr.bf16.gmra.mrb[0].mxu0 %v1741
        %v1838 = vpop.f32.mrb[0].mxu0
        %v1839 = vadd.f32 0.0, %v1838
        %v1840 = vpop.f32.mrb[0].mxu0
        %v1841 = vpop.f32.mrb[0].mxu0
        %v1842 = vadd.f32 0.0, %v1841
        %v1843 = vpop.f32.mrb[0].mxu0
        %1844 = vmatprep.mubr.bf16.mxu0 0
        %1845 = vmatmul.mubr.bf16.gmra.mrb[0].mxu0 %v1742
        %v1846 = vpop.f32.mrb[0].mxu0
        %v1847 = vadd.f32 0.0, %v1846
        %v1848 = vpop.f32.mrb[0].mxu0
        %v1849 = vpop.f32.mrb[0].mxu0
        %v1850 = vadd.f32 0.0, %v1849
        %v1851 = vpop.f32.mrb[0].mxu0
        %1852 = vmatprep.mubr.bf16.mxu0 0
        %1853 = vmatmul.mubr.bf16.gmra.mrb[0].mxu0 %v1743
        %v1854 = vpop.f32.mrb[0].mxu0
        %v1855 = vadd.f32 0.0, %v1854
        %v1856 = vpop.f32.mrb[0].mxu0
        %v1857 = vpop.f32.mrb[0].mxu0
        %v1858 = vadd.f32 0.0, %v1857
        %v1859 = vpop.f32.mrb[0].mxu0
        %1860 = vdwg.mxu0
        %v1861 = vadd.f32 %v1547, %v1831
        %v1862 = vadd.f32 %v1548, %v1834
        %v1863 = vadd.f32 %v1549, %v1839
        %v1864 = vadd.f32 %v1550, %v1842
        %v1865 = vadd.f32 %v1551, %v1847
        %v1866 = vadd.f32 %v1552, %v1850
        %v1867 = vadd.f32 %v1553, %v1855
        %v1868 = vadd.f32 %v1554, %v1858
        %v1869 = vld [vmem:[%s622] sm:$0x1e]
        %v1870 = vld [vmem:[%s622 + $0x8] sm:$0x1e]
        %v1871 = vld [vmem:[%s622 + $0x10] sm:$0x1e]
        %v1872 = vld [vmem:[%s622 + $0x18] sm:$0x1e]
        %v1873 = vld [vmem:[%s622 + $0x20] sm:$0x1e]
        %v1874 = vld [vmem:[%s622 + $0x28] sm:$0x1e]
        %v1875 = vld [vmem:[%s622 + $0x30] sm:$0x1e]
        %v1876 = vld [vmem:[%s622 + $0x38] sm:$0x1e]
        %v1885 = vunpack.c.l.b16 %v1869
        %v1886 = vunpack.c.h.b16 %v1869
        %v1887 = vunpack.c.l.b16 %v1870
        %v1888 = vunpack.c.h.b16 %v1870
        %v1889 = vunpack.c.l.b16 %v1871
        %v1890 = vunpack.c.h.b16 %v1871
        %v1891 = vunpack.c.l.b16 %v1872
        %v1892 = vunpack.c.h.b16 %v1872
        %v1893 = vunpack.c.l.b16 %v1873
        %v1894 = vunpack.c.h.b16 %v1873
        %v1895 = vunpack.c.l.b16 %v1874
        %v1896 = vunpack.c.h.b16 %v1874
        %v1897 = vunpack.c.l.b16 %v1875
        %v1898 = vunpack.c.h.b16 %v1875
        %v1899 = vunpack.c.l.b16 %v1876
        %v1900 = vunpack.c.h.b16 %v1876
        %v1901 = vpack.c.b16 %v1885, %v1885
        %v1902 = vpack.c.b16 %v1886, %v1886
        %v1903 = vpack.c.b16 %v1887, %v1887
        %v1904 = vpack.c.b16 %v1888, %v1888
        %v1905 = vpack.c.b16 %v1889, %v1889
        %v1906 = vpack.c.b16 %v1890, %v1890
        %v1907 = vpack.c.b16 %v1891, %v1891
        %v1908 = vpack.c.b16 %v1892, %v1892
        %v1909 = vpack.c.b16 %v1893, %v1893
        %v1910 = vpack.c.b16 %v1894, %v1894
        %v1911 = vpack.c.b16 %v1895, %v1895
        %v1912 = vpack.c.b16 %v1896, %v1896
        %v1913 = vpack.c.b16 %v1897, %v1897
        %v1914 = vpack.c.b16 %v1898, %v1898
        %v1915 = vpack.c.b16 %v1899, %v1899
        %v1916 = vpack.c.b16 %v1900, %v1900
        %v1917 = vrot.slane %v1901, 5
        %v1918 = vrot.slane %v1917, 4
        %v1919 = vrot.slane %v1902, 5
        %v1920 = vsel %vm1198, %v1918, %v1919
        %v1921 = vrot.slane %v1903, 5
        %v1922 = vrot.slane %v1921, 4
        %v1923 = vrot.slane %v1904, 5
        %v1924 = vsel %vm1198, %v1922, %v1923
        %v1925 = vrot.slane %v1905, 5
        %v1926 = vrot.slane %v1925, 4
        %v1927 = vrot.slane %v1906, 5
        %v1928 = vsel %vm1198, %v1926, %v1927
        %v1929 = vrot.slane %v1907, 5
        %v1930 = vrot.slane %v1929, 4
        %v1931 = vrot.slane %v1908, 5
        %v1932 = vsel %vm1198, %v1930, %v1931
        %v1933 = vrot.slane %v1909, 5
        %v1934 = vrot.slane %v1933, 4
        %v1935 = vrot.slane %v1910, 5
        %v1936 = vsel %vm1198, %v1934, %v1935
        %v1937 = vrot.slane %v1911, 5
        %v1938 = vrot.slane %v1937, 4
        %v1939 = vrot.slane %v1912, 5
        %v1940 = vsel %vm1198, %v1938, %v1939
        %v1941 = vrot.slane %v1913, 5
        %v1942 = vrot.slane %v1941, 4
        %v1943 = vrot.slane %v1914, 5
        %v1944 = vsel %vm1198, %v1942, %v1943
        %v1945 = vrot.slane %v1915, 5
        %v1946 = vrot.slane %v1945, 4
        %v1947 = vrot.slane %v1916, 5
        %v1948 = vsel %vm1198, %v1946, %v1947
        %s1949 = scalar_lea.vmem [#allocation7], 320
        %v1950 = vld [vmem:[%s1949] sm:$0xf]
        %v1951 = vld [vmem:[%s1949 + $0x4] sm:$0xf]
        %v1952 = vld [vmem:[%s1949 + $0x8] sm:$0xf]
        %v1953 = vld [vmem:[%s1949 + $0xc] sm:$0xf]
        %v1954 = vld [vmem:[%s1949 + $0x10] sm:$0xf]
        %v1955 = vld [vmem:[%s1949 + $0x14] sm:$0xf]
        %v1956 = vld [vmem:[%s1949 + $0x18] sm:$0xf]
        %v1957 = vld [vmem:[%s1949 + $0x1c] sm:$0xf]
        %v1958 = vld [vmem:[%s1949 + $0x20] sm:$0xf]
        %v1959 = vld [vmem:[%s1949 + $0x24] sm:$0xf]
        %v1960 = vld [vmem:[%s1949 + $0x28] sm:$0xf]
        %v1961 = vld [vmem:[%s1949 + $0x2c] sm:$0xf]
        %v1962 = vld [vmem:[%s1949 + $0x30] sm:$0xf]
        %v1963 = vld [vmem:[%s1949 + $0x34] sm:$0xf]
        %v1964 = vld [vmem:[%s1949 + $0x38] sm:$0xf]
        %v1965 = vld [vmem:[%s1949 + $0x3c] sm:$0xf]
        %v1966 = vunpack.c.l.b16 %v1920
        %v1967 = vunpack.c.l.b16 %v1924
        %v1968 = vunpack.c.l.b16 %v1928
        %v1969 = vunpack.c.l.b16 %v1932
        %v1970 = vunpack.c.l.b16 %v1936
        %v1971 = vunpack.c.l.b16 %v1940
        %v1972 = vunpack.c.l.b16 %v1944
        %v1973 = vunpack.c.l.b16 %v1948
        %v1974 = vpack.c.b16 %v1967, %v1966
        %v1975 = vpack.c.b16 %v1969, %v1968
        %v1976 = vpack.c.b16 %v1971, %v1970
        %v1977 = vpack.c.b16 %v1973, %v1972
        %v1998 = vunpack.c.l.b16 %v1950
        %v1999 = vunpack.c.l.b16 %v1951
        %v2000 = vunpack.c.l.b16 %v1952
        %v2001 = vunpack.c.l.b16 %v1953
        %v2002 = vunpack.c.l.b16 %v1954
        %v2003 = vunpack.c.l.b16 %v1955
        %v2004 = vunpack.c.l.b16 %v1956
        %v2005 = vunpack.c.l.b16 %v1957
        %v2006 = vunpack.c.l.b16 %v1958
        %v2007 = vunpack.c.l.b16 %v1959
        %v2008 = vunpack.c.l.b16 %v1960
        %v2009 = vunpack.c.l.b16 %v1961
        %v2010 = vunpack.c.l.b16 %v1962
        %v2011 = vunpack.c.l.b16 %v1963
        %v2012 = vunpack.c.l.b16 %v1964
        %v2013 = vunpack.c.l.b16 %v1965
        %v2014 = vpack.c.b16 %v1999, %v1998
        %v2015 = vpack.c.b16 %v2001, %v2000
        %v2016 = vpack.c.b16 %v2003, %v2002
        %v2017 = vpack.c.b16 %v2005, %v2004
        %v2018 = vpack.c.b16 %v2007, %v2006
        %v2019 = vpack.c.b16 %v2009, %v2008
        %v2020 = vpack.c.b16 %v2011, %v2010
        %v2021 = vpack.c.b16 %v2013, %v2012
        %2030 = vmatprep.subr.bf16.mxu0 0
        %2031 = vmatpush1.bf16.msra.mxu0 %v2014
        %2032 = vmatprep.subr.bf16.mxu0 0
        %2033 = vmatpush1.bf16.msra.mxu0 %v2015
        %2034 = vmatprep.subr.bf16.mxu0 0
        %2035 = vmatpush1.bf16.msra.mxu0 %v2016
        %2036 = vmatprep.subr.bf16.mxu0 0
        %2037 = vmatpush1.bf16.msra.mxu0 %v2017
        %2038 = vmatprep.subr.bf16.mxu0 0
        %2039 = vmatpush1.bf16.msra.mxu0 %v2018
        %2040 = vmatprep.subr.bf16.mxu0 0
        %2041 = vmatpush1.bf16.msra.mxu0 %v2019
        %2042 = vmatprep.subr.bf16.mxu0 0
        %2043 = vmatpush1.bf16.msra.mxu0 %v2020
        %2044 = vmatprep.subr.bf16.mxu0 0
        %2045 = vmatpush1.bf16.msra.mxu0 %v2021
        %2046 = vmatprep.subr.bf16.mxu0 0
        %2047 = vmatpush1.bf16.msra.mxu0 0
        %2048 = vmatprep.subr.bf16.mxu0 0
        %2049 = vmatpush1.bf16.msra.mxu0 0
        %2050 = vmatprep.subr.bf16.mxu0 0
        %2051 = vmatpush1.bf16.msra.mxu0 0
        %2052 = vmatprep.subr.bf16.mxu0 0
        %2053 = vmatpush1.bf16.msra.mxu0 0
        %2054 = vmatprep.subr.bf16.mxu0 0
        %2055 = vmatpush1.bf16.msra.mxu0 0
        %2056 = vmatprep.subr.bf16.mxu0 0
        %2057 = vmatpush1.bf16.msra.mxu0 0
        %2058 = vmatprep.subr.bf16.mxu0 0
        %2059 = vmatpush1.bf16.msra.mxu0 0
        %2060 = vmatprep.subr.bf16.mxu0 0
        %2061 = vmatpush1.bf16.msra.mxu0 0
        %2062 = vmatprep.mubr.bf16.mxu0 0
        %2063 = vmatmul.mubr.bf16.gmra.mrb[0].mxu0 %v1974
        %v2064 = vpop.f32.mrb[0].mxu0
        %v2065 = vadd.f32 0.0, %v2064
        %v2066 = vpop.f32.mrb[0].mxu0
        %v2067 = vpop.f32.mrb[0].mxu0
        %v2068 = vadd.f32 0.0, %v2067
        %v2069 = vpop.f32.mrb[0].mxu0
        %2070 = vmatprep.mubr.bf16.mxu0 0
        %2071 = vmatmul.mubr.bf16.gmra.mrb[0].mxu0 %v1975
        %v2072 = vpop.f32.mrb[0].mxu0
        %v2073 = vadd.f32 0.0, %v2072
        %v2074 = vpop.f32.mrb[0].mxu0
        %v2075 = vpop.f32.mrb[0].mxu0
        %v2076 = vadd.f32 0.0, %v2075
        %v2077 = vpop.f32.mrb[0].mxu0
        %2078 = vmatprep.mubr.bf16.mxu0 0
        %2079 = vmatmul.mubr.bf16.gmra.mrb[0].mxu0 %v1976
        %v2080 = vpop.f32.mrb[0].mxu0
        %v2081 = vadd.f32 0.0, %v2080
        %v2082 = vpop.f32.mrb[0].mxu0
        %v2083 = vpop.f32.mrb[0].mxu0
        %v2084 = vadd.f32 0.0, %v2083
        %v2085 = vpop.f32.mrb[0].mxu0
        %2086 = vmatprep.mubr.bf16.mxu0 0
        %2087 = vmatmul.mubr.bf16.gmra.mrb[0].mxu0 %v1977
        %v2088 = vpop.f32.mrb[0].mxu0
        %v2089 = vadd.f32 0.0, %v2088
        %v2090 = vpop.f32.mrb[0].mxu0
        %v2091 = vpop.f32.mrb[0].mxu0
        %v2092 = vadd.f32 0.0, %v2091
        %v2093 = vpop.f32.mrb[0].mxu0
        %2094 = vdwg.mxu0
        %v2095 = vadd.f32 %v1861, %v2065
        %v2096 = vadd.f32 %v1862, %v2068
        %v2097 = vadd.f32 %v1863, %v2073
        %v2098 = vadd.f32 %v1864, %v2076
        %v2099 = vadd.f32 %v1865, %v2081
        %v2100 = vadd.f32 %v1866, %v2084
        %v2101 = vadd.f32 %v1867, %v2089
        %v2102 = vadd.f32 %v1868, %v2092
        %s2103 = scalar_lea.vmem [#allocation2], 16
        %v2104 = vld [vmem:[%s2103] sm:$0xf]
        %v2105 = vld [vmem:[%s2103 + $0x8] sm:$0xf]
        %v2106 = vld [vmem:[%s2103 + $0x10] sm:$0xf]
        %v2107 = vld [vmem:[%s2103 + $0x18] sm:$0xf]
        %v2108 = vld [vmem:[%s2103 + $0x20] sm:$0xf]
        %v2109 = vld [vmem:[%s2103 + $0x28] sm:$0xf]
        %v2110 = vld [vmem:[%s2103 + $0x30] sm:$0xf]
        %v2111 = vld [vmem:[%s2103 + $0x38] sm:$0xf]
        %s2112 = scalar_lea.vmem [#allocation7], 384
        %v2113 = vld [vmem:[%s2112] sm:$0xf]
        %v2114 = vld [vmem:[%s2112 + $0x4] sm:$0xf]
        %v2115 = vld [vmem:[%s2112 + $0x8] sm:$0xf]
        %v2116 = vld [vmem:[%s2112 + $0xc] sm:$0xf]
        %v2117 = vld [vmem:[%s2112 + $0x10] sm:$0xf]
        %v2118 = vld [vmem:[%s2112 + $0x14] sm:$0xf]
        %v2119 = vld [vmem:[%s2112 + $0x18] sm:$0xf]
        %v2120 = vld [vmem:[%s2112 + $0x1c] sm:$0xf]
        %v2121 = vld [vmem:[%s2112 + $0x20] sm:$0xf]
        %v2122 = vld [vmem:[%s2112 + $0x24] sm:$0xf]
        %v2123 = vld [vmem:[%s2112 + $0x28] sm:$0xf]
        %v2124 = vld [vmem:[%s2112 + $0x2c] sm:$0xf]
        %v2125 = vld [vmem:[%s2112 + $0x30] sm:$0xf]
        %v2126 = vld [vmem:[%s2112 + $0x34] sm:$0xf]
        %v2127 = vld [vmem:[%s2112 + $0x38] sm:$0xf]
        %v2128 = vld [vmem:[%s2112 + $0x3c] sm:$0xf]
        %v2137 = vunpack.c.l.b16 %v2104
        %v2138 = vunpack.c.l.b16 %v2105
        %v2139 = vunpack.c.l.b16 %v2106
        %v2140 = vunpack.c.l.b16 %v2107
        %v2141 = vunpack.c.l.b16 %v2108
        %v2142 = vunpack.c.l.b16 %v2109
        %v2143 = vunpack.c.l.b16 %v2110
        %v2144 = vunpack.c.l.b16 %v2111
        %v2145 = vpack.c.b16 %v2138, %v2137
        %v2146 = vpack.c.b16 %v2140, %v2139
        %v2147 = vpack.c.b16 %v2142, %v2141
        %v2148 = vpack.c.b16 %v2144, %v2143
        %v2169 = vunpack.c.l.b16 %v2113
        %v2170 = vunpack.c.l.b16 %v2114
        %v2171 = vunpack.c.l.b16 %v2115
        %v2172 = vunpack.c.l.b16 %v2116
        %v2173 = vunpack.c.l.b16 %v2117
        %v2174 = vunpack.c.l.b16 %v2118
        %v2175 = vunpack.c.l.b16 %v2119
        %v2176 = vunpack.c.l.b16 %v2120
        %v2177 = vunpack.c.l.b16 %v2121
        %v2178 = vunpack.c.l.b16 %v2122
        %v2179 = vunpack.c.l.b16 %v2123
        %v2180 = vunpack.c.l.b16 %v2124
        %v2181 = vunpack.c.l.b16 %v2125
        %v2182 = vunpack.c.l.b16 %v2126
        %v2183 = vunpack.c.l.b16 %v2127
        %v2184 = vunpack.c.l.b16 %v2128
        %v2185 = vpack.c.b16 %v2170, %v2169
        %v2186 = vpack.c.b16 %v2172, %v2171
        %v2187 = vpack.c.b16 %v2174, %v2173
        %v2188 = vpack.c.b16 %v2176, %v2175
        %v2189 = vpack.c.b16 %v2178, %v2177
        %v2190 = vpack.c.b16 %v2180, %v2179
        %v2191 = vpack.c.b16 %v2182, %v2181
        %v2192 = vpack.c.b16 %v2184, %v2183
        %2201 = vmatprep.subr.bf16.mxu0 0
        %2202 = vmatpush1.bf16.msra.mxu0 %v2185
        %2203 = vmatprep.subr.bf16.mxu0 0
        %2204 = vmatpush1.bf16.msra.mxu0 %v2186
        %2205 = vmatprep.subr.bf16.mxu0 0
        %2206 = vmatpush1.bf16.msra.mxu0 %v2187
        %2207 = vmatprep.subr.bf16.mxu0 0
        %2208 = vmatpush1.bf16.msra.mxu0 %v2188
        %2209 = vmatprep.subr.bf16.mxu0 0
        %2210 = vmatpush1.bf16.msra.mxu0 %v2189
        %2211 = vmatprep.subr.bf16.mxu0 0
        %2212 = vmatpush1.bf16.msra.mxu0 %v2190
        %2213 = vmatprep.subr.bf16.mxu0 0
        %2214 = vmatpush1.bf16.msra.mxu0 %v2191
        %2215 = vmatprep.subr.bf16.mxu0 0
        %2216 = vmatpush1.bf16.msra.mxu0 %v2192
        %2217 = vmatprep.subr.bf16.mxu0 0
        %2218 = vmatpush1.bf16.msra.mxu0 0
        %2219 = vmatprep.subr.bf16.mxu0 0
        %2220 = vmatpush1.bf16.msra.mxu0 0
        %2221 = vmatprep.subr.bf16.mxu0 0
        %2222 = vmatpush1.bf16.msra.mxu0 0
        %2223 = vmatprep.subr.bf16.mxu0 0
        %2224 = vmatpush1.bf16.msra.mxu0 0
        %2225 = vmatprep.subr.bf16.mxu0 0
        %2226 = vmatpush1.bf16.msra.mxu0 0
        %2227 = vmatprep.subr.bf16.mxu0 0
        %2228 = vmatpush1.bf16.msra.mxu0 0
        %2229 = vmatprep.subr.bf16.mxu0 0
        %2230 = vmatpush1.bf16.msra.mxu0 0
        %2231 = vmatprep.subr.bf16.mxu0 0
        %2232 = vmatpush1.bf16.msra.mxu0 0
        %2233 = vmatprep.mubr.bf16.mxu0 0
        %2234 = vmatmul.mubr.bf16.gmra.mrb[0].mxu0 %v2145
        %v2235 = vpop.f32.mrb[0].mxu0
        %v2236 = vadd.f32 0.0, %v2235
        %v2237 = vpop.f32.mrb[0].mxu0
        %v2238 = vpop.f32.mrb[0].mxu0
        %v2239 = vadd.f32 0.0, %v2238
        %v2240 = vpop.f32.mrb[0].mxu0
        %2241 = vmatprep.mubr.bf16.mxu0 0
        %2242 = vmatmul.mubr.bf16.gmra.mrb[0].mxu0 %v2146
        %v2243 = vpop.f32.mrb[0].mxu0
        %v2244 = vadd.f32 0.0, %v2243
        %v2245 = vpop.f32.mrb[0].mxu0
        %v2246 = vpop.f32.mrb[0].mxu0
        %v2247 = vadd.f32 0.0, %v2246
        %v2248 = vpop.f32.mrb[0].mxu0
        %2249 = vmatprep.mubr.bf16.mxu0 0
        %2250 = vmatmul.mubr.bf16.gmra.mrb[0].mxu0 %v2147
        %v2251 = vpop.f32.mrb[0].mxu0
        %v2252 = vadd.f32 0.0, %v2251
        %v2253 = vpop.f32.mrb[0].mxu0
        %v2254 = vpop.f32.mrb[0].mxu0
        %v2255 = vadd.f32 0.0, %v2254
        %v2256 = vpop.f32.mrb[0].mxu0
        %2257 = vmatprep.mubr.bf16.mxu0 0
        %2258 = vmatmul.mubr.bf16.gmra.mrb[0].mxu0 %v2148
        %v2259 = vpop.f32.mrb[0].mxu0
        %v2260 = vadd.f32 0.0, %v2259
        %v2261 = vpop.f32.mrb[0].mxu0
        %v2262 = vpop.f32.mrb[0].mxu0
        %v2263 = vadd.f32 0.0, %v2262
        %v2264 = vpop.f32.mrb[0].mxu0
        %2265 = vdwg.mxu0
        %v2266 = vadd.f32 %v2095, %v2236
        %v2267 = vadd.f32 %v2096, %v2239
        %v2268 = vadd.f32 %v2097, %v2244
        %v2269 = vadd.f32 %v2098, %v2247
        %v2270 = vadd.f32 %v2099, %v2252
        %v2271 = vadd.f32 %v2100, %v2255
        %v2272 = vadd.f32 %v2101, %v2260
        %v2273 = vadd.f32 %v2102, %v2263
        %v2274 = vld [vmem:[%s2103] sm:$0x1f]
        %v2275 = vld [vmem:[%s2103 + $0x8] sm:$0x1f]
        %v2276 = vld [vmem:[%s2103 + $0x10] sm:$0x1f]
        %v2277 = vld [vmem:[%s2103 + $0x18] sm:$0x1f]
        %v2278 = vld [vmem:[%s2103 + $0x20] sm:$0x1f]
        %v2279 = vld [vmem:[%s2103 + $0x28] sm:$0x1f]
        %v2280 = vld [vmem:[%s2103 + $0x30] sm:$0x1f]
        %v2281 = vld [vmem:[%s2103 + $0x38] sm:$0x1f]
        %v2290 = vunpack.c.l.b16 %v2274
        %v2291 = vunpack.c.h.b16 %v2274
        %v2292 = vunpack.c.l.b16 %v2275
        %v2293 = vunpack.c.h.b16 %v2275
        %v2294 = vunpack.c.l.b16 %v2276
        %v2295 = vunpack.c.h.b16 %v2276
        %v2296 = vunpack.c.l.b16 %v2277
        %v2297 = vunpack.c.h.b16 %v2277
        %v2298 = vunpack.c.l.b16 %v2278
        %v2299 = vunpack.c.h.b16 %v2278
        %v2300 = vunpack.c.l.b16 %v2279
        %v2301 = vunpack.c.h.b16 %v2279
        %v2302 = vunpack.c.l.b16 %v2280
        %v2303 = vunpack.c.h.b16 %v2280
        %v2304 = vunpack.c.l.b16 %v2281
        %v2305 = vunpack.c.h.b16 %v2281
        %v2306 = vpack.c.b16 %v2290, %v2290
        %v2307 = vpack.c.b16 %v2291, %v2291
        %v2308 = vpack.c.b16 %v2292, %v2292
        %v2309 = vpack.c.b16 %v2293, %v2293
        %v2310 = vpack.c.b16 %v2294, %v2294
        %v2311 = vpack.c.b16 %v2295, %v2295
        %v2312 = vpack.c.b16 %v2296, %v2296
        %v2313 = vpack.c.b16 %v2297, %v2297
        %v2314 = vpack.c.b16 %v2298, %v2298
        %v2315 = vpack.c.b16 %v2299, %v2299
        %v2316 = vpack.c.b16 %v2300, %v2300
        %v2317 = vpack.c.b16 %v2301, %v2301
        %v2318 = vpack.c.b16 %v2302, %v2302
        %v2319 = vpack.c.b16 %v2303, %v2303
        %v2320 = vpack.c.b16 %v2304, %v2304
        %v2321 = vpack.c.b16 %v2305, %v2305
        %v2323 = vshrl.u32 %v2306, 16
        %v2325 = vrot.slane %v2323, 4
        %v2326 = vshll.u32 %v2306, 16
        %v2328 = vrot.slane %v2326, 5
        %v2329 = vor.u32 %v2325, %v2328
        %v2330 = vrot.slane %v2329, 4
        %v2332 = vshll.u32 %v2307, 16
        %v2334 = vrot.slane %v2332, 5
        %v2335 = vsel %vm752, %v2330, %v2334
        %v2337 = vshrl.u32 %v2308, 16
        %v2339 = vrot.slane %v2337, 4
        %v2340 = vshll.u32 %v2308, 16
        %v2342 = vrot.slane %v2340, 5
        %v2343 = vor.u32 %v2339, %v2342
        %v2344 = vrot.slane %v2343, 4
        %v2346 = vshll.u32 %v2309, 16
        %v2348 = vrot.slane %v2346, 5
        %v2349 = vsel %vm752, %v2344, %v2348
        %v2351 = vshrl.u32 %v2310, 16
        %v2353 = vrot.slane %v2351, 4
        %v2354 = vshll.u32 %v2310, 16
        %v2356 = vrot.slane %v2354, 5
        %v2357 = vor.u32 %v2353, %v2356
        %v2358 = vrot.slane %v2357, 4
        %v2360 = vshll.u32 %v2311, 16
        %v2362 = vrot.slane %v2360, 5
        %v2363 = vsel %vm752, %v2358, %v2362
        %v2365 = vshrl.u32 %v2312, 16
        %v2367 = vrot.slane %v2365, 4
        %v2368 = vshll.u32 %v2312, 16
        %v2370 = vrot.slane %v2368, 5
        %v2371 = vor.u32 %v2367, %v2370
        %v2372 = vrot.slane %v2371, 4
        %v2374 = vshll.u32 %v2313, 16
        %v2376 = vrot.slane %v2374, 5
        %v2377 = vsel %vm752, %v2372, %v2376
        %v2379 = vshrl.u32 %v2314, 16
        %v2381 = vrot.slane %v2379, 4
        %v2382 = vshll.u32 %v2314, 16
        %v2384 = vrot.slane %v2382, 5
        %v2385 = vor.u32 %v2381, %v2384
        %v2386 = vrot.slane %v2385, 4
        %v2388 = vshll.u32 %v2315, 16
        %v2390 = vrot.slane %v2388, 5
        %v2391 = vsel %vm752, %v2386, %v2390
        %v2393 = vshrl.u32 %v2316, 16
        %v2395 = vrot.slane %v2393, 4
        %v2396 = vshll.u32 %v2316, 16
        %v2398 = vrot.slane %v2396, 5
        %v2399 = vor.u32 %v2395, %v2398
        %v2400 = vrot.slane %v2399, 4
        %v2402 = vshll.u32 %v2317, 16
        %v2404 = vrot.slane %v2402, 5
        %v2405 = vsel %vm752, %v2400, %v2404
        %v2407 = vshrl.u32 %v2318, 16
        %v2409 = vrot.slane %v2407, 4
        %v2410 = vshll.u32 %v2318, 16
        %v2412 = vrot.slane %v2410, 5
        %v2413 = vor.u32 %v2409, %v2412
        %v2414 = vrot.slane %v2413, 4
        %v2416 = vshll.u32 %v2319, 16
        %v2418 = vrot.slane %v2416, 5
        %v2419 = vsel %vm752, %v2414, %v2418
        %v2421 = vshrl.u32 %v2320, 16
        %v2423 = vrot.slane %v2421, 4
        %v2424 = vshll.u32 %v2320, 16
        %v2426 = vrot.slane %v2424, 5
        %v2427 = vor.u32 %v2423, %v2426
        %v2428 = vrot.slane %v2427, 4
        %v2430 = vshll.u32 %v2321, 16
        %v2432 = vrot.slane %v2430, 5
        %v2433 = vsel %vm752, %v2428, %v2432
        %s2434 = scalar_lea.vmem [#allocation7], 448
        %v2435 = vld [vmem:[%s2434] sm:$0xf]
        %v2436 = vld [vmem:[%s2434 + $0x4] sm:$0xf]
        %v2437 = vld [vmem:[%s2434 + $0x8] sm:$0xf]
        %v2438 = vld [vmem:[%s2434 + $0xc] sm:$0xf]
        %v2439 = vld [vmem:[%s2434 + $0x10] sm:$0xf]
        %v2440 = vld [vmem:[%s2434 + $0x14] sm:$0xf]
        %v2441 = vld [vmem:[%s2434 + $0x18] sm:$0xf]
        %v2442 = vld [vmem:[%s2434 + $0x1c] sm:$0xf]
        %v2443 = vld [vmem:[%s2434 + $0x20] sm:$0xf]
        %v2444 = vld [vmem:[%s2434 + $0x24] sm:$0xf]
        %v2445 = vld [vmem:[%s2434 + $0x28] sm:$0xf]
        %v2446 = vld [vmem:[%s2434 + $0x2c] sm:$0xf]
        %v2447 = vld [vmem:[%s2434 + $0x30] sm:$0xf]
        %v2448 = vld [vmem:[%s2434 + $0x34] sm:$0xf]
        %v2449 = vld [vmem:[%s2434 + $0x38] sm:$0xf]
        %v2450 = vld [vmem:[%s2434 + $0x3c] sm:$0xf]
        %v2451 = vunpack.c.l.b16 %v2335
        %v2452 = vunpack.c.l.b16 %v2349
        %v2453 = vunpack.c.l.b16 %v2363
        %v2454 = vunpack.c.l.b16 %v2377
        %v2455 = vunpack.c.l.b16 %v2391
        %v2456 = vunpack.c.l.b16 %v2405
        %v2457 = vunpack.c.l.b16 %v2419
        %v2458 = vunpack.c.l.b16 %v2433
        %v2459 = vpack.c.b16 %v2452, %v2451
        %v2460 = vpack.c.b16 %v2454, %v2453
        %v2461 = vpack.c.b16 %v2456, %v2455
        %v2462 = vpack.c.b16 %v2458, %v2457
        %v2483 = vunpack.c.l.b16 %v2435
        %v2484 = vunpack.c.l.b16 %v2436
        %v2485 = vunpack.c.l.b16 %v2437
        %v2486 = vunpack.c.l.b16 %v2438
        %v2487 = vunpack.c.l.b16 %v2439
        %v2488 = vunpack.c.l.b16 %v2440
        %v2489 = vunpack.c.l.b16 %v2441
        %v2490 = vunpack.c.l.b16 %v2442
        %v2491 = vunpack.c.l.b16 %v2443
        %v2492 = vunpack.c.l.b16 %v2444
        %v2493 = vunpack.c.l.b16 %v2445
        %v2494 = vunpack.c.l.b16 %v2446
        %v2495 = vunpack.c.l.b16 %v2447
        %v2496 = vunpack.c.l.b16 %v2448
        %v2497 = vunpack.c.l.b16 %v2449
        %v2498 = vunpack.c.l.b16 %v2450
        %v2499 = vpack.c.b16 %v2484, %v2483
        %v2500 = vpack.c.b16 %v2486, %v2485
        %v2501 = vpack.c.b16 %v2488, %v2487
        %v2502 = vpack.c.b16 %v2490, %v2489
        %v2503 = vpack.c.b16 %v2492, %v2491
        %v2504 = vpack.c.b16 %v2494, %v2493
        %v2505 = vpack.c.b16 %v2496, %v2495
        %v2506 = vpack.c.b16 %v2498, %v2497
        %2515 = vmatprep.subr.bf16.mxu0 0
        %2516 = vmatpush1.bf16.msra.mxu0 %v2499
        %2517 = vmatprep.subr.bf16.mxu0 0
        %2518 = vmatpush1.bf16.msra.mxu0 %v2500
        %2519 = vmatprep.subr.bf16.mxu0 0
        %2520 = vmatpush1.bf16.msra.mxu0 %v2501
        %2521 = vmatprep.subr.bf16.mxu0 0
        %2522 = vmatpush1.bf16.msra.mxu0 %v2502
        %2523 = vmatprep.subr.bf16.mxu0 0
        %2524 = vmatpush1.bf16.msra.mxu0 %v2503
        %2525 = vmatprep.subr.bf16.mxu0 0
        %2526 = vmatpush1.bf16.msra.mxu0 %v2504
        %2527 = vmatprep.subr.bf16.mxu0 0
        %2528 = vmatpush1.bf16.msra.mxu0 %v2505
        %2529 = vmatprep.subr.bf16.mxu0 0
        %2530 = vmatpush1.bf16.msra.mxu0 %v2506
        %2531 = vmatprep.subr.bf16.mxu0 0
        %2532 = vmatpush1.bf16.msra.mxu0 0
        %2533 = vmatprep.subr.bf16.mxu0 0
        %2534 = vmatpush1.bf16.msra.mxu0 0
        %2535 = vmatprep.subr.bf16.mxu0 0
        %2536 = vmatpush1.bf16.msra.mxu0 0
        %2537 = vmatprep.subr.bf16.mxu0 0
        %2538 = vmatpush1.bf16.msra.mxu0 0
        %2539 = vmatprep.subr.bf16.mxu0 0
        %2540 = vmatpush1.bf16.msra.mxu0 0
        %2541 = vmatprep.subr.bf16.mxu0 0
        %2542 = vmatpush1.bf16.msra.mxu0 0
        %2543 = vmatprep.subr.bf16.mxu0 0
        %2544 = vmatpush1.bf16.msra.mxu0 0
        %2545 = vmatprep.subr.bf16.mxu0 0
        %2546 = vmatpush1.bf16.msra.mxu0 0
        %2547 = vmatprep.mubr.bf16.mxu0 0
        %2548 = vmatmul.mubr.bf16.gmra.mrb[0].mxu0 %v2459
        %v2549 = vpop.f32.mrb[0].mxu0
        %v2550 = vadd.f32 0.0, %v2549
        %v2551 = vpop.f32.mrb[0].mxu0
        %v2552 = vpop.f32.mrb[0].mxu0
        %v2553 = vadd.f32 0.0, %v2552
        %v2554 = vpop.f32.mrb[0].mxu0
        %2555 = vmatprep.mubr.bf16.mxu0 0
        %2556 = vmatmul.mubr.bf16.gmra.mrb[0].mxu0 %v2460
        %v2557 = vpop.f32.mrb[0].mxu0
        %v2558 = vadd.f32 0.0, %v2557
        %v2559 = vpop.f32.mrb[0].mxu0
        %v2560 = vpop.f32.mrb[0].mxu0
        %v2561 = vadd.f32 0.0, %v2560
        %v2562 = vpop.f32.mrb[0].mxu0
        %2563 = vmatprep.mubr.bf16.mxu0 0
        %2564 = vmatmul.mubr.bf16.gmra.mrb[0].mxu0 %v2461
        %v2565 = vpop.f32.mrb[0].mxu0
        %v2566 = vadd.f32 0.0, %v2565
        %v2567 = vpop.f32.mrb[0].mxu0
        %v2568 = vpop.f32.mrb[0].mxu0
        %v2569 = vadd.f32 0.0, %v2568
        %v2570 = vpop.f32.mrb[0].mxu0
        %2571 = vmatprep.mubr.bf16.mxu0 0
        %2572 = vmatmul.mubr.bf16.gmra.mrb[0].mxu0 %v2462
        %v2573 = vpop.f32.mrb[0].mxu0
        %v2574 = vadd.f32 0.0, %v2573
        %v2575 = vpop.f32.mrb[0].mxu0
        %v2576 = vpop.f32.mrb[0].mxu0
        %v2577 = vadd.f32 0.0, %v2576
        %v2578 = vpop.f32.mrb[0].mxu0
        %2579 = vdwg.mxu0
        %v2580 = vadd.f32 %v2266, %v2550
        %v2581 = vadd.f32 %v2267, %v2553
        %v2582 = vadd.f32 %v2268, %v2558
        %v2583 = vadd.f32 %v2269, %v2561
        %v2584 = vadd.f32 %v2270, %v2566
        %v2585 = vadd.f32 %v2271, %v2569
        %v2586 = vadd.f32 %v2272, %v2574
        %v2587 = vadd.f32 %v2273, %v2577
        %v2588 = vld [vmem:[%s2103] sm:$0x1e]
        %v2589 = vld [vmem:[%s2103 + $0x8] sm:$0x1e]
        %v2590 = vld [vmem:[%s2103 + $0x10] sm:$0x1e]
        %v2591 = vld [vmem:[%s2103 + $0x18] sm:$0x1e]
        %v2592 = vld [vmem:[%s2103 + $0x20] sm:$0x1e]
        %v2593 = vld [vmem:[%s2103 + $0x28] sm:$0x1e]
        %v2594 = vld [vmem:[%s2103 + $0x30] sm:$0x1e]
        %v2595 = vld [vmem:[%s2103 + $0x38] sm:$0x1e]
        %v2604 = vunpack.c.l.b16 %v2588
        %v2605 = vunpack.c.h.b16 %v2588
        %v2606 = vunpack.c.l.b16 %v2589
        %v2607 = vunpack.c.h.b16 %v2589
        %v2608 = vunpack.c.l.b16 %v2590
        %v2609 = vunpack.c.h.b16 %v2590
        %v2610 = vunpack.c.l.b16 %v2591
        %v2611 = vunpack.c.h.b16 %v2591
        %v2612 = vunpack.c.l.b16 %v2592
        %v2613 = vunpack.c.h.b16 %v2592
        %v2614 = vunpack.c.l.b16 %v2593
        %v2615 = vunpack.c.h.b16 %v2593
        %v2616 = vunpack.c.l.b16 %v2594
        %v2617 = vunpack.c.h.b16 %v2594
        %v2618 = vunpack.c.l.b16 %v2595
        %v2619 = vunpack.c.h.b16 %v2595
        %v2620 = vpack.c.b16 %v2604, %v2604
        %v2621 = vpack.c.b16 %v2605, %v2605
        %v2622 = vpack.c.b16 %v2606, %v2606
        %v2623 = vpack.c.b16 %v2607, %v2607
        %v2624 = vpack.c.b16 %v2608, %v2608
        %v2625 = vpack.c.b16 %v2609, %v2609
        %v2626 = vpack.c.b16 %v2610, %v2610
        %v2627 = vpack.c.b16 %v2611, %v2611
        %v2628 = vpack.c.b16 %v2612, %v2612
        %v2629 = vpack.c.b16 %v2613, %v2613
        %v2630 = vpack.c.b16 %v2614, %v2614
        %v2631 = vpack.c.b16 %v2615, %v2615
        %v2632 = vpack.c.b16 %v2616, %v2616
        %v2633 = vpack.c.b16 %v2617, %v2617
        %v2634 = vpack.c.b16 %v2618, %v2618
        %v2635 = vpack.c.b16 %v2619, %v2619
        %v2636 = vrot.slane %v2620, 5
        %v2637 = vrot.slane %v2636, 4
        %v2638 = vrot.slane %v2621, 5
        %v2639 = vsel %vm1198, %v2637, %v2638
        %v2640 = vrot.slane %v2622, 5
        %v2641 = vrot.slane %v2640, 4
        %v2642 = vrot.slane %v2623, 5
        %v2643 = vsel %vm1198, %v2641, %v2642
        %v2644 = vrot.slane %v2624, 5
        %v2645 = vrot.slane %v2644, 4
        %v2646 = vrot.slane %v2625, 5
        %v2647 = vsel %vm1198, %v2645, %v2646
        %v2648 = vrot.slane %v2626, 5
        %v2649 = vrot.slane %v2648, 4
        %v2650 = vrot.slane %v2627, 5
        %v2651 = vsel %vm1198, %v2649, %v2650
        %v2652 = vrot.slane %v2628, 5
        %v2653 = vrot.slane %v2652, 4
        %v2654 = vrot.slane %v2629, 5
        %v2655 = vsel %vm1198, %v2653, %v2654
        %v2656 = vrot.slane %v2630, 5
        %v2657 = vrot.slane %v2656, 4
        %v2658 = vrot.slane %v2631, 5
        %v2659 = vsel %vm1198, %v2657, %v2658
        %v2660 = vrot.slane %v2632, 5
        %v2661 = vrot.slane %v2660, 4
        %v2662 = vrot.slane %v2633, 5
        %v2663 = vsel %vm1198, %v2661, %v2662
        %v2664 = vrot.slane %v2634, 5
        %v2665 = vrot.slane %v2664, 4
        %v2666 = vrot.slane %v2635, 5
        %v2667 = vsel %vm1198, %v2665, %v2666
        %s2668 = scalar_lea.vmem [#allocation7], 512
        %v2669 = vld [vmem:[%s2668] sm:$0xf]
        %v2670 = vld [vmem:[%s2668 + $0x4] sm:$0xf]
        %v2671 = vld [vmem:[%s2668 + $0x8] sm:$0xf]
        %v2672 = vld [vmem:[%s2668 + $0xc] sm:$0xf]
        %v2673 = vld [vmem:[%s2668 + $0x10] sm:$0xf]
        %v2674 = vld [vmem:[%s2668 + $0x14] sm:$0xf]
        %v2675 = vld [vmem:[%s2668 + $0x18] sm:$0xf]
        %v2676 = vld [vmem:[%s2668 + $0x1c] sm:$0xf]
        %v2677 = vld [vmem:[%s2668 + $0x20] sm:$0xf]
        %v2678 = vld [vmem:[%s2668 + $0x24] sm:$0xf]
        %v2679 = vld [vmem:[%s2668 + $0x28] sm:$0xf]
        %v2680 = vld [vmem:[%s2668 + $0x2c] sm:$0xf]
        %v2681 = vld [vmem:[%s2668 + $0x30] sm:$0xf]
        %v2682 = vld [vmem:[%s2668 + $0x34] sm:$0xf]
        %v2683 = vld [vmem:[%s2668 + $0x38] sm:$0xf]
        %v2684 = vld [vmem:[%s2668 + $0x3c] sm:$0xf]
        %v2685 = vunpack.c.l.b16 %v2639
        %v2686 = vunpack.c.l.b16 %v2643
        %v2687 = vunpack.c.l.b16 %v2647
        %v2688 = vunpack.c.l.b16 %v2651
        %v2689 = vunpack.c.l.b16 %v2655
        %v2690 = vunpack.c.l.b16 %v2659
        %v2691 = vunpack.c.l.b16 %v2663
        %v2692 = vunpack.c.l.b16 %v2667
        %v2693 = vpack.c.b16 %v2686, %v2685
        %v2694 = vpack.c.b16 %v2688, %v2687
        %v2695 = vpack.c.b16 %v2690, %v2689
        %v2696 = vpack.c.b16 %v2692, %v2691
        %v2717 = vunpack.c.l.b16 %v2669
        %v2718 = vunpack.c.l.b16 %v2670
        %v2719 = vunpack.c.l.b16 %v2671
        %v2720 = vunpack.c.l.b16 %v2672
        %v2721 = vunpack.c.l.b16 %v2673
        %v2722 = vunpack.c.l.b16 %v2674
        %v2723 = vunpack.c.l.b16 %v2675
        %v2724 = vunpack.c.l.b16 %v2676
        %v2725 = vunpack.c.l.b16 %v2677
        %v2726 = vunpack.c.l.b16 %v2678
        %v2727 = vunpack.c.l.b16 %v2679
        %v2728 = vunpack.c.l.b16 %v2680
        %v2729 = vunpack.c.l.b16 %v2681
        %v2730 = vunpack.c.l.b16 %v2682
        %v2731 = vunpack.c.l.b16 %v2683
        %v2732 = vunpack.c.l.b16 %v2684
        %v2733 = vpack.c.b16 %v2718, %v2717
        %v2734 = vpack.c.b16 %v2720, %v2719
        %v2735 = vpack.c.b16 %v2722, %v2721
        %v2736 = vpack.c.b16 %v2724, %v2723
        %v2737 = vpack.c.b16 %v2726, %v2725
        %v2738 = vpack.c.b16 %v2728, %v2727
        %v2739 = vpack.c.b16 %v2730, %v2729
        %v2740 = vpack.c.b16 %v2732, %v2731
        %2749 = vmatprep.subr.bf16.mxu0 0
        %2750 = vmatpush1.bf16.msra.mxu0 %v2733
        %2751 = vmatprep.subr.bf16.mxu0 0
        %2752 = vmatpush1.bf16.msra.mxu0 %v2734
        %2753 = vmatprep.subr.bf16.mxu0 0
        %2754 = vmatpush1.bf16.msra.mxu0 %v2735
        %2755 = vmatprep.subr.bf16.mxu0 0
        %2756 = vmatpush1.bf16.msra.mxu0 %v2736
        %2757 = vmatprep.subr.bf16.mxu0 0
        %2758 = vmatpush1.bf16.msra.mxu0 %v2737
        %2759 = vmatprep.subr.bf16.mxu0 0
        %2760 = vmatpush1.bf16.msra.mxu0 %v2738
        %2761 = vmatprep.subr.bf16.mxu0 0
        %2762 = vmatpush1.bf16.msra.mxu0 %v2739
        %2763 = vmatprep.subr.bf16.mxu0 0
        %2764 = vmatpush1.bf16.msra.mxu0 %v2740
        %2765 = vmatprep.subr.bf16.mxu0 0
        %2766 = vmatpush1.bf16.msra.mxu0 0
        %2767 = vmatprep.subr.bf16.mxu0 0
        %2768 = vmatpush1.bf16.msra.mxu0 0
        %2769 = vmatprep.subr.bf16.mxu0 0
        %2770 = vmatpush1.bf16.msra.mxu0 0
        %2771 = vmatprep.subr.bf16.mxu0 0
        %2772 = vmatpush1.bf16.msra.mxu0 0
        %2773 = vmatprep.subr.bf16.mxu0 0
        %2774 = vmatpush1.bf16.msra.mxu0 0
        %2775 = vmatprep.subr.bf16.mxu0 0
        %2776 = vmatpush1.bf16.msra.mxu0 0
        %2777 = vmatprep.subr.bf16.mxu0 0
        %2778 = vmatpush1.bf16.msra.mxu0 0
        %2779 = vmatprep.subr.bf16.mxu0 0
        %2780 = vmatpush1.bf16.msra.mxu0 0
        %2781 = vmatprep.mubr.bf16.mxu0 0
        %2782 = vmatmul.mubr.bf16.gmra.mrb[0].mxu0 %v2693
        %v2783 = vpop.f32.mrb[0].mxu0
        %v2784 = vadd.f32 0.0, %v2783
        %v2785 = vpop.f32.mrb[0].mxu0
        %v2786 = vpop.f32.mrb[0].mxu0
        %v2787 = vadd.f32 0.0, %v2786
        %v2788 = vpop.f32.mrb[0].mxu0
        %2789 = vmatprep.mubr.bf16.mxu0 0
        %2790 = vmatmul.mubr.bf16.gmra.mrb[0].mxu0 %v2694
        %v2791 = vpop.f32.mrb[0].mxu0
        %v2792 = vadd.f32 0.0, %v2791
        %v2793 = vpop.f32.mrb[0].mxu0
        %v2794 = vpop.f32.mrb[0].mxu0
        %v2795 = vadd.f32 0.0, %v2794
        %v2796 = vpop.f32.mrb[0].mxu0
        %2797 = vmatprep.mubr.bf16.mxu0 0
        %2798 = vmatmul.mubr.bf16.gmra.mrb[0].mxu0 %v2695
        %v2799 = vpop.f32.mrb[0].mxu0
        %v2800 = vadd.f32 0.0, %v2799
        %v2801 = vpop.f32.mrb[0].mxu0
        %v2802 = vpop.f32.mrb[0].mxu0
        %v2803 = vadd.f32 0.0, %v2802
        %v2804 = vpop.f32.mrb[0].mxu0
        %2805 = vmatprep.mubr.bf16.mxu0 0
        %2806 = vmatmul.mubr.bf16.gmra.mrb[0].mxu0 %v2696
        %v2807 = vpop.f32.mrb[0].mxu0
        %v2808 = vadd.f32 0.0, %v2807
        %v2809 = vpop.f32.mrb[0].mxu0
        %v2810 = vpop.f32.mrb[0].mxu0
        %v2811 = vadd.f32 0.0, %v2810
        %v2812 = vpop.f32.mrb[0].mxu0
        %2813 = vdwg.mxu0
        %v2814 = vadd.f32 %v2580, %v2784
        %v2815 = vadd.f32 %v2581, %v2787
        %v2816 = vadd.f32 %v2582, %v2792
        %v2817 = vadd.f32 %v2583, %v2795
        %v2818 = vadd.f32 %v2584, %v2800
        %v2819 = vadd.f32 %v2585, %v2803
        %v2820 = vadd.f32 %v2586, %v2808
        %v2821 = vadd.f32 %v2587, %v2811
        %v2823 = vlaneseq
        %v2824 = vshrl.u32 %v2823, 7
        %v2825 = vsub.s32 0, %v2824
        %v2826 = vrot.slane %v676, %v2825
        %v2828 = vmul.f32 %v2814, %v2826
        %v2829 = vmul.f32 %v2815, %v2826
        %v2830 = vmul.f32 %v2816, %v2826
        %v2831 = vmul.f32 %v2817, %v2826
        %v2832 = vmul.f32 %v2818, %v2826
        %v2833 = vmul.f32 %v2819, %v2826
        %v2834 = vmul.f32 %v2820, %v2826
        %v2835 = vmul.f32 %v2821, %v2826
        %v2837 = vlaneseq
        %v2838 = vshrl.u32 %v2837, 7
        %v2839 = vsub.s32 0, %v2838
        %v2840 = vrot.slane %v677, %v2839
        %v2842 = vadd.f32 %v2828, %v2840
        %v2843 = vadd.f32 %v2829, %v2840
        %v2844 = vadd.f32 %v2830, %v2840
        %v2845 = vadd.f32 %v2831, %v2840
        %v2846 = vadd.f32 %v2832, %v2840
        %v2847 = vadd.f32 %v2833, %v2840
        %v2848 = vadd.f32 %v2834, %v2840
        %v2849 = vadd.f32 %v2835, %v2840
        %v2850 = vmax.f32 %v2842, 0.0
        %v2851 = vmax.f32 %v2843, 0.0
        %v2852 = vmax.f32 %v2844, 0.0
        %v2853 = vmax.f32 %v2845, 0.0
        %v2854 = vmax.f32 %v2846, 0.0
        %v2855 = vmax.f32 %v2847, 0.0
        %v2856 = vmax.f32 %v2848, 0.0
        %v2857 = vmax.f32 %v2849, 0.0
        %2858 = vst [vmem:[#allocation3] sm:$0xff] 0
        %s2859 = scalar_lea.vmem [#allocation3], 72
        %2860 = vst [vmem:[%s2859] sm:$0xff] 0
        %v2861 = vld [vmem:[#allocation3] sm:$0x1]
        %v2862 = vsel %vm486, 0, %v2861
        %2863 = vst [vmem:[#allocation3] sm:$0x1] %v2862
        %v2864 = vld [vmem:[#allocation3 + $0x8] sm:$0x1]
        %v2865 = vsel %vm486, 0, %v2864
        %2866 = vst [vmem:[#allocation3 + $0x8] sm:$0x1] %v2865
        %v2867 = vld [vmem:[#allocation3 + $0x10] sm:$0x1]
        %v2868 = vsel %vm486, 0, %v2867
        %2869 = vst [vmem:[#allocation3 + $0x10] sm:$0x1] %v2868
        %v2870 = vld [vmem:[#allocation3 + $0x18] sm:$0x1]
        %v2871 = vsel %vm486, 0, %v2870
        %2872 = vst [vmem:[#allocation3 + $0x18] sm:$0x1] %v2871
        %v2873 = vld [vmem:[#allocation3 + $0x20] sm:$0x1]
        %v2874 = vsel %vm486, 0, %v2873
        %2875 = vst [vmem:[#allocation3 + $0x20] sm:$0x1] %v2874
        %v2876 = vld [vmem:[#allocation3 + $0x28] sm:$0x1]
        %v2877 = vsel %vm486, 0, %v2876
        %2878 = vst [vmem:[#allocation3 + $0x28] sm:$0x1] %v2877
        %v2879 = vld [vmem:[#allocation3 + $0x30] sm:$0x1]
        %v2880 = vsel %vm486, 0, %v2879
        %2881 = vst [vmem:[#allocation3 + $0x30] sm:$0x1] %v2880
        %v2882 = vld [vmem:[#allocation3 + $0x38] sm:$0x1]
        %v2883 = vsel %vm486, 0, %v2882
        %2884 = vst [vmem:[#allocation3 + $0x38] sm:$0x1] %v2883
        %v2885 = vld [vmem:[#allocation3 + $0x40] sm:$0x1]
        %v2886 = vsel %vm486, 0, %v2885
        %2887 = vst [vmem:[#allocation3 + $0x40] sm:$0x1] %v2886
        %v2888 = vld [vmem:[#allocation3 + $0x48] sm:$0x1]
        %v2889 = vsel %vm486, 0, %v2888
        %2890 = vst [vmem:[#allocation3 + $0x48] sm:$0x1] %v2889
        %v2891 = vld [vmem:[#allocation3] sm:$0x10]
        %v2892 = vsel %vm519, 0, %v2891
        %2893 = vst [vmem:[#allocation3] sm:$0x10] %v2892
        %v2894 = vld [vmem:[#allocation3 + $0x8] sm:$0x10]
        %v2895 = vsel %vm519, 0, %v2894
        %2896 = vst [vmem:[#allocation3 + $0x8] sm:$0x10] %v2895
        %v2897 = vld [vmem:[#allocation3 + $0x10] sm:$0x10]
        %v2898 = vsel %vm519, 0, %v2897
        %2899 = vst [vmem:[#allocation3 + $0x10] sm:$0x10] %v2898
        %v2900 = vld [vmem:[#allocation3 + $0x18] sm:$0x10]
        %v2901 = vsel %vm519, 0, %v2900
        %2902 = vst [vmem:[#allocation3 + $0x18] sm:$0x10] %v2901
        %v2903 = vld [vmem:[#allocation3 + $0x20] sm:$0x10]
        %v2904 = vsel %vm519, 0, %v2903
        %2905 = vst [vmem:[#allocation3 + $0x20] sm:$0x10] %v2904
        %v2906 = vld [vmem:[#allocation3 + $0x28] sm:$0x10]
        %v2907 = vsel %vm519, 0, %v2906
        %2908 = vst [vmem:[#allocation3 + $0x28] sm:$0x10] %v2907
        %v2909 = vld [vmem:[#allocation3 + $0x30] sm:$0x10]
        %v2910 = vsel %vm519, 0, %v2909
        %2911 = vst [vmem:[#allocation3 + $0x30] sm:$0x10] %v2910
        %v2912 = vld [vmem:[#allocation3 + $0x38] sm:$0x10]
        %v2913 = vsel %vm519, 0, %v2912
        %2914 = vst [vmem:[#allocation3 + $0x38] sm:$0x10] %v2913
        %v2915 = vld [vmem:[#allocation3 + $0x40] sm:$0x10]
        %v2916 = vsel %vm519, 0, %v2915
        %2917 = vst [vmem:[#allocation3 + $0x40] sm:$0x10] %v2916
        %v2918 = vld [vmem:[#allocation3 + $0x48] sm:$0x10]
        %v2919 = vsel %vm519, 0, %v2918
        %2920 = vst [vmem:[#allocation3 + $0x48] sm:$0x10] %v2919
        %v2921 = vpack.c.bf16 %v2850, %v2850
        %v2922 = vpack.c.bf16 %v2851, %v2851
        %v2923 = vpack.c.bf16 %v2852, %v2852
        %v2924 = vpack.c.bf16 %v2853, %v2853
        %v2925 = vpack.c.bf16 %v2854, %v2854
        %v2926 = vpack.c.bf16 %v2855, %v2855
        %v2927 = vpack.c.bf16 %v2856, %v2856
        %v2928 = vpack.c.bf16 %v2857, %v2857
        %v2930 = vshrl.u32 %v2921, 16
        %v2932 = vrot.slane %v2930, 7
        %v2933 = vshll.u32 %v2921, 16
        %v2935 = vor.u32 %v2932, %v2933
        %v2937 = vshrl.u32 %v2922, 16
        %v2939 = vrot.slane %v2937, 7
        %v2940 = vshll.u32 %v2922, 16
        %v2942 = vor.u32 %v2939, %v2940
        %v2944 = vshrl.u32 %v2923, 16
        %v2946 = vrot.slane %v2944, 7
        %v2947 = vshll.u32 %v2923, 16
        %v2949 = vor.u32 %v2946, %v2947
        %v2951 = vshrl.u32 %v2924, 16
        %v2953 = vrot.slane %v2951, 7
        %v2954 = vshll.u32 %v2924, 16
        %v2956 = vor.u32 %v2953, %v2954
        %v2958 = vshrl.u32 %v2925, 16
        %v2960 = vrot.slane %v2958, 7
        %v2961 = vshll.u32 %v2925, 16
        %v2963 = vor.u32 %v2960, %v2961
        %v2965 = vshrl.u32 %v2926, 16
        %v2967 = vrot.slane %v2965, 7
        %v2968 = vshll.u32 %v2926, 16
        %v2970 = vor.u32 %v2967, %v2968
        %v2972 = vshrl.u32 %v2927, 16
        %v2974 = vrot.slane %v2972, 7
        %v2975 = vshll.u32 %v2927, 16
        %v2977 = vor.u32 %v2974, %v2975
        %v2979 = vshrl.u32 %v2928, 16
        %v2981 = vrot.slane %v2979, 7
        %v2982 = vshll.u32 %v2928, 16
        %v2984 = vor.u32 %v2981, %v2982
        %s2993 = scalar_lea.vmem [#allocation3], 8
        %vm2994 = vcmask 1044480
        %vm2995 = vmand %vm2994, %vm624
        %v2996 = vld [vmem:[%s2993] sm:$0x1f]
        %v2997 = vsel %vm2995, %v2935, %v2996
        %2998 = vst [vmem:[%s2993] sm:$0x1f] %v2997
        %v2999 = vld [vmem:[%s2993 + $0x8] sm:$0x1f]
        %v3000 = vsel %vm2995, %v2942, %v2999
        %3001 = vst [vmem:[%s2993 + $0x8] sm:$0x1f] %v3000
        %v3002 = vld [vmem:[%s2993 + $0x10] sm:$0x1f]
        %v3003 = vsel %vm2995, %v2949, %v3002
        %3004 = vst [vmem:[%s2993 + $0x10] sm:$0x1f] %v3003
        %v3005 = vld [vmem:[%s2993 + $0x18] sm:$0x1f]
        %v3006 = vsel %vm2995, %v2956, %v3005
        %3007 = vst [vmem:[%s2993 + $0x18] sm:$0x1f] %v3006
        %v3008 = vld [vmem:[%s2993 + $0x20] sm:$0x1f]
        %v3009 = vsel %vm2995, %v2963, %v3008
        %3010 = vst [vmem:[%s2993 + $0x20] sm:$0x1f] %v3009
        %v3011 = vld [vmem:[%s2993 + $0x28] sm:$0x1f]
        %v3012 = vsel %vm2995, %v2970, %v3011
        %3013 = vst [vmem:[%s2993 + $0x28] sm:$0x1f] %v3012
        %v3014 = vld [vmem:[%s2993 + $0x30] sm:$0x1f]
        %v3015 = vsel %vm2995, %v2977, %v3014
        %3016 = vst [vmem:[%s2993 + $0x30] sm:$0x1f] %v3015
        %v3017 = vld [vmem:[%s2993 + $0x38] sm:$0x1f]
        %v3018 = vsel %vm2995, %v2984, %v3017
        %3019 = vst [vmem:[%s2993 + $0x38] sm:$0x1f] %v3018
        %v3020 = vld [vmem:[#allocation13] sm:$0x1]
        %v3021 = vld [vmem:[#allocation15] sm:$0x1]
        %v3022 = vld [vmem:[#allocation3] sm:$0xf]
        %v3023 = vld [vmem:[#allocation3 + $0x8] sm:$0xf]
        %v3024 = vld [vmem:[#allocation3 + $0x10] sm:$0xf]
        %v3025 = vld [vmem:[#allocation3 + $0x18] sm:$0xf]
        %v3026 = vld [vmem:[#allocation3 + $0x20] sm:$0xf]
        %v3027 = vld [vmem:[#allocation3 + $0x28] sm:$0xf]
        %v3028 = vld [vmem:[#allocation3 + $0x30] sm:$0xf]
        %v3029 = vld [vmem:[#allocation3 + $0x38] sm:$0xf]
        %v3030 = vld [vmem:[#allocation12] sm:$0xf]
        %v3031 = vld [vmem:[#allocation12 + $0x4] sm:$0xf]
        %v3032 = vld [vmem:[#allocation12 + $0x8] sm:$0xf]
        %v3033 = vld [vmem:[#allocation12 + $0xc] sm:$0xf]
        %v3034 = vld [vmem:[#allocation12 + $0x10] sm:$0xf]
        %v3035 = vld [vmem:[#allocation12 + $0x14] sm:$0xf]
        %v3036 = vld [vmem:[#allocation12 + $0x18] sm:$0xf]
        %v3037 = vld [vmem:[#allocation12 + $0x1c] sm:$0xf]
        %v3038 = vld [vmem:[#allocation12 + $0x20] sm:$0xf]
        %v3039 = vld [vmem:[#allocation12 + $0x24] sm:$0xf]
        %v3040 = vld [vmem:[#allocation12 + $0x28] sm:$0xf]
        %v3041 = vld [vmem:[#allocation12 + $0x2c] sm:$0xf]
        %v3042 = vld [vmem:[#allocation12 + $0x30] sm:$0xf]
        %v3043 = vld [vmem:[#allocation12 + $0x34] sm:$0xf]
        %v3044 = vld [vmem:[#allocation12 + $0x38] sm:$0xf]
        %v3045 = vld [vmem:[#allocation12 + $0x3c] sm:$0xf]
        %v3046 = vld [vmem:[#allocation3] sm:$0x1f]
        %v3047 = vld [vmem:[#allocation3 + $0x8] sm:$0x1f]
        %v3048 = vld [vmem:[#allocation3 + $0x10] sm:$0x1f]
        %v3049 = vld [vmem:[#allocation3 + $0x18] sm:$0x1f]
        %v3050 = vld [vmem:[#allocation3 + $0x20] sm:$0x1f]
        %v3051 = vld [vmem:[#allocation3 + $0x28] sm:$0x1f]
        %v3052 = vld [vmem:[#allocation3 + $0x30] sm:$0x1f]
        %v3053 = vld [vmem:[#allocation3 + $0x38] sm:$0x1f]
        %v3062 = vunpack.c.l.b16 %v3046
        %v3063 = vunpack.c.h.b16 %v3046
        %v3064 = vunpack.c.l.b16 %v3047
        %v3065 = vunpack.c.h.b16 %v3047
        %v3066 = vunpack.c.l.b16 %v3048
        %v3067 = vunpack.c.h.b16 %v3048
        %v3068 = vunpack.c.l.b16 %v3049
        %v3069 = vunpack.c.h.b16 %v3049
        %v3070 = vunpack.c.l.b16 %v3050
        %v3071 = vunpack.c.h.b16 %v3050
        %v3072 = vunpack.c.l.b16 %v3051
        %v3073 = vunpack.c.h.b16 %v3051
        %v3074 = vunpack.c.l.b16 %v3052
        %v3075 = vunpack.c.h.b16 %v3052
        %v3076 = vunpack.c.l.b16 %v3053
        %v3077 = vunpack.c.h.b16 %v3053
        %v3078 = vpack.c.b16 %v3062, %v3062
        %v3079 = vpack.c.b16 %v3063, %v3063
        %v3080 = vpack.c.b16 %v3064, %v3064
        %v3081 = vpack.c.b16 %v3065, %v3065
        %v3082 = vpack.c.b16 %v3066, %v3066
        %v3083 = vpack.c.b16 %v3067, %v3067
        %v3084 = vpack.c.b16 %v3068, %v3068
        %v3085 = vpack.c.b16 %v3069, %v3069
        %v3086 = vpack.c.b16 %v3070, %v3070
        %v3087 = vpack.c.b16 %v3071, %v3071
        %v3088 = vpack.c.b16 %v3072, %v3072
        %v3089 = vpack.c.b16 %v3073, %v3073
        %v3090 = vpack.c.b16 %v3074, %v3074
        %v3091 = vpack.c.b16 %v3075, %v3075
        %v3092 = vpack.c.b16 %v3076, %v3076
        %v3093 = vpack.c.b16 %v3077, %v3077
        %v3095 = vshrl.u32 %v3078, 16
        %v3097 = vrot.slane %v3095, 4
        %v3098 = vshll.u32 %v3078, 16
        %v3100 = vrot.slane %v3098, 5
        %v3101 = vor.u32 %v3097, %v3100
        %v3102 = vrot.slane %v3101, 4
        %v3104 = vshll.u32 %v3079, 16
        %v3106 = vrot.slane %v3104, 5
        %v3107 = vsel %vm752, %v3102, %v3106
        %v3109 = vshrl.u32 %v3080, 16
        %v3111 = vrot.slane %v3109, 4
        %v3112 = vshll.u32 %v3080, 16
        %v3114 = vrot.slane %v3112, 5
        %v3115 = vor.u32 %v3111, %v3114
        %v3116 = vrot.slane %v3115, 4
        %v3118 = vshll.u32 %v3081, 16
        %v3120 = vrot.slane %v3118, 5
        %v3121 = vsel %vm752, %v3116, %v3120
        %v3123 = vshrl.u32 %v3082, 16
        %v3125 = vrot.slane %v3123, 4
        %v3126 = vshll.u32 %v3082, 16
        %v3128 = vrot.slane %v3126, 5
        %v3129 = vor.u32 %v3125, %v3128
        %v3130 = vrot.slane %v3129, 4
        %v3132 = vshll.u32 %v3083, 16
        %v3134 = vrot.slane %v3132, 5
        %v3135 = vsel %vm752, %v3130, %v3134
        %v3137 = vshrl.u32 %v3084, 16
        %v3139 = vrot.slane %v3137, 4
        %v3140 = vshll.u32 %v3084, 16
        %v3142 = vrot.slane %v3140, 5
        %v3143 = vor.u32 %v3139, %v3142
        %v3144 = vrot.slane %v3143, 4
        %v3146 = vshll.u32 %v3085, 16
        %v3148 = vrot.slane %v3146, 5
        %v3149 = vsel %vm752, %v3144, %v3148
        %v3151 = vshrl.u32 %v3086, 16
        %v3153 = vrot.slane %v3151, 4
        %v3154 = vshll.u32 %v3086, 16
        %v3156 = vrot.slane %v3154, 5
        %v3157 = vor.u32 %v3153, %v3156
        %v3158 = vrot.slane %v3157, 4
        %v3160 = vshll.u32 %v3087, 16
        %v3162 = vrot.slane %v3160, 5
        %v3163 = vsel %vm752, %v3158, %v3162
        %v3165 = vshrl.u32 %v3088, 16
        %v3167 = vrot.slane %v3165, 4
        %v3168 = vshll.u32 %v3088, 16
        %v3170 = vrot.slane %v3168, 5
        %v3171 = vor.u32 %v3167, %v3170
        %v3172 = vrot.slane %v3171, 4
        %v3174 = vshll.u32 %v3089, 16
        %v3176 = vrot.slane %v3174, 5
        %v3177 = vsel %vm752, %v3172, %v3176
        %v3179 = vshrl.u32 %v3090, 16
        %v3181 = vrot.slane %v3179, 4
        %v3182 = vshll.u32 %v3090, 16
        %v3184 = vrot.slane %v3182, 5
        %v3185 = vor.u32 %v3181, %v3184
        %v3186 = vrot.slane %v3185, 4
        %v3188 = vshll.u32 %v3091, 16
        %v3190 = vrot.slane %v3188, 5
        %v3191 = vsel %vm752, %v3186, %v3190
        %v3193 = vshrl.u32 %v3092, 16
        %v3195 = vrot.slane %v3193, 4
        %v3196 = vshll.u32 %v3092, 16
        %v3198 = vrot.slane %v3196, 5
        %v3199 = vor.u32 %v3195, %v3198
        %v3200 = vrot.slane %v3199, 4
        %v3202 = vshll.u32 %v3093, 16
        %v3204 = vrot.slane %v3202, 5
        %v3205 = vsel %vm752, %v3200, %v3204
        %s3206 = scalar_lea.vmem [#allocation12], 64
        %v3207 = vld [vmem:[%s3206] sm:$0xf]
        %v3208 = vld [vmem:[%s3206 + $0x4] sm:$0xf]
        %v3209 = vld [vmem:[%s3206 + $0x8] sm:$0xf]
        %v3210 = vld [vmem:[%s3206 + $0xc] sm:$0xf]
        %v3211 = vld [vmem:[%s3206 + $0x10] sm:$0xf]
        %v3212 = vld [vmem:[%s3206 + $0x14] sm:$0xf]
        %v3213 = vld [vmem:[%s3206 + $0x18] sm:$0xf]
        %v3214 = vld [vmem:[%s3206 + $0x1c] sm:$0xf]
        %v3215 = vld [vmem:[%s3206 + $0x20] sm:$0xf]
        %v3216 = vld [vmem:[%s3206 + $0x24] sm:$0xf]
        %v3217 = vld [vmem:[%s3206 + $0x28] sm:$0xf]
        %v3218 = vld [vmem:[%s3206 + $0x2c] sm:$0xf]
        %v3219 = vld [vmem:[%s3206 + $0x30] sm:$0xf]
        %v3220 = vld [vmem:[%s3206 + $0x34] sm:$0xf]
        %v3221 = vld [vmem:[%s3206 + $0x38] sm:$0xf]
        %v3222 = vld [vmem:[%s3206 + $0x3c] sm:$0xf]
        %v3223 = vunpack.c.l.b16 %v3107
        %v3224 = vunpack.c.l.b16 %v3121
        %v3225 = vunpack.c.l.b16 %v3135
        %v3226 = vunpack.c.l.b16 %v3149
        %v3227 = vunpack.c.l.b16 %v3163
        %v3228 = vunpack.c.l.b16 %v3177
        %v3229 = vunpack.c.l.b16 %v3191
        %v3230 = vunpack.c.l.b16 %v3205
        %v3231 = vpack.c.b16 %v3224, %v3223
        %v3232 = vpack.c.b16 %v3226, %v3225
        %v3233 = vpack.c.b16 %v3228, %v3227
        %v3234 = vpack.c.b16 %v3230, %v3229
        %v3255 = vunpack.c.l.b16 %v3207
        %v3256 = vunpack.c.l.b16 %v3208
        %v3257 = vunpack.c.l.b16 %v3209
        %v3258 = vunpack.c.l.b16 %v3210
        %v3259 = vunpack.c.l.b16 %v3211
        %v3260 = vunpack.c.l.b16 %v3212
        %v3261 = vunpack.c.l.b16 %v3213
        %v3262 = vunpack.c.l.b16 %v3214
        %v3263 = vunpack.c.l.b16 %v3215
        %v3264 = vunpack.c.l.b16 %v3216
        %v3265 = vunpack.c.l.b16 %v3217
        %v3266 = vunpack.c.l.b16 %v3218
        %v3267 = vunpack.c.l.b16 %v3219
        %v3268 = vunpack.c.l.b16 %v3220
        %v3269 = vunpack.c.l.b16 %v3221
        %v3270 = vunpack.c.l.b16 %v3222
        %v3271 = vpack.c.b16 %v3256, %v3255
        %v3272 = vpack.c.b16 %v3258, %v3257
        %v3273 = vpack.c.b16 %v3260, %v3259
        %v3274 = vpack.c.b16 %v3262, %v3261
        %v3275 = vpack.c.b16 %v3264, %v3263
        %v3276 = vpack.c.b16 %v3266, %v3265
        %v3277 = vpack.c.b16 %v3268, %v3267
        %v3278 = vpack.c.b16 %v3270, %v3269
        %3287 = vmatprep.subr.bf16.mxu0 0
        %3288 = vmatpush1.bf16.msra.mxu0 %v3271
        %3289 = vmatprep.subr.bf16.mxu0 0
        %3290 = vmatpush1.bf16.msra.mxu0 %v3272
        %3291 = vmatprep.subr.bf16.mxu0 0
        %3292 = vmatpush1.bf16.msra.mxu0 %v3273
        %3293 = vmatprep.subr.bf16.mxu0 0
        %3294 = vmatpush1.bf16.msra.mxu0 %v3274
        %3295 = vmatprep.subr.bf16.mxu0 0
        %3296 = vmatpush1.bf16.msra.mxu0 %v3275
        %3297 = vmatprep.subr.bf16.mxu0 0
        %3298 = vmatpush1.bf16.msra.mxu0 %v3276
        %3299 = vmatprep.subr.bf16.mxu0 0
        %3300 = vmatpush1.bf16.msra.mxu0 %v3277
        %3301 = vmatprep.subr.bf16.mxu0 0
        %3302 = vmatpush1.bf16.msra.mxu0 %v3278
        %3303 = vmatprep.subr.bf16.mxu0 0
        %3304 = vmatpush1.bf16.msra.mxu0 0
        %3305 = vmatprep.subr.bf16.mxu0 0
        %3306 = vmatpush1.bf16.msra.mxu0 0
        %3307 = vmatprep.subr.bf16.mxu0 0
        %3308 = vmatpush1.bf16.msra.mxu0 0
        %3309 = vmatprep.subr.bf16.mxu0 0
        %3310 = vmatpush1.bf16.msra.mxu0 0
        %3311 = vmatprep.subr.bf16.mxu0 0
        %3312 = vmatpush1.bf16.msra.mxu0 0
        %3313 = vmatprep.subr.bf16.mxu0 0
        %3314 = vmatpush1.bf16.msra.mxu0 0
        %3315 = vmatprep.subr.bf16.mxu0 0
        %3316 = vmatpush1.bf16.msra.mxu0 0
        %3317 = vmatprep.subr.bf16.mxu0 0
        %3318 = vmatpush1.bf16.msra.mxu0 0
        %3319 = vmatprep.mubr.bf16.mxu0 0
        %3320 = vmatmul.mubr.bf16.gmra.mrb[0].mxu0 %v3231
        %v3321 = vpop.f32.mrb[0].mxu0
        %v3322 = vadd.f32 0.0, %v3321
        %v3323 = vpop.f32.mrb[0].mxu0
        %v3324 = vpop.f32.mrb[0].mxu0
        %v3325 = vadd.f32 0.0, %v3324
        %v3326 = vpop.f32.mrb[0].mxu0
        %3327 = vmatprep.mubr.bf16.mxu0 0
        %3328 = vmatmul.mubr.bf16.gmra.mrb[0].mxu0 %v3232
        %v3329 = vpop.f32.mrb[0].mxu0
        %v3330 = vadd.f32 0.0, %v3329
        %v3331 = vpop.f32.mrb[0].mxu0
        %v3332 = vpop.f32.mrb[0].mxu0
        %v3333 = vadd.f32 0.0, %v3332
        %v3334 = vpop.f32.mrb[0].mxu0
        %3335 = vmatprep.mubr.bf16.mxu0 0
        %3336 = vmatmul.mubr.bf16.gmra.mrb[0].mxu0 %v3233
        %v3337 = vpop.f32.mrb[0].mxu0
        %v3338 = vadd.f32 0.0, %v3337
        %v3339 = vpop.f32.mrb[0].mxu0
        %v3340 = vpop.f32.mrb[0].mxu0
        %v3341 = vadd.f32 0.0, %v3340
        %v3342 = vpop.f32.mrb[0].mxu0
        %3343 = vmatprep.mubr.bf16.mxu0 0
        %3344 = vmatmul.mubr.bf16.gmra.mrb[0].mxu0 %v3234
        %v3345 = vpop.f32.mrb[0].mxu0
        %v3346 = vadd.f32 0.0, %v3345
        %v3347 = vpop.f32.mrb[0].mxu0
        %v3348 = vpop.f32.mrb[0].mxu0
        %v3349 = vadd.f32 0.0, %v3348
        %v3350 = vpop.f32.mrb[0].mxu0
        %3351 = vdwg.mxu0
        %v3360 = vunpack.c.l.b16 %v3022
        %v3361 = vunpack.c.l.b16 %v3023
        %v3362 = vunpack.c.l.b16 %v3024
        %v3363 = vunpack.c.l.b16 %v3025
        %v3364 = vunpack.c.l.b16 %v3026
        %v3365 = vunpack.c.l.b16 %v3027
        %v3366 = vunpack.c.l.b16 %v3028
        %v3367 = vunpack.c.l.b16 %v3029
        %v3368 = vpack.c.b16 %v3361, %v3360
        %v3369 = vpack.c.b16 %v3363, %v3362
        %v3370 = vpack.c.b16 %v3365, %v3364
        %v3371 = vpack.c.b16 %v3367, %v3366
        %v3392 = vunpack.c.l.b16 %v3030
        %v3393 = vunpack.c.l.b16 %v3031
        %v3394 = vunpack.c.l.b16 %v3032
        %v3395 = vunpack.c.l.b16 %v3033
        %v3396 = vunpack.c.l.b16 %v3034
        %v3397 = vunpack.c.l.b16 %v3035
        %v3398 = vunpack.c.l.b16 %v3036
        %v3399 = vunpack.c.l.b16 %v3037
        %v3400 = vunpack.c.l.b16 %v3038
        %v3401 = vunpack.c.l.b16 %v3039
        %v3402 = vunpack.c.l.b16 %v3040
        %v3403 = vunpack.c.l.b16 %v3041
        %v3404 = vunpack.c.l.b16 %v3042
        %v3405 = vunpack.c.l.b16 %v3043
        %v3406 = vunpack.c.l.b16 %v3044
        %v3407 = vunpack.c.l.b16 %v3045
        %v3408 = vpack.c.b16 %v3393, %v3392
        %v3409 = vpack.c.b16 %v3395, %v3394
        %v3410 = vpack.c.b16 %v3397, %v3396
        %v3411 = vpack.c.b16 %v3399, %v3398
        %v3412 = vpack.c.b16 %v3401, %v3400
        %v3413 = vpack.c.b16 %v3403, %v3402
        %v3414 = vpack.c.b16 %v3405, %v3404
        %v3415 = vpack.c.b16 %v3407, %v3406
        %3424 = vmatprep.subr.bf16.mxu0 0
        %3425 = vmatpush1.bf16.msra.mxu0 %v3408
        %3426 = vmatprep.subr.bf16.mxu0 0
        %3427 = vmatpush1.bf16.msra.mxu0 %v3409
        %3428 = vmatprep.subr.bf16.mxu0 0
        %3429 = vmatpush1.bf16.msra.mxu0 %v3410
        %3430 = vmatprep.subr.bf16.mxu0 0
        %3431 = vmatpush1.bf16.msra.mxu0 %v3411
        %3432 = vmatprep.subr.bf16.mxu0 0
        %3433 = vmatpush1.bf16.msra.mxu0 %v3412
        %3434 = vmatprep.subr.bf16.mxu0 0
        %3435 = vmatpush1.bf16.msra.mxu0 %v3413
        %3436 = vmatprep.subr.bf16.mxu0 0
        %3437 = vmatpush1.bf16.msra.mxu0 %v3414
        %3438 = vmatprep.subr.bf16.mxu0 0
        %3439 = vmatpush1.bf16.msra.mxu0 %v3415
        %3440 = vmatprep.subr.bf16.mxu0 0
        %3441 = vmatpush1.bf16.msra.mxu0 0
        %3442 = vmatprep.subr.bf16.mxu0 0
        %3443 = vmatpush1.bf16.msra.mxu0 0
        %3444 = vmatprep.subr.bf16.mxu0 0
        %3445 = vmatpush1.bf16.msra.mxu0 0
        %3446 = vmatprep.subr.bf16.mxu0 0
        %3447 = vmatpush1.bf16.msra.mxu0 0
        %3448 = vmatprep.subr.bf16.mxu0 0
        %3449 = vmatpush1.bf16.msra.mxu0 0
        %3450 = vmatprep.subr.bf16.mxu0 0
        %3451 = vmatpush1.bf16.msra.mxu0 0
        %3452 = vmatprep.subr.bf16.mxu0 0
        %3453 = vmatpush1.bf16.msra.mxu0 0
        %3454 = vmatprep.subr.bf16.mxu0 0
        %3455 = vmatpush1.bf16.msra.mxu0 0
        %3456 = vmatprep.mubr.bf16.mxu0 0
        %3457 = vmatmul.mubr.bf16.gmra.mrb[0].mxu0 %v3368
        %v3458 = vpop.f32.mrb[0].mxu0
        %v3459 = vadd.f32 %v3322, %v3458
        %v3460 = vpop.f32.mrb[0].mxu0
        %v3461 = vpop.f32.mrb[0].mxu0
        %v3462 = vadd.f32 %v3325, %v3461
        %v3463 = vpop.f32.mrb[0].mxu0
        %3464 = vmatprep.mubr.bf16.mxu0 0
        %3465 = vmatmul.mubr.bf16.gmra.mrb[0].mxu0 %v3369
        %v3466 = vpop.f32.mrb[0].mxu0
        %v3467 = vadd.f32 %v3330, %v3466
        %v3468 = vpop.f32.mrb[0].mxu0
        %v3469 = vpop.f32.mrb[0].mxu0
        %v3470 = vadd.f32 %v3333, %v3469
        %v3471 = vpop.f32.mrb[0].mxu0
        %3472 = vmatprep.mubr.bf16.mxu0 0
        %3473 = vmatmul.mubr.bf16.gmra.mrb[0].mxu0 %v3370
        %v3474 = vpop.f32.mrb[0].mxu0
        %v3475 = vadd.f32 %v3338, %v3474
        %v3476 = vpop.f32.mrb[0].mxu0
        %v3477 = vpop.f32.mrb[0].mxu0
        %v3478 = vadd.f32 %v3341, %v3477
        %v3479 = vpop.f32.mrb[0].mxu0
        %3480 = vmatprep.mubr.bf16.mxu0 0
        %3481 = vmatmul.mubr.bf16.gmra.mrb[0].mxu0 %v3371
        %v3482 = vpop.f32.mrb[0].mxu0
        %v3483 = vadd.f32 %v3346, %v3482
        %v3484 = vpop.f32.mrb[0].mxu0
        %v3485 = vpop.f32.mrb[0].mxu0
        %v3486 = vadd.f32 %v3349, %v3485
        %v3487 = vpop.f32.mrb[0].mxu0
        %3488 = vdwg.mxu0
        %v3489 = vld [vmem:[#allocation3] sm:$0x1e]
        %v3490 = vld [vmem:[#allocation3 + $0x8] sm:$0x1e]
        %v3491 = vld [vmem:[#allocation3 + $0x10] sm:$0x1e]
        %v3492 = vld [vmem:[#allocation3 + $0x18] sm:$0x1e]
        %v3493 = vld [vmem:[#allocation3 + $0x20] sm:$0x1e]
        %v3494 = vld [vmem:[#allocation3 + $0x28] sm:$0x1e]
        %v3495 = vld [vmem:[#allocation3 + $0x30] sm:$0x1e]
        %v3496 = vld [vmem:[#allocation3 + $0x38] sm:$0x1e]
        %v3505 = vunpack.c.l.b16 %v3489
        %v3506 = vunpack.c.h.b16 %v3489
        %v3507 = vunpack.c.l.b16 %v3490
        %v3508 = vunpack.c.h.b16 %v3490
        %v3509 = vunpack.c.l.b16 %v3491
        %v3510 = vunpack.c.h.b16 %v3491
        %v3511 = vunpack.c.l.b16 %v3492
        %v3512 = vunpack.c.h.b16 %v3492
        %v3513 = vunpack.c.l.b16 %v3493
        %v3514 = vunpack.c.h.b16 %v3493
        %v3515 = vunpack.c.l.b16 %v3494
        %v3516 = vunpack.c.h.b16 %v3494
        %v3517 = vunpack.c.l.b16 %v3495
        %v3518 = vunpack.c.h.b16 %v3495
        %v3519 = vunpack.c.l.b16 %v3496
        %v3520 = vunpack.c.h.b16 %v3496
        %v3521 = vpack.c.b16 %v3505, %v3505
        %v3522 = vpack.c.b16 %v3506, %v3506
        %v3523 = vpack.c.b16 %v3507, %v3507
        %v3524 = vpack.c.b16 %v3508, %v3508
        %v3525 = vpack.c.b16 %v3509, %v3509
        %v3526 = vpack.c.b16 %v3510, %v3510
        %v3527 = vpack.c.b16 %v3511, %v3511
        %v3528 = vpack.c.b16 %v3512, %v3512
        %v3529 = vpack.c.b16 %v3513, %v3513
        %v3530 = vpack.c.b16 %v3514, %v3514
        %v3531 = vpack.c.b16 %v3515, %v3515
        %v3532 = vpack.c.b16 %v3516, %v3516
        %v3533 = vpack.c.b16 %v3517, %v3517
        %v3534 = vpack.c.b16 %v3518, %v3518
        %v3535 = vpack.c.b16 %v3519, %v3519
        %v3536 = vpack.c.b16 %v3520, %v3520
        %v3537 = vrot.slane %v3521, 5
        %v3538 = vrot.slane %v3537, 4
        %v3539 = vrot.slane %v3522, 5
        %v3540 = vsel %vm1198, %v3538, %v3539
        %v3541 = vrot.slane %v3523, 5
        %v3542 = vrot.slane %v3541, 4
        %v3543 = vrot.slane %v3524, 5
        %v3544 = vsel %vm1198, %v3542, %v3543
        %v3545 = vrot.slane %v3525, 5
        %v3546 = vrot.slane %v3545, 4
        %v3547 = vrot.slane %v3526, 5
        %v3548 = vsel %vm1198, %v3546, %v3547
        %v3549 = vrot.slane %v3527, 5
        %v3550 = vrot.slane %v3549, 4
        %v3551 = vrot.slane %v3528, 5
        %v3552 = vsel %vm1198, %v3550, %v3551
        %v3553 = vrot.slane %v3529, 5
        %v3554 = vrot.slane %v3553, 4
        %v3555 = vrot.slane %v3530, 5
        %v3556 = vsel %vm1198, %v3554, %v3555
        %v3557 = vrot.slane %v3531, 5
        %v3558 = vrot.slane %v3557, 4
        %v3559 = vrot.slane %v3532, 5
        %v3560 = vsel %vm1198, %v3558, %v3559
        %v3561 = vrot.slane %v3533, 5
        %v3562 = vrot.slane %v3561, 4
        %v3563 = vrot.slane %v3534, 5
        %v3564 = vsel %vm1198, %v3562, %v3563
        %v3565 = vrot.slane %v3535, 5
        %v3566 = vrot.slane %v3565, 4
        %v3567 = vrot.slane %v3536, 5
        %v3568 = vsel %vm1198, %v3566, %v3567
        %s3569 = scalar_lea.vmem [#allocation12], 128
        %v3570 = vld [vmem:[%s3569] sm:$0xf]
        %v3571 = vld [vmem:[%s3569 + $0x4] sm:$0xf]
        %v3572 = vld [vmem:[%s3569 + $0x8] sm:$0xf]
        %v3573 = vld [vmem:[%s3569 + $0xc] sm:$0xf]
        %v3574 = vld [vmem:[%s3569 + $0x10] sm:$0xf]
        %v3575 = vld [vmem:[%s3569 + $0x14] sm:$0xf]
        %v3576 = vld [vmem:[%s3569 + $0x18] sm:$0xf]
        %v3577 = vld [vmem:[%s3569 + $0x1c] sm:$0xf]
        %v3578 = vld [vmem:[%s3569 + $0x20] sm:$0xf]
        %v3579 = vld [vmem:[%s3569 + $0x24] sm:$0xf]
        %v3580 = vld [vmem:[%s3569 + $0x28] sm:$0xf]
        %v3581 = vld [vmem:[%s3569 + $0x2c] sm:$0xf]
        %v3582 = vld [vmem:[%s3569 + $0x30] sm:$0xf]
        %v3583 = vld [vmem:[%s3569 + $0x34] sm:$0xf]
        %v3584 = vld [vmem:[%s3569 + $0x38] sm:$0xf]
        %v3585 = vld [vmem:[%s3569 + $0x3c] sm:$0xf]
        %v3586 = vunpack.c.l.b16 %v3540
        %v3587 = vunpack.c.l.b16 %v3544
        %v3588 = vunpack.c.l.b16 %v3548
        %v3589 = vunpack.c.l.b16 %v3552
        %v3590 = vunpack.c.l.b16 %v3556
        %v3591 = vunpack.c.l.b16 %v3560
        %v3592 = vunpack.c.l.b16 %v3564
        %v3593 = vunpack.c.l.b16 %v3568
        %v3594 = vpack.c.b16 %v3587, %v3586
        %v3595 = vpack.c.b16 %v3589, %v3588
        %v3596 = vpack.c.b16 %v3591, %v3590
        %v3597 = vpack.c.b16 %v3593, %v3592
        %v3618 = vunpack.c.l.b16 %v3570
        %v3619 = vunpack.c.l.b16 %v3571
        %v3620 = vunpack.c.l.b16 %v3572
        %v3621 = vunpack.c.l.b16 %v3573
        %v3622 = vunpack.c.l.b16 %v3574
        %v3623 = vunpack.c.l.b16 %v3575
        %v3624 = vunpack.c.l.b16 %v3576
        %v3625 = vunpack.c.l.b16 %v3577
        %v3626 = vunpack.c.l.b16 %v3578
        %v3627 = vunpack.c.l.b16 %v3579
        %v3628 = vunpack.c.l.b16 %v3580
        %v3629 = vunpack.c.l.b16 %v3581
        %v3630 = vunpack.c.l.b16 %v3582
        %v3631 = vunpack.c.l.b16 %v3583
        %v3632 = vunpack.c.l.b16 %v3584
        %v3633 = vunpack.c.l.b16 %v3585
        %v3634 = vpack.c.b16 %v3619, %v3618
        %v3635 = vpack.c.b16 %v3621, %v3620
        %v3636 = vpack.c.b16 %v3623, %v3622
        %v3637 = vpack.c.b16 %v3625, %v3624
        %v3638 = vpack.c.b16 %v3627, %v3626
        %v3639 = vpack.c.b16 %v3629, %v3628
        %v3640 = vpack.c.b16 %v3631, %v3630
        %v3641 = vpack.c.b16 %v3633, %v3632
        %3650 = vmatprep.subr.bf16.mxu0 0
        %3651 = vmatpush1.bf16.msra.mxu0 %v3634
        %3652 = vmatprep.subr.bf16.mxu0 0
        %3653 = vmatpush1.bf16.msra.mxu0 %v3635
        %3654 = vmatprep.subr.bf16.mxu0 0
        %3655 = vmatpush1.bf16.msra.mxu0 %v3636
        %3656 = vmatprep.subr.bf16.mxu0 0
        %3657 = vmatpush1.bf16.msra.mxu0 %v3637
        %3658 = vmatprep.subr.bf16.mxu0 0
        %3659 = vmatpush1.bf16.msra.mxu0 %v3638
        %3660 = vmatprep.subr.bf16.mxu0 0
        %3661 = vmatpush1.bf16.msra.mxu0 %v3639
        %3662 = vmatprep.subr.bf16.mxu0 0
        %3663 = vmatpush1.bf16.msra.mxu0 %v3640
        %3664 = vmatprep.subr.bf16.mxu0 0
        %3665 = vmatpush1.bf16.msra.mxu0 %v3641
        %3666 = vmatprep.subr.bf16.mxu0 0
        %3667 = vmatpush1.bf16.msra.mxu0 0
        %3668 = vmatprep.subr.bf16.mxu0 0
        %3669 = vmatpush1.bf16.msra.mxu0 0
        %3670 = vmatprep.subr.bf16.mxu0 0
        %3671 = vmatpush1.bf16.msra.mxu0 0
        %3672 = vmatprep.subr.bf16.mxu0 0
        %3673 = vmatpush1.bf16.msra.mxu0 0
        %3674 = vmatprep.subr.bf16.mxu0 0
        %3675 = vmatpush1.bf16.msra.mxu0 0
        %3676 = vmatprep.subr.bf16.mxu0 0
        %3677 = vmatpush1.bf16.msra.mxu0 0
        %3678 = vmatprep.subr.bf16.mxu0 0
        %3679 = vmatpush1.bf16.msra.mxu0 0
        %3680 = vmatprep.subr.bf16.mxu0 0
        %3681 = vmatpush1.bf16.msra.mxu0 0
        %3682 = vmatprep.mubr.bf16.mxu0 0
        %3683 = vmatmul.mubr.bf16.gmra.mrb[0].mxu0 %v3594
        %v3684 = vpop.f32.mrb[0].mxu0
        %v3685 = vadd.f32 0.0, %v3684
        %v3686 = vpop.f32.mrb[0].mxu0
        %v3687 = vpop.f32.mrb[0].mxu0
        %v3688 = vadd.f32 0.0, %v3687
        %v3689 = vpop.f32.mrb[0].mxu0
        %3690 = vmatprep.mubr.bf16.mxu0 0
        %3691 = vmatmul.mubr.bf16.gmra.mrb[0].mxu0 %v3595
        %v3692 = vpop.f32.mrb[0].mxu0
        %v3693 = vadd.f32 0.0, %v3692
        %v3694 = vpop.f32.mrb[0].mxu0
        %v3695 = vpop.f32.mrb[0].mxu0
        %v3696 = vadd.f32 0.0, %v3695
        %v3697 = vpop.f32.mrb[0].mxu0
        %3698 = vmatprep.mubr.bf16.mxu0 0
        %3699 = vmatmul.mubr.bf16.gmra.mrb[0].mxu0 %v3596
        %v3700 = vpop.f32.mrb[0].mxu0
        %v3701 = vadd.f32 0.0, %v3700
        %v3702 = vpop.f32.mrb[0].mxu0
        %v3703 = vpop.f32.mrb[0].mxu0
        %v3704 = vadd.f32 0.0, %v3703
        %v3705 = vpop.f32.mrb[0].mxu0
        %3706 = vmatprep.mubr.bf16.mxu0 0
        %3707 = vmatmul.mubr.bf16.gmra.mrb[0].mxu0 %v3597
        %v3708 = vpop.f32.mrb[0].mxu0
        %v3709 = vadd.f32 0.0, %v3708
        %v3710 = vpop.f32.mrb[0].mxu0
        %v3711 = vpop.f32.mrb[0].mxu0
        %v3712 = vadd.f32 0.0, %v3711
        %v3713 = vpop.f32.mrb[0].mxu0
        %3714 = vdwg.mxu0
        %v3715 = vadd.f32 %v3459, %v3685
        %v3716 = vadd.f32 %v3462, %v3688
        %v3717 = vadd.f32 %v3467, %v3693
        %v3718 = vadd.f32 %v3470, %v3696
        %v3719 = vadd.f32 %v3475, %v3701
        %v3720 = vadd.f32 %v3478, %v3704
        %v3721 = vadd.f32 %v3483, %v3709
        %v3722 = vadd.f32 %v3486, %v3712
        %v3723 = vld [vmem:[%s2993] sm:$0xf]
        %v3724 = vld [vmem:[%s2993 + $0x8] sm:$0xf]
        %v3725 = vld [vmem:[%s2993 + $0x10] sm:$0xf]
        %v3726 = vld [vmem:[%s2993 + $0x18] sm:$0xf]
        %v3727 = vld [vmem:[%s2993 + $0x20] sm:$0xf]
        %v3728 = vld [vmem:[%s2993 + $0x28] sm:$0xf]
        %v3729 = vld [vmem:[%s2993 + $0x30] sm:$0xf]
        %v3730 = vld [vmem:[%s2993 + $0x38] sm:$0xf]
        %s3731 = scalar_lea.vmem [#allocation12], 192
        %v3732 = vld [vmem:[%s3731] sm:$0xf]
        %v3733 = vld [vmem:[%s3731 + $0x4] sm:$0xf]
        %v3734 = vld [vmem:[%s3731 + $0x8] sm:$0xf]
        %v3735 = vld [vmem:[%s3731 + $0xc] sm:$0xf]
        %v3736 = vld [vmem:[%s3731 + $0x10] sm:$0xf]
        %v3737 = vld [vmem:[%s3731 + $0x14] sm:$0xf]
        %v3738 = vld [vmem:[%s3731 + $0x18] sm:$0xf]
        %v3739 = vld [vmem:[%s3731 + $0x1c] sm:$0xf]
        %v3740 = vld [vmem:[%s3731 + $0x20] sm:$0xf]
        %v3741 = vld [vmem:[%s3731 + $0x24] sm:$0xf]
        %v3742 = vld [vmem:[%s3731 + $0x28] sm:$0xf]
        %v3743 = vld [vmem:[%s3731 + $0x2c] sm:$0xf]
        %v3744 = vld [vmem:[%s3731 + $0x30] sm:$0xf]
        %v3745 = vld [vmem:[%s3731 + $0x34] sm:$0xf]
        %v3746 = vld [vmem:[%s3731 + $0x38] sm:$0xf]
        %v3747 = vld [vmem:[%s3731 + $0x3c] sm:$0xf]
        %v3756 = vunpack.c.l.b16 %v3723
        %v3757 = vunpack.c.l.b16 %v3724
        %v3758 = vunpack.c.l.b16 %v3725
        %v3759 = vunpack.c.l.b16 %v3726
        %v3760 = vunpack.c.l.b16 %v3727
        %v3761 = vunpack.c.l.b16 %v3728
        %v3762 = vunpack.c.l.b16 %v3729
        %v3763 = vunpack.c.l.b16 %v3730
        %v3764 = vpack.c.b16 %v3757, %v3756
        %v3765 = vpack.c.b16 %v3759, %v3758
        %v3766 = vpack.c.b16 %v3761, %v3760
        %v3767 = vpack.c.b16 %v3763, %v3762
        %v3788 = vunpack.c.l.b16 %v3732
        %v3789 = vunpack.c.l.b16 %v3733
        %v3790 = vunpack.c.l.b16 %v3734
        %v3791 = vunpack.c.l.b16 %v3735
        %v3792 = vunpack.c.l.b16 %v3736
        %v3793 = vunpack.c.l.b16 %v3737
        %v3794 = vunpack.c.l.b16 %v3738
        %v3795 = vunpack.c.l.b16 %v3739
        %v3796 = vunpack.c.l.b16 %v3740
        %v3797 = vunpack.c.l.b16 %v3741
        %v3798 = vunpack.c.l.b16 %v3742
        %v3799 = vunpack.c.l.b16 %v3743
        %v3800 = vunpack.c.l.b16 %v3744
        %v3801 = vunpack.c.l.b16 %v3745
        %v3802 = vunpack.c.l.b16 %v3746
        %v3803 = vunpack.c.l.b16 %v3747
        %v3804 = vpack.c.b16 %v3789, %v3788
        %v3805 = vpack.c.b16 %v3791, %v3790
        %v3806 = vpack.c.b16 %v3793, %v3792
        %v3807 = vpack.c.b16 %v3795, %v3794
        %v3808 = vpack.c.b16 %v3797, %v3796
        %v3809 = vpack.c.b16 %v3799, %v3798
        %v3810 = vpack.c.b16 %v3801, %v3800
        %v3811 = vpack.c.b16 %v3803, %v3802
        %3820 = vmatprep.subr.bf16.mxu0 0
        %3821 = vmatpush1.bf16.msra.mxu0 %v3804
        %3822 = vmatprep.subr.bf16.mxu0 0
        %3823 = vmatpush1.bf16.msra.mxu0 %v3805
        %3824 = vmatprep.subr.bf16.mxu0 0
        %3825 = vmatpush1.bf16.msra.mxu0 %v3806
        %3826 = vmatprep.subr.bf16.mxu0 0
        %3827 = vmatpush1.bf16.msra.mxu0 %v3807
        %3828 = vmatprep.subr.bf16.mxu0 0
        %3829 = vmatpush1.bf16.msra.mxu0 %v3808
        %3830 = vmatprep.subr.bf16.mxu0 0
        %3831 = vmatpush1.bf16.msra.mxu0 %v3809
        %3832 = vmatprep.subr.bf16.mxu0 0
        %3833 = vmatpush1.bf16.msra.mxu0 %v3810
        %3834 = vmatprep.subr.bf16.mxu0 0
        %3835 = vmatpush1.bf16.msra.mxu0 %v3811
        %3836 = vmatprep.subr.bf16.mxu0 0
        %3837 = vmatpush1.bf16.msra.mxu0 0
        %3838 = vmatprep.subr.bf16.mxu0 0
        %3839 = vmatpush1.bf16.msra.mxu0 0
        %3840 = vmatprep.subr.bf16.mxu0 0
        %3841 = vmatpush1.bf16.msra.mxu0 0
        %3842 = vmatprep.subr.bf16.mxu0 0
        %3843 = vmatpush1.bf16.msra.mxu0 0
        %3844 = vmatprep.subr.bf16.mxu0 0
        %3845 = vmatpush1.bf16.msra.mxu0 0
        %3846 = vmatprep.subr.bf16.mxu0 0
        %3847 = vmatpush1.bf16.msra.mxu0 0
        %3848 = vmatprep.subr.bf16.mxu0 0
        %3849 = vmatpush1.bf16.msra.mxu0 0
        %3850 = vmatprep.subr.bf16.mxu0 0
        %3851 = vmatpush1.bf16.msra.mxu0 0
        %3852 = vmatprep.mubr.bf16.mxu0 0
        %3853 = vmatmul.mubr.bf16.gmra.mrb[0].mxu0 %v3764
        %v3854 = vpop.f32.mrb[0].mxu0
        %v3855 = vadd.f32 0.0, %v3854
        %v3856 = vpop.f32.mrb[0].mxu0
        %v3857 = vpop.f32.mrb[0].mxu0
        %v3858 = vadd.f32 0.0, %v3857
        %v3859 = vpop.f32.mrb[0].mxu0
        %3860 = vmatprep.mubr.bf16.mxu0 0
        %3861 = vmatmul.mubr.bf16.gmra.mrb[0].mxu0 %v3765
        %v3862 = vpop.f32.mrb[0].mxu0
        %v3863 = vadd.f32 0.0, %v3862
        %v3864 = vpop.f32.mrb[0].mxu0
        %v3865 = vpop.f32.mrb[0].mxu0
        %v3866 = vadd.f32 0.0, %v3865
        %v3867 = vpop.f32.mrb[0].mxu0
        %3868 = vmatprep.mubr.bf16.mxu0 0
        %3869 = vmatmul.mubr.bf16.gmra.mrb[0].mxu0 %v3766
        %v3870 = vpop.f32.mrb[0].mxu0
        %v3871 = vadd.f32 0.0, %v3870
        %v3872 = vpop.f32.mrb[0].mxu0
        %v3873 = vpop.f32.mrb[0].mxu0
        %v3874 = vadd.f32 0.0, %v3873
        %v3875 = vpop.f32.mrb[0].mxu0
        %3876 = vmatprep.mubr.bf16.mxu0 0
        %3877 = vmatmul.mubr.bf16.gmra.mrb[0].mxu0 %v3767
        %v3878 = vpop.f32.mrb[0].mxu0
        %v3879 = vadd.f32 0.0, %v3878
        %v3880 = vpop.f32.mrb[0].mxu0
        %v3881 = vpop.f32.mrb[0].mxu0
        %v3882 = vadd.f32 0.0, %v3881
        %v3883 = vpop.f32.mrb[0].mxu0
        %3884 = vdwg.mxu0
        %v3885 = vadd.f32 %v3715, %v3855
        %v3886 = vadd.f32 %v3716, %v3858
        %v3887 = vadd.f32 %v3717, %v3863
        %v3888 = vadd.f32 %v3718, %v3866
        %v3889 = vadd.f32 %v3719, %v3871
        %v3890 = vadd.f32 %v3720, %v3874
        %v3891 = vadd.f32 %v3721, %v3879
        %v3892 = vadd.f32 %v3722, %v3882
        %v3893 = vld [vmem:[%s2993] sm:$0x1f]
        %v3894 = vld [vmem:[%s2993 + $0x8] sm:$0x1f]
        %v3895 = vld [vmem:[%s2993 + $0x10] sm:$0x1f]
        %v3896 = vld [vmem:[%s2993 + $0x18] sm:$0x1f]
        %v3897 = vld [vmem:[%s2993 + $0x20] sm:$0x1f]
        %v3898 = vld [vmem:[%s2993 + $0x28] sm:$0x1f]
        %v3899 = vld [vmem:[%s2993 + $0x30] sm:$0x1f]
        %v3900 = vld [vmem:[%s2993 + $0x38] sm:$0x1f]
        %v3909 = vunpack.c.l.b16 %v3893
        %v3910 = vunpack.c.h.b16 %v3893
        %v3911 = vunpack.c.l.b16 %v3894
        %v3912 = vunpack.c.h.b16 %v3894
        %v3913 = vunpack.c.l.b16 %v3895
        %v3914 = vunpack.c.h.b16 %v3895
        %v3915 = vunpack.c.l.b16 %v3896
        %v3916 = vunpack.c.h.b16 %v3896
        %v3917 = vunpack.c.l.b16 %v3897
        %v3918 = vunpack.c.h.b16 %v3897
        %v3919 = vunpack.c.l.b16 %v3898
        %v3920 = vunpack.c.h.b16 %v3898
        %v3921 = vunpack.c.l.b16 %v3899
        %v3922 = vunpack.c.h.b16 %v3899
        %v3923 = vunpack.c.l.b16 %v3900
        %v3924 = vunpack.c.h.b16 %v3900
        %v3925 = vpack.c.b16 %v3909, %v3909
        %v3926 = vpack.c.b16 %v3910, %v3910
        %v3927 = vpack.c.b16 %v3911, %v3911
        %v3928 = vpack.c.b16 %v3912, %v3912
        %v3929 = vpack.c.b16 %v3913, %v3913
        %v3930 = vpack.c.b16 %v3914, %v3914
        %v3931 = vpack.c.b16 %v3915, %v3915
        %v3932 = vpack.c.b16 %v3916, %v3916
        %v3933 = vpack.c.b16 %v3917, %v3917
        %v3934 = vpack.c.b16 %v3918, %v3918
        %v3935 = vpack.c.b16 %v3919, %v3919
        %v3936 = vpack.c.b16 %v3920, %v3920
        %v3937 = vpack.c.b16 %v3921, %v3921
        %v3938 = vpack.c.b16 %v3922, %v3922
        %v3939 = vpack.c.b16 %v3923, %v3923
        %v3940 = vpack.c.b16 %v3924, %v3924
        %v3942 = vshrl.u32 %v3925, 16
        %v3944 = vrot.slane %v3942, 4
        %v3945 = vshll.u32 %v3925, 16
        %v3947 = vrot.slane %v3945, 5
        %v3948 = vor.u32 %v3944, %v3947
        %v3949 = vrot.slane %v3948, 4
        %v3951 = vshll.u32 %v3926, 16
        %v3953 = vrot.slane %v3951, 5
        %v3954 = vsel %vm752, %v3949, %v3953
        %v3956 = vshrl.u32 %v3927, 16
        %v3958 = vrot.slane %v3956, 4
        %v3959 = vshll.u32 %v3927, 16
        %v3961 = vrot.slane %v3959, 5
        %v3962 = vor.u32 %v3958, %v3961
        %v3963 = vrot.slane %v3962, 4
        %v3965 = vshll.u32 %v3928, 16
        %v3967 = vrot.slane %v3965, 5
        %v3968 = vsel %vm752, %v3963, %v3967
        %v3970 = vshrl.u32 %v3929, 16
        %v3972 = vrot.slane %v3970, 4
        %v3973 = vshll.u32 %v3929, 16
        %v3975 = vrot.slane %v3973, 5
        %v3976 = vor.u32 %v3972, %v3975
        %v3977 = vrot.slane %v3976, 4
        %v3979 = vshll.u32 %v3930, 16
        %v3981 = vrot.slane %v3979, 5
        %v3982 = vsel %vm752, %v3977, %v3981
        %v3984 = vshrl.u32 %v3931, 16
        %v3986 = vrot.slane %v3984, 4
        %v3987 = vshll.u32 %v3931, 16
        %v3989 = vrot.slane %v3987, 5
        %v3990 = vor.u32 %v3986, %v3989
        %v3991 = vrot.slane %v3990, 4
        %v3993 = vshll.u32 %v3932, 16
        %v3995 = vrot.slane %v3993, 5
        %v3996 = vsel %vm752, %v3991, %v3995
        %v3998 = vshrl.u32 %v3933, 16
        %v4000 = vrot.slane %v3998, 4
        %v4001 = vshll.u32 %v3933, 16
        %v4003 = vrot.slane %v4001, 5
        %v4004 = vor.u32 %v4000, %v4003
        %v4005 = vrot.slane %v4004, 4
        %v4007 = vshll.u32 %v3934, 16
        %v4009 = vrot.slane %v4007, 5
        %v4010 = vsel %vm752, %v4005, %v4009
        %v4012 = vshrl.u32 %v3935, 16
        %v4014 = vrot.slane %v4012, 4
        %v4015 = vshll.u32 %v3935, 16
        %v4017 = vrot.slane %v4015, 5
        %v4018 = vor.u32 %v4014, %v4017
        %v4019 = vrot.slane %v4018, 4
        %v4021 = vshll.u32 %v3936, 16
        %v4023 = vrot.slane %v4021, 5
        %v4024 = vsel %vm752, %v4019, %v4023
        %v4026 = vshrl.u32 %v3937, 16
        %v4028 = vrot.slane %v4026, 4
        %v4029 = vshll.u32 %v3937, 16
        %v4031 = vrot.slane %v4029, 5
        %v4032 = vor.u32 %v4028, %v4031
        %v4033 = vrot.slane %v4032, 4
        %v4035 = vshll.u32 %v3938, 16
        %v4037 = vrot.slane %v4035, 5
        %v4038 = vsel %vm752, %v4033, %v4037
        %v4040 = vshrl.u32 %v3939, 16
        %v4042 = vrot.slane %v4040, 4
        %v4043 = vshll.u32 %v3939, 16
        %v4045 = vrot.slane %v4043, 5
        %v4046 = vor.u32 %v4042, %v4045
        %v4047 = vrot.slane %v4046, 4
        %v4049 = vshll.u32 %v3940, 16
        %v4051 = vrot.slane %v4049, 5
        %v4052 = vsel %vm752, %v4047, %v4051
        %s4053 = scalar_lea.vmem [#allocation12], 256
        %v4054 = vld [vmem:[%s4053] sm:$0xf]
        %v4055 = vld [vmem:[%s4053 + $0x4] sm:$0xf]
        %v4056 = vld [vmem:[%s4053 + $0x8] sm:$0xf]
        %v4057 = vld [vmem:[%s4053 + $0xc] sm:$0xf]
        %v4058 = vld [vmem:[%s4053 + $0x10] sm:$0xf]
        %v4059 = vld [vmem:[%s4053 + $0x14] sm:$0xf]
        %v4060 = vld [vmem:[%s4053 + $0x18] sm:$0xf]
        %v4061 = vld [vmem:[%s4053 + $0x1c] sm:$0xf]
        %v4062 = vld [vmem:[%s4053 + $0x20] sm:$0xf]
        %v4063 = vld [vmem:[%s4053 + $0x24] sm:$0xf]
        %v4064 = vld [vmem:[%s4053 + $0x28] sm:$0xf]
        %v4065 = vld [vmem:[%s4053 + $0x2c] sm:$0xf]
        %v4066 = vld [vmem:[%s4053 + $0x30] sm:$0xf]
        %v4067 = vld [vmem:[%s4053 + $0x34] sm:$0xf]
        %v4068 = vld [vmem:[%s4053 + $0x38] sm:$0xf]
        %v4069 = vld [vmem:[%s4053 + $0x3c] sm:$0xf]
        %v4070 = vunpack.c.l.b16 %v3954
        %v4071 = vunpack.c.l.b16 %v3968
        %v4072 = vunpack.c.l.b16 %v3982
        %v4073 = vunpack.c.l.b16 %v3996
        %v4074 = vunpack.c.l.b16 %v4010
        %v4075 = vunpack.c.l.b16 %v4024
        %v4076 = vunpack.c.l.b16 %v4038
        %v4077 = vunpack.c.l.b16 %v4052
        %v4078 = vpack.c.b16 %v4071, %v4070
        %v4079 = vpack.c.b16 %v4073, %v4072
        %v4080 = vpack.c.b16 %v4075, %v4074
        %v4081 = vpack.c.b16 %v4077, %v4076
        %v4102 = vunpack.c.l.b16 %v4054
        %v4103 = vunpack.c.l.b16 %v4055
        %v4104 = vunpack.c.l.b16 %v4056
        %v4105 = vunpack.c.l.b16 %v4057
        %v4106 = vunpack.c.l.b16 %v4058
        %v4107 = vunpack.c.l.b16 %v4059
        %v4108 = vunpack.c.l.b16 %v4060
        %v4109 = vunpack.c.l.b16 %v4061
        %v4110 = vunpack.c.l.b16 %v4062
        %v4111 = vunpack.c.l.b16 %v4063
        %v4112 = vunpack.c.l.b16 %v4064
        %v4113 = vunpack.c.l.b16 %v4065
        %v4114 = vunpack.c.l.b16 %v4066
        %v4115 = vunpack.c.l.b16 %v4067
        %v4116 = vunpack.c.l.b16 %v4068
        %v4117 = vunpack.c.l.b16 %v4069
        %v4118 = vpack.c.b16 %v4103, %v4102
        %v4119 = vpack.c.b16 %v4105, %v4104
        %v4120 = vpack.c.b16 %v4107, %v4106
        %v4121 = vpack.c.b16 %v4109, %v4108
        %v4122 = vpack.c.b16 %v4111, %v4110
        %v4123 = vpack.c.b16 %v4113, %v4112
        %v4124 = vpack.c.b16 %v4115, %v4114
        %v4125 = vpack.c.b16 %v4117, %v4116
        %4134 = vmatprep.subr.bf16.mxu0 0
        %4135 = vmatpush1.bf16.msra.mxu0 %v4118
        %4136 = vmatprep.subr.bf16.mxu0 0
        %4137 = vmatpush1.bf16.msra.mxu0 %v4119
        %4138 = vmatprep.subr.bf16.mxu0 0
        %4139 = vmatpush1.bf16.msra.mxu0 %v4120
        %4140 = vmatprep.subr.bf16.mxu0 0
        %4141 = vmatpush1.bf16.msra.mxu0 %v4121
        %4142 = vmatprep.subr.bf16.mxu0 0
        %4143 = vmatpush1.bf16.msra.mxu0 %v4122
        %4144 = vmatprep.subr.bf16.mxu0 0
        %4145 = vmatpush1.bf16.msra.mxu0 %v4123
        %4146 = vmatprep.subr.bf16.mxu0 0
        %4147 = vmatpush1.bf16.msra.mxu0 %v4124
        %4148 = vmatprep.subr.bf16.mxu0 0
        %4149 = vmatpush1.bf16.msra.mxu0 %v4125
        %4150 = vmatprep.subr.bf16.mxu0 0
        %4151 = vmatpush1.bf16.msra.mxu0 0
        %4152 = vmatprep.subr.bf16.mxu0 0
        %4153 = vmatpush1.bf16.msra.mxu0 0
        %4154 = vmatprep.subr.bf16.mxu0 0
        %4155 = vmatpush1.bf16.msra.mxu0 0
        %4156 = vmatprep.subr.bf16.mxu0 0
        %4157 = vmatpush1.bf16.msra.mxu0 0
        %4158 = vmatprep.subr.bf16.mxu0 0
        %4159 = vmatpush1.bf16.msra.mxu0 0
        %4160 = vmatprep.subr.bf16.mxu0 0
        %4161 = vmatpush1.bf16.msra.mxu0 0
        %4162 = vmatprep.subr.bf16.mxu0 0
        %4163 = vmatpush1.bf16.msra.mxu0 0
        %4164 = vmatprep.subr.bf16.mxu0 0
        %4165 = vmatpush1.bf16.msra.mxu0 0
        %4166 = vmatprep.mubr.bf16.mxu0 0
        %4167 = vmatmul.mubr.bf16.gmra.mrb[0].mxu0 %v4078
        %v4168 = vpop.f32.mrb[0].mxu0
        %v4169 = vadd.f32 0.0, %v4168
        %v4170 = vpop.f32.mrb[0].mxu0
        %v4171 = vpop.f32.mrb[0].mxu0
        %v4172 = vadd.f32 0.0, %v4171
        %v4173 = vpop.f32.mrb[0].mxu0
        %4174 = vmatprep.mubr.bf16.mxu0 0
        %4175 = vmatmul.mubr.bf16.gmra.mrb[0].mxu0 %v4079
        %v4176 = vpop.f32.mrb[0].mxu0
        %v4177 = vadd.f32 0.0, %v4176
        %v4178 = vpop.f32.mrb[0].mxu0
        %v4179 = vpop.f32.mrb[0].mxu0
        %v4180 = vadd.f32 0.0, %v4179
        %v4181 = vpop.f32.mrb[0].mxu0
        %4182 = vmatprep.mubr.bf16.mxu0 0
        %4183 = vmatmul.mubr.bf16.gmra.mrb[0].mxu0 %v4080
        %v4184 = vpop.f32.mrb[0].mxu0
        %v4185 = vadd.f32 0.0, %v4184
        %v4186 = vpop.f32.mrb[0].mxu0
        %v4187 = vpop.f32.mrb[0].mxu0
        %v4188 = vadd.f32 0.0, %v4187
        %v4189 = vpop.f32.mrb[0].mxu0
        %4190 = vmatprep.mubr.bf16.mxu0 0
        %4191 = vmatmul.mubr.bf16.gmra.mrb[0].mxu0 %v4081
        %v4192 = vpop.f32.mrb[0].mxu0
        %v4193 = vadd.f32 0.0, %v4192
        %v4194 = vpop.f32.mrb[0].mxu0
        %v4195 = vpop.f32.mrb[0].mxu0
        %v4196 = vadd.f32 0.0, %v4195
        %v4197 = vpop.f32.mrb[0].mxu0
        %4198 = vdwg.mxu0
        %v4199 = vadd.f32 %v3885, %v4169
        %v4200 = vadd.f32 %v3886, %v4172
        %v4201 = vadd.f32 %v3887, %v4177
        %v4202 = vadd.f32 %v3888, %v4180
        %v4203 = vadd.f32 %v3889, %v4185
        %v4204 = vadd.f32 %v3890, %v4188
        %v4205 = vadd.f32 %v3891, %v4193
        %v4206 = vadd.f32 %v3892, %v4196
        %v4207 = vld [vmem:[%s2993] sm:$0x1e]
        %v4208 = vld [vmem:[%s2993 + $0x8] sm:$0x1e]
        %v4209 = vld [vmem:[%s2993 + $0x10] sm:$0x1e]
        %v4210 = vld [vmem:[%s2993 + $0x18] sm:$0x1e]
        %v4211 = vld [vmem:[%s2993 + $0x20] sm:$0x1e]
        %v4212 = vld [vmem:[%s2993 + $0x28] sm:$0x1e]
        %v4213 = vld [vmem:[%s2993 + $0x30] sm:$0x1e]
        %v4214 = vld [vmem:[%s2993 + $0x38] sm:$0x1e]
        %v4223 = vunpack.c.l.b16 %v4207
        %v4224 = vunpack.c.h.b16 %v4207
        %v4225 = vunpack.c.l.b16 %v4208
        %v4226 = vunpack.c.h.b16 %v4208
        %v4227 = vunpack.c.l.b16 %v4209
        %v4228 = vunpack.c.h.b16 %v4209
        %v4229 = vunpack.c.l.b16 %v4210
        %v4230 = vunpack.c.h.b16 %v4210
        %v4231 = vunpack.c.l.b16 %v4211
        %v4232 = vunpack.c.h.b16 %v4211
        %v4233 = vunpack.c.l.b16 %v4212
        %v4234 = vunpack.c.h.b16 %v4212
        %v4235 = vunpack.c.l.b16 %v4213
        %v4236 = vunpack.c.h.b16 %v4213
        %v4237 = vunpack.c.l.b16 %v4214
        %v4238 = vunpack.c.h.b16 %v4214
        %v4239 = vpack.c.b16 %v4223, %v4223
        %v4240 = vpack.c.b16 %v4224, %v4224
        %v4241 = vpack.c.b16 %v4225, %v4225
        %v4242 = vpack.c.b16 %v4226, %v4226
        %v4243 = vpack.c.b16 %v4227, %v4227
        %v4244 = vpack.c.b16 %v4228, %v4228
        %v4245 = vpack.c.b16 %v4229, %v4229
        %v4246 = vpack.c.b16 %v4230, %v4230
        %v4247 = vpack.c.b16 %v4231, %v4231
        %v4248 = vpack.c.b16 %v4232, %v4232
        %v4249 = vpack.c.b16 %v4233, %v4233
        %v4250 = vpack.c.b16 %v4234, %v4234
        %v4251 = vpack.c.b16 %v4235, %v4235
        %v4252 = vpack.c.b16 %v4236, %v4236
        %v4253 = vpack.c.b16 %v4237, %v4237
        %v4254 = vpack.c.b16 %v4238, %v4238
        %v4255 = vrot.slane %v4239, 5
        %v4256 = vrot.slane %v4255, 4
        %v4257 = vrot.slane %v4240, 5
        %v4258 = vsel %vm1198, %v4256, %v4257
        %v4259 = vrot.slane %v4241, 5
        %v4260 = vrot.slane %v4259, 4
        %v4261 = vrot.slane %v4242, 5
        %v4262 = vsel %vm1198, %v4260, %v4261
        %v4263 = vrot.slane %v4243, 5
        %v4264 = vrot.slane %v4263, 4
        %v4265 = vrot.slane %v4244, 5
        %v4266 = vsel %vm1198, %v4264, %v4265
        %v4267 = vrot.slane %v4245, 5
        %v4268 = vrot.slane %v4267, 4
        %v4269 = vrot.slane %v4246, 5
        %v4270 = vsel %vm1198, %v4268, %v4269
        %v4271 = vrot.slane %v4247, 5
        %v4272 = vrot.slane %v4271, 4
        %v4273 = vrot.slane %v4248, 5
        %v4274 = vsel %vm1198, %v4272, %v4273
        %v4275 = vrot.slane %v4249, 5
        %v4276 = vrot.slane %v4275, 4
        %v4277 = vrot.slane %v4250, 5
        %v4278 = vsel %vm1198, %v4276, %v4277
        %v4279 = vrot.slane %v4251, 5
        %v4280 = vrot.slane %v4279, 4
        %v4281 = vrot.slane %v4252, 5
        %v4282 = vsel %vm1198, %v4280, %v4281
        %v4283 = vrot.slane %v4253, 5
        %v4284 = vrot.slane %v4283, 4
        %v4285 = vrot.slane %v4254, 5
        %v4286 = vsel %vm1198, %v4284, %v4285
        %s4287 = scalar_lea.vmem [#allocation12], 320
        %v4288 = vld [vmem:[%s4287] sm:$0xf]
        %v4289 = vld [vmem:[%s4287 + $0x4] sm:$0xf]
        %v4290 = vld [vmem:[%s4287 + $0x8] sm:$0xf]
        %v4291 = vld [vmem:[%s4287 + $0xc] sm:$0xf]
        %v4292 = vld [vmem:[%s4287 + $0x10] sm:$0xf]
        %v4293 = vld [vmem:[%s4287 + $0x14] sm:$0xf]
        %v4294 = vld [vmem:[%s4287 + $0x18] sm:$0xf]
        %v4295 = vld [vmem:[%s4287 + $0x1c] sm:$0xf]
        %v4296 = vld [vmem:[%s4287 + $0x20] sm:$0xf]
        %v4297 = vld [vmem:[%s4287 + $0x24] sm:$0xf]
        %v4298 = vld [vmem:[%s4287 + $0x28] sm:$0xf]
        %v4299 = vld [vmem:[%s4287 + $0x2c] sm:$0xf]
        %v4300 = vld [vmem:[%s4287 + $0x30] sm:$0xf]
        %v4301 = vld [vmem:[%s4287 + $0x34] sm:$0xf]
        %v4302 = vld [vmem:[%s4287 + $0x38] sm:$0xf]
        %v4303 = vld [vmem:[%s4287 + $0x3c] sm:$0xf]
        %v4304 = vunpack.c.l.b16 %v4258
        %v4305 = vunpack.c.l.b16 %v4262
        %v4306 = vunpack.c.l.b16 %v4266
        %v4307 = vunpack.c.l.b16 %v4270
        %v4308 = vunpack.c.l.b16 %v4274
        %v4309 = vunpack.c.l.b16 %v4278
        %v4310 = vunpack.c.l.b16 %v4282
        %v4311 = vunpack.c.l.b16 %v4286
        %v4312 = vpack.c.b16 %v4305, %v4304
        %v4313 = vpack.c.b16 %v4307, %v4306
        %v4314 = vpack.c.b16 %v4309, %v4308
        %v4315 = vpack.c.b16 %v4311, %v4310
        %v4336 = vunpack.c.l.b16 %v4288
        %v4337 = vunpack.c.l.b16 %v4289
        %v4338 = vunpack.c.l.b16 %v4290
        %v4339 = vunpack.c.l.b16 %v4291
        %v4340 = vunpack.c.l.b16 %v4292
        %v4341 = vunpack.c.l.b16 %v4293
        %v4342 = vunpack.c.l.b16 %v4294
        %v4343 = vunpack.c.l.b16 %v4295
        %v4344 = vunpack.c.l.b16 %v4296
        %v4345 = vunpack.c.l.b16 %v4297
        %v4346 = vunpack.c.l.b16 %v4298
        %v4347 = vunpack.c.l.b16 %v4299
        %v4348 = vunpack.c.l.b16 %v4300
        %v4349 = vunpack.c.l.b16 %v4301
        %v4350 = vunpack.c.l.b16 %v4302
        %v4351 = vunpack.c.l.b16 %v4303
        %v4352 = vpack.c.b16 %v4337, %v4336
        %v4353 = vpack.c.b16 %v4339, %v4338
        %v4354 = vpack.c.b16 %v4341, %v4340
        %v4355 = vpack.c.b16 %v4343, %v4342
        %v4356 = vpack.c.b16 %v4345, %v4344
        %v4357 = vpack.c.b16 %v4347, %v4346
        %v4358 = vpack.c.b16 %v4349, %v4348
        %v4359 = vpack.c.b16 %v4351, %v4350
        %4368 = vmatprep.subr.bf16.mxu0 0
        %4369 = vmatpush1.bf16.msra.mxu0 %v4352
        %4370 = vmatprep.subr.bf16.mxu0 0
        %4371 = vmatpush1.bf16.msra.mxu0 %v4353
        %4372 = vmatprep.subr.bf16.mxu0 0
        %4373 = vmatpush1.bf16.msra.mxu0 %v4354
        %4374 = vmatprep.subr.bf16.mxu0 0
        %4375 = vmatpush1.bf16.msra.mxu0 %v4355
        %4376 = vmatprep.subr.bf16.mxu0 0
        %4377 = vmatpush1.bf16.msra.mxu0 %v4356
        %4378 = vmatprep.subr.bf16.mxu0 0
        %4379 = vmatpush1.bf16.msra.mxu0 %v4357
        %4380 = vmatprep.subr.bf16.mxu0 0
        %4381 = vmatpush1.bf16.msra.mxu0 %v4358
        %4382 = vmatprep.subr.bf16.mxu0 0
        %4383 = vmatpush1.bf16.msra.mxu0 %v4359
        %4384 = vmatprep.subr.bf16.mxu0 0
        %4385 = vmatpush1.bf16.msra.mxu0 0
        %4386 = vmatprep.subr.bf16.mxu0 0
        %4387 = vmatpush1.bf16.msra.mxu0 0
        %4388 = vmatprep.subr.bf16.mxu0 0
        %4389 = vmatpush1.bf16.msra.mxu0 0
        %4390 = vmatprep.subr.bf16.mxu0 0
        %4391 = vmatpush1.bf16.msra.mxu0 0
        %4392 = vmatprep.subr.bf16.mxu0 0
        %4393 = vmatpush1.bf16.msra.mxu0 0
        %4394 = vmatprep.subr.bf16.mxu0 0
        %4395 = vmatpush1.bf16.msra.mxu0 0
        %4396 = vmatprep.subr.bf16.mxu0 0
        %4397 = vmatpush1.bf16.msra.mxu0 0
        %4398 = vmatprep.subr.bf16.mxu0 0
        %4399 = vmatpush1.bf16.msra.mxu0 0
        %4400 = vmatprep.mubr.bf16.mxu0 0
        %4401 = vmatmul.mubr.bf16.gmra.mrb[0].mxu0 %v4312
        %v4402 = vpop.f32.mrb[0].mxu0
        %v4403 = vadd.f32 0.0, %v4402
        %v4404 = vpop.f32.mrb[0].mxu0
        %v4405 = vpop.f32.mrb[0].mxu0
        %v4406 = vadd.f32 0.0, %v4405
        %v4407 = vpop.f32.mrb[0].mxu0
        %4408 = vmatprep.mubr.bf16.mxu0 0
        %4409 = vmatmul.mubr.bf16.gmra.mrb[0].mxu0 %v4313
        %v4410 = vpop.f32.mrb[0].mxu0
        %v4411 = vadd.f32 0.0, %v4410
        %v4412 = vpop.f32.mrb[0].mxu0
        %v4413 = vpop.f32.mrb[0].mxu0
        %v4414 = vadd.f32 0.0, %v4413
        %v4415 = vpop.f32.mrb[0].mxu0
        %4416 = vmatprep.mubr.bf16.mxu0 0
        %4417 = vmatmul.mubr.bf16.gmra.mrb[0].mxu0 %v4314
        %v4418 = vpop.f32.mrb[0].mxu0
        %v4419 = vadd.f32 0.0, %v4418
        %v4420 = vpop.f32.mrb[0].mxu0
        %v4421 = vpop.f32.mrb[0].mxu0
        %v4422 = vadd.f32 0.0, %v4421
        %v4423 = vpop.f32.mrb[0].mxu0
        %4424 = vmatprep.mubr.bf16.mxu0 0
        %4425 = vmatmul.mubr.bf16.gmra.mrb[0].mxu0 %v4315
        %v4426 = vpop.f32.mrb[0].mxu0
        %v4427 = vadd.f32 0.0, %v4426
        %v4428 = vpop.f32.mrb[0].mxu0
        %v4429 = vpop.f32.mrb[0].mxu0
        %v4430 = vadd.f32 0.0, %v4429
        %v4431 = vpop.f32.mrb[0].mxu0
        %4432 = vdwg.mxu0
        %v4433 = vadd.f32 %v4199, %v4403
        %v4434 = vadd.f32 %v4200, %v4406
        %v4435 = vadd.f32 %v4201, %v4411
        %v4436 = vadd.f32 %v4202, %v4414
        %v4437 = vadd.f32 %v4203, %v4419
        %v4438 = vadd.f32 %v4204, %v4422
        %v4439 = vadd.f32 %v4205, %v4427
        %v4440 = vadd.f32 %v4206, %v4430
        %s4441 = scalar_lea.vmem [#allocation3], 16
        %v4442 = vld [vmem:[%s4441] sm:$0xf]
        %v4443 = vld [vmem:[%s4441 + $0x8] sm:$0xf]
        %v4444 = vld [vmem:[%s4441 + $0x10] sm:$0xf]
        %v4445 = vld [vmem:[%s4441 + $0x18] sm:$0xf]
        %v4446 = vld [vmem:[%s4441 + $0x20] sm:$0xf]
        %v4447 = vld [vmem:[%s4441 + $0x28] sm:$0xf]
        %v4448 = vld [vmem:[%s4441 + $0x30] sm:$0xf]
        %v4449 = vld [vmem:[%s4441 + $0x38] sm:$0xf]
        %s4450 = scalar_lea.vmem [#allocation12], 384
        %v4451 = vld [vmem:[%s4450] sm:$0xf]
        %v4452 = vld [vmem:[%s4450 + $0x4] sm:$0xf]
        %v4453 = vld [vmem:[%s4450 + $0x8] sm:$0xf]
        %v4454 = vld [vmem:[%s4450 + $0xc] sm:$0xf]
        %v4455 = vld [vmem:[%s4450 + $0x10] sm:$0xf]
        %v4456 = vld [vmem:[%s4450 + $0x14] sm:$0xf]
        %v4457 = vld [vmem:[%s4450 + $0x18] sm:$0xf]
        %v4458 = vld [vmem:[%s4450 + $0x1c] sm:$0xf]
        %v4459 = vld [vmem:[%s4450 + $0x20] sm:$0xf]
        %v4460 = vld [vmem:[%s4450 + $0x24] sm:$0xf]
        %v4461 = vld [vmem:[%s4450 + $0x28] sm:$0xf]
        %v4462 = vld [vmem:[%s4450 + $0x2c] sm:$0xf]
        %v4463 = vld [vmem:[%s4450 + $0x30] sm:$0xf]
        %v4464 = vld [vmem:[%s4450 + $0x34] sm:$0xf]
        %v4465 = vld [vmem:[%s4450 + $0x38] sm:$0xf]
        %v4466 = vld [vmem:[%s4450 + $0x3c] sm:$0xf]
        %v4475 = vunpack.c.l.b16 %v4442
        %v4476 = vunpack.c.l.b16 %v4443
        %v4477 = vunpack.c.l.b16 %v4444
        %v4478 = vunpack.c.l.b16 %v4445
        %v4479 = vunpack.c.l.b16 %v4446
        %v4480 = vunpack.c.l.b16 %v4447
        %v4481 = vunpack.c.l.b16 %v4448
        %v4482 = vunpack.c.l.b16 %v4449
        %v4483 = vpack.c.b16 %v4476, %v4475
        %v4484 = vpack.c.b16 %v4478, %v4477
        %v4485 = vpack.c.b16 %v4480, %v4479
        %v4486 = vpack.c.b16 %v4482, %v4481
        %v4507 = vunpack.c.l.b16 %v4451
        %v4508 = vunpack.c.l.b16 %v4452
        %v4509 = vunpack.c.l.b16 %v4453
        %v4510 = vunpack.c.l.b16 %v4454
        %v4511 = vunpack.c.l.b16 %v4455
        %v4512 = vunpack.c.l.b16 %v4456
        %v4513 = vunpack.c.l.b16 %v4457
        %v4514 = vunpack.c.l.b16 %v4458
        %v4515 = vunpack.c.l.b16 %v4459
        %v4516 = vunpack.c.l.b16 %v4460
        %v4517 = vunpack.c.l.b16 %v4461
        %v4518 = vunpack.c.l.b16 %v4462
        %v4519 = vunpack.c.l.b16 %v4463
        %v4520 = vunpack.c.l.b16 %v4464
        %v4521 = vunpack.c.l.b16 %v4465
        %v4522 = vunpack.c.l.b16 %v4466
        %v4523 = vpack.c.b16 %v4508, %v4507
        %v4524 = vpack.c.b16 %v4510, %v4509
        %v4525 = vpack.c.b16 %v4512, %v4511
        %v4526 = vpack.c.b16 %v4514, %v4513
        %v4527 = vpack.c.b16 %v4516, %v4515
        %v4528 = vpack.c.b16 %v4518, %v4517
        %v4529 = vpack.c.b16 %v4520, %v4519
        %v4530 = vpack.c.b16 %v4522, %v4521
        %4539 = vmatprep.subr.bf16.mxu0 0
        %4540 = vmatpush1.bf16.msra.mxu0 %v4523
        %4541 = vmatprep.subr.bf16.mxu0 0
        %4542 = vmatpush1.bf16.msra.mxu0 %v4524
        %4543 = vmatprep.subr.bf16.mxu0 0
        %4544 = vmatpush1.bf16.msra.mxu0 %v4525
        %4545 = vmatprep.subr.bf16.mxu0 0
        %4546 = vmatpush1.bf16.msra.mxu0 %v4526
        %4547 = vmatprep.subr.bf16.mxu0 0
        %4548 = vmatpush1.bf16.msra.mxu0 %v4527
        %4549 = vmatprep.subr.bf16.mxu0 0
        %4550 = vmatpush1.bf16.msra.mxu0 %v4528
        %4551 = vmatprep.subr.bf16.mxu0 0
        %4552 = vmatpush1.bf16.msra.mxu0 %v4529
        %4553 = vmatprep.subr.bf16.mxu0 0
        %4554 = vmatpush1.bf16.msra.mxu0 %v4530
        %4555 = vmatprep.subr.bf16.mxu0 0
        %4556 = vmatpush1.bf16.msra.mxu0 0
        %4557 = vmatprep.subr.bf16.mxu0 0
        %4558 = vmatpush1.bf16.msra.mxu0 0
        %4559 = vmatprep.subr.bf16.mxu0 0
        %4560 = vmatpush1.bf16.msra.mxu0 0
        %4561 = vmatprep.subr.bf16.mxu0 0
        %4562 = vmatpush1.bf16.msra.mxu0 0
        %4563 = vmatprep.subr.bf16.mxu0 0
        %4564 = vmatpush1.bf16.msra.mxu0 0
        %4565 = vmatprep.subr.bf16.mxu0 0
        %4566 = vmatpush1.bf16.msra.mxu0 0
        %4567 = vmatprep.subr.bf16.mxu0 0
        %4568 = vmatpush1.bf16.msra.mxu0 0
        %4569 = vmatprep.subr.bf16.mxu0 0
        %4570 = vmatpush1.bf16.msra.mxu0 0
        %4571 = vmatprep.mubr.bf16.mxu0 0
        %4572 = vmatmul.mubr.bf16.gmra.mrb[0].mxu0 %v4483
        %v4573 = vpop.f32.mrb[0].mxu0
        %v4574 = vadd.f32 0.0, %v4573
        %v4575 = vpop.f32.mrb[0].mxu0
        %v4576 = vpop.f32.mrb[0].mxu0
        %v4577 = vadd.f32 0.0, %v4576
        %v4578 = vpop.f32.mrb[0].mxu0
        %4579 = vmatprep.mubr.bf16.mxu0 0
        %4580 = vmatmul.mubr.bf16.gmra.mrb[0].mxu0 %v4484
        %v4581 = vpop.f32.mrb[0].mxu0
        %v4582 = vadd.f32 0.0, %v4581
        %v4583 = vpop.f32.mrb[0].mxu0
        %v4584 = vpop.f32.mrb[0].mxu0
        %v4585 = vadd.f32 0.0, %v4584
        %v4586 = vpop.f32.mrb[0].mxu0
        %4587 = vmatprep.mubr.bf16.mxu0 0
        %4588 = vmatmul.mubr.bf16.gmra.mrb[0].mxu0 %v4485
        %v4589 = vpop.f32.mrb[0].mxu0
        %v4590 = vadd.f32 0.0, %v4589
        %v4591 = vpop.f32.mrb[0].mxu0
        %v4592 = vpop.f32.mrb[0].mxu0
        %v4593 = vadd.f32 0.0, %v4592
        %v4594 = vpop.f32.mrb[0].mxu0
        %4595 = vmatprep.mubr.bf16.mxu0 0
        %4596 = vmatmul.mubr.bf16.gmra.mrb[0].mxu0 %v4486
        %v4597 = vpop.f32.mrb[0].mxu0
        %v4598 = vadd.f32 0.0, %v4597
        %v4599 = vpop.f32.mrb[0].mxu0
        %v4600 = vpop.f32.mrb[0].mxu0
        %v4601 = vadd.f32 0.0, %v4600
        %v4602 = vpop.f32.mrb[0].mxu0
        %4603 = vdwg.mxu0
        %v4604 = vadd.f32 %v4433, %v4574
        %v4605 = vadd.f32 %v4434, %v4577
        %v4606 = vadd.f32 %v4435, %v4582
        %v4607 = vadd.f32 %v4436, %v4585
        %v4608 = vadd.f32 %v4437, %v4590
        %v4609 = vadd.f32 %v4438, %v4593
        %v4610 = vadd.f32 %v4439, %v4598
        %v4611 = vadd.f32 %v4440, %v4601
        %v4612 = vld [vmem:[%s4441] sm:$0x1f]
        %v4613 = vld [vmem:[%s4441 + $0x8] sm:$0x1f]
        %v4614 = vld [vmem:[%s4441 + $0x10] sm:$0x1f]
        %v4615 = vld [vmem:[%s4441 + $0x18] sm:$0x1f]
        %v4616 = vld [vmem:[%s4441 + $0x20] sm:$0x1f]
        %v4617 = vld [vmem:[%s4441 + $0x28] sm:$0x1f]
        %v4618 = vld [vmem:[%s4441 + $0x30] sm:$0x1f]
        %v4619 = vld [vmem:[%s4441 + $0x38] sm:$0x1f]
        %v4628 = vunpack.c.l.b16 %v4612
        %v4629 = vunpack.c.h.b16 %v4612
        %v4630 = vunpack.c.l.b16 %v4613
        %v4631 = vunpack.c.h.b16 %v4613
        %v4632 = vunpack.c.l.b16 %v4614
        %v4633 = vunpack.c.h.b16 %v4614
        %v4634 = vunpack.c.l.b16 %v4615
        %v4635 = vunpack.c.h.b16 %v4615
        %v4636 = vunpack.c.l.b16 %v4616
        %v4637 = vunpack.c.h.b16 %v4616
        %v4638 = vunpack.c.l.b16 %v4617
        %v4639 = vunpack.c.h.b16 %v4617
        %v4640 = vunpack.c.l.b16 %v4618
        %v4641 = vunpack.c.h.b16 %v4618
        %v4642 = vunpack.c.l.b16 %v4619
        %v4643 = vunpack.c.h.b16 %v4619
        %v4644 = vpack.c.b16 %v4628, %v4628
        %v4645 = vpack.c.b16 %v4629, %v4629
        %v4646 = vpack.c.b16 %v4630, %v4630
        %v4647 = vpack.c.b16 %v4631, %v4631
        %v4648 = vpack.c.b16 %v4632, %v4632
        %v4649 = vpack.c.b16 %v4633, %v4633
        %v4650 = vpack.c.b16 %v4634, %v4634
        %v4651 = vpack.c.b16 %v4635, %v4635
        %v4652 = vpack.c.b16 %v4636, %v4636
        %v4653 = vpack.c.b16 %v4637, %v4637
        %v4654 = vpack.c.b16 %v4638, %v4638
        %v4655 = vpack.c.b16 %v4639, %v4639
        %v4656 = vpack.c.b16 %v4640, %v4640
        %v4657 = vpack.c.b16 %v4641, %v4641
        %v4658 = vpack.c.b16 %v4642, %v4642
        %v4659 = vpack.c.b16 %v4643, %v4643
        %v4661 = vshrl.u32 %v4644, 16
        %v4663 = vrot.slane %v4661, 4
        %v4664 = vshll.u32 %v4644, 16
        %v4666 = vrot.slane %v4664, 5
        %v4667 = vor.u32 %v4663, %v4666
        %v4668 = vrot.slane %v4667, 4
        %v4670 = vshll.u32 %v4645, 16
        %v4672 = vrot.slane %v4670, 5
        %v4673 = vsel %vm752, %v4668, %v4672
        %v4675 = vshrl.u32 %v4646, 16
        %v4677 = vrot.slane %v4675, 4
        %v4678 = vshll.u32 %v4646, 16
        %v4680 = vrot.slane %v4678, 5
        %v4681 = vor.u32 %v4677, %v4680
        %v4682 = vrot.slane %v4681, 4
        %v4684 = vshll.u32 %v4647, 16
        %v4686 = vrot.slane %v4684, 5
        %v4687 = vsel %vm752, %v4682, %v4686
        %v4689 = vshrl.u32 %v4648, 16
        %v4691 = vrot.slane %v4689, 4
        %v4692 = vshll.u32 %v4648, 16
        %v4694 = vrot.slane %v4692, 5
        %v4695 = vor.u32 %v4691, %v4694
        %v4696 = vrot.slane %v4695, 4
        %v4698 = vshll.u32 %v4649, 16
        %v4700 = vrot.slane %v4698, 5
        %v4701 = vsel %vm752, %v4696, %v4700
        %v4703 = vshrl.u32 %v4650, 16
        %v4705 = vrot.slane %v4703, 4
        %v4706 = vshll.u32 %v4650, 16
        %v4708 = vrot.slane %v4706, 5
        %v4709 = vor.u32 %v4705, %v4708
        %v4710 = vrot.slane %v4709, 4
        %v4712 = vshll.u32 %v4651, 16
        %v4714 = vrot.slane %v4712, 5
        %v4715 = vsel %vm752, %v4710, %v4714
        %v4717 = vshrl.u32 %v4652, 16
        %v4719 = vrot.slane %v4717, 4
        %v4720 = vshll.u32 %v4652, 16
        %v4722 = vrot.slane %v4720, 5
        %v4723 = vor.u32 %v4719, %v4722
        %v4724 = vrot.slane %v4723, 4
        %v4726 = vshll.u32 %v4653, 16
        %v4728 = vrot.slane %v4726, 5
        %v4729 = vsel %vm752, %v4724, %v4728
        %v4731 = vshrl.u32 %v4654, 16
        %v4733 = vrot.slane %v4731, 4
        %v4734 = vshll.u32 %v4654, 16
        %v4736 = vrot.slane %v4734, 5
        %v4737 = vor.u32 %v4733, %v4736
        %v4738 = vrot.slane %v4737, 4
        %v4740 = vshll.u32 %v4655, 16
        %v4742 = vrot.slane %v4740, 5
        %v4743 = vsel %vm752, %v4738, %v4742
        %v4745 = vshrl.u32 %v4656, 16
        %v4747 = vrot.slane %v4745, 4
        %v4748 = vshll.u32 %v4656, 16
        %v4750 = vrot.slane %v4748, 5
        %v4751 = vor.u32 %v4747, %v4750
        %v4752 = vrot.slane %v4751, 4
        %v4754 = vshll.u32 %v4657, 16
        %v4756 = vrot.slane %v4754, 5
        %v4757 = vsel %vm752, %v4752, %v4756
        %v4759 = vshrl.u32 %v4658, 16
        %v4761 = vrot.slane %v4759, 4
        %v4762 = vshll.u32 %v4658, 16
        %v4764 = vrot.slane %v4762, 5
        %v4765 = vor.u32 %v4761, %v4764
        %v4766 = vrot.slane %v4765, 4
        %v4768 = vshll.u32 %v4659, 16
        %v4770 = vrot.slane %v4768, 5
        %v4771 = vsel %vm752, %v4766, %v4770
        %s4772 = scalar_lea.vmem [#allocation12], 448
        %v4773 = vld [vmem:[%s4772] sm:$0xf]
        %v4774 = vld [vmem:[%s4772 + $0x4] sm:$0xf]
        %v4775 = vld [vmem:[%s4772 + $0x8] sm:$0xf]
        %v4776 = vld [vmem:[%s4772 + $0xc] sm:$0xf]
        %v4777 = vld [vmem:[%s4772 + $0x10] sm:$0xf]
        %v4778 = vld [vmem:[%s4772 + $0x14] sm:$0xf]
        %v4779 = vld [vmem:[%s4772 + $0x18] sm:$0xf]
        %v4780 = vld [vmem:[%s4772 + $0x1c] sm:$0xf]
        %v4781 = vld [vmem:[%s4772 + $0x20] sm:$0xf]
        %v4782 = vld [vmem:[%s4772 + $0x24] sm:$0xf]
        %v4783 = vld [vmem:[%s4772 + $0x28] sm:$0xf]
        %v4784 = vld [vmem:[%s4772 + $0x2c] sm:$0xf]
        %v4785 = vld [vmem:[%s4772 + $0x30] sm:$0xf]
        %v4786 = vld [vmem:[%s4772 + $0x34] sm:$0xf]
        %v4787 = vld [vmem:[%s4772 + $0x38] sm:$0xf]
        %v4788 = vld [vmem:[%s4772 + $0x3c] sm:$0xf]
        %v4789 = vunpack.c.l.b16 %v4673
        %v4790 = vunpack.c.l.b16 %v4687
        %v4791 = vunpack.c.l.b16 %v4701
        %v4792 = vunpack.c.l.b16 %v4715
        %v4793 = vunpack.c.l.b16 %v4729
        %v4794 = vunpack.c.l.b16 %v4743
        %v4795 = vunpack.c.l.b16 %v4757
        %v4796 = vunpack.c.l.b16 %v4771
        %v4797 = vpack.c.b16 %v4790, %v4789
        %v4798 = vpack.c.b16 %v4792, %v4791
        %v4799 = vpack.c.b16 %v4794, %v4793
        %v4800 = vpack.c.b16 %v4796, %v4795
        %v4821 = vunpack.c.l.b16 %v4773
        %v4822 = vunpack.c.l.b16 %v4774
        %v4823 = vunpack.c.l.b16 %v4775
        %v4824 = vunpack.c.l.b16 %v4776
        %v4825 = vunpack.c.l.b16 %v4777
        %v4826 = vunpack.c.l.b16 %v4778
        %v4827 = vunpack.c.l.b16 %v4779
        %v4828 = vunpack.c.l.b16 %v4780
        %v4829 = vunpack.c.l.b16 %v4781
        %v4830 = vunpack.c.l.b16 %v4782
        %v4831 = vunpack.c.l.b16 %v4783
        %v4832 = vunpack.c.l.b16 %v4784
        %v4833 = vunpack.c.l.b16 %v4785
        %v4834 = vunpack.c.l.b16 %v4786
        %v4835 = vunpack.c.l.b16 %v4787
        %v4836 = vunpack.c.l.b16 %v4788
        %v4837 = vpack.c.b16 %v4822, %v4821
        %v4838 = vpack.c.b16 %v4824, %v4823
        %v4839 = vpack.c.b16 %v4826, %v4825
        %v4840 = vpack.c.b16 %v4828, %v4827
        %v4841 = vpack.c.b16 %v4830, %v4829
        %v4842 = vpack.c.b16 %v4832, %v4831
        %v4843 = vpack.c.b16 %v4834, %v4833
        %v4844 = vpack.c.b16 %v4836, %v4835
        %4853 = vmatprep.subr.bf16.mxu0 0
        %4854 = vmatpush1.bf16.msra.mxu0 %v4837
        %4855 = vmatprep.subr.bf16.mxu0 0
        %4856 = vmatpush1.bf16.msra.mxu0 %v4838
        %4857 = vmatprep.subr.bf16.mxu0 0
        %4858 = vmatpush1.bf16.msra.mxu0 %v4839
        %4859 = vmatprep.subr.bf16.mxu0 0
        %4860 = vmatpush1.bf16.msra.mxu0 %v4840
        %4861 = vmatprep.subr.bf16.mxu0 0
        %4862 = vmatpush1.bf16.msra.mxu0 %v4841
        %4863 = vmatprep.subr.bf16.mxu0 0
        %4864 = vmatpush1.bf16.msra.mxu0 %v4842
        %4865 = vmatprep.subr.bf16.mxu0 0
        %4866 = vmatpush1.bf16.msra.mxu0 %v4843
        %4867 = vmatprep.subr.bf16.mxu0 0
        %4868 = vmatpush1.bf16.msra.mxu0 %v4844
        %4869 = vmatprep.subr.bf16.mxu0 0
        %4870 = vmatpush1.bf16.msra.mxu0 0
        %4871 = vmatprep.subr.bf16.mxu0 0
        %4872 = vmatpush1.bf16.msra.mxu0 0
        %4873 = vmatprep.subr.bf16.mxu0 0
        %4874 = vmatpush1.bf16.msra.mxu0 0
        %4875 = vmatprep.subr.bf16.mxu0 0
        %4876 = vmatpush1.bf16.msra.mxu0 0
        %4877 = vmatprep.subr.bf16.mxu0 0
        %4878 = vmatpush1.bf16.msra.mxu0 0
        %4879 = vmatprep.subr.bf16.mxu0 0
        %4880 = vmatpush1.bf16.msra.mxu0 0
        %4881 = vmatprep.subr.bf16.mxu0 0
        %4882 = vmatpush1.bf16.msra.mxu0 0
        %4883 = vmatprep.subr.bf16.mxu0 0
        %4884 = vmatpush1.bf16.msra.mxu0 0
        %4885 = vmatprep.mubr.bf16.mxu0 0
        %4886 = vmatmul.mubr.bf16.gmra.mrb[0].mxu0 %v4797
        %v4887 = vpop.f32.mrb[0].mxu0
        %v4888 = vadd.f32 0.0, %v4887
        %v4889 = vpop.f32.mrb[0].mxu0
        %v4890 = vpop.f32.mrb[0].mxu0
        %v4891 = vadd.f32 0.0, %v4890
        %v4892 = vpop.f32.mrb[0].mxu0
        %4893 = vmatprep.mubr.bf16.mxu0 0
        %4894 = vmatmul.mubr.bf16.gmra.mrb[0].mxu0 %v4798
        %v4895 = vpop.f32.mrb[0].mxu0
        %v4896 = vadd.f32 0.0, %v4895
        %v4897 = vpop.f32.mrb[0].mxu0
        %v4898 = vpop.f32.mrb[0].mxu0
        %v4899 = vadd.f32 0.0, %v4898
        %v4900 = vpop.f32.mrb[0].mxu0
        %4901 = vmatprep.mubr.bf16.mxu0 0
        %4902 = vmatmul.mubr.bf16.gmra.mrb[0].mxu0 %v4799
        %v4903 = vpop.f32.mrb[0].mxu0
        %v4904 = vadd.f32 0.0, %v4903
        %v4905 = vpop.f32.mrb[0].mxu0
        %v4906 = vpop.f32.mrb[0].mxu0
        %v4907 = vadd.f32 0.0, %v4906
        %v4908 = vpop.f32.mrb[0].mxu0
        %4909 = vmatprep.mubr.bf16.mxu0 0
        %4910 = vmatmul.mubr.bf16.gmra.mrb[0].mxu0 %v4800
        %v4911 = vpop.f32.mrb[0].mxu0
        %v4912 = vadd.f32 0.0, %v4911
        %v4913 = vpop.f32.mrb[0].mxu0
        %v4914 = vpop.f32.mrb[0].mxu0
        %v4915 = vadd.f32 0.0, %v4914
        %v4916 = vpop.f32.mrb[0].mxu0
        %4917 = vdwg.mxu0
        %v4918 = vadd.f32 %v4604, %v4888
        %v4919 = vadd.f32 %v4605, %v4891
        %v4920 = vadd.f32 %v4606, %v4896
        %v4921 = vadd.f32 %v4607, %v4899
        %v4922 = vadd.f32 %v4608, %v4904
        %v4923 = vadd.f32 %v4609, %v4907
        %v4924 = vadd.f32 %v4610, %v4912
        %v4925 = vadd.f32 %v4611, %v4915
        %v4926 = vld [vmem:[%s4441] sm:$0x1e]
        %v4927 = vld [vmem:[%s4441 + $0x8] sm:$0x1e]
        %v4928 = vld [vmem:[%s4441 + $0x10] sm:$0x1e]
        %v4929 = vld [vmem:[%s4441 + $0x18] sm:$0x1e]
        %v4930 = vld [vmem:[%s4441 + $0x20] sm:$0x1e]
        %v4931 = vld [vmem:[%s4441 + $0x28] sm:$0x1e]
        %v4932 = vld [vmem:[%s4441 + $0x30] sm:$0x1e]
        %v4933 = vld [vmem:[%s4441 + $0x38] sm:$0x1e]
        %v4942 = vunpack.c.l.b16 %v4926
        %v4943 = vunpack.c.h.b16 %v4926
        %v4944 = vunpack.c.l.b16 %v4927
        %v4945 = vunpack.c.h.b16 %v4927
        %v4946 = vunpack.c.l.b16 %v4928
        %v4947 = vunpack.c.h.b16 %v4928
        %v4948 = vunpack.c.l.b16 %v4929
        %v4949 = vunpack.c.h.b16 %v4929
        %v4950 = vunpack.c.l.b16 %v4930
        %v4951 = vunpack.c.h.b16 %v4930
        %v4952 = vunpack.c.l.b16 %v4931
        %v4953 = vunpack.c.h.b16 %v4931
        %v4954 = vunpack.c.l.b16 %v4932
        %v4955 = vunpack.c.h.b16 %v4932
        %v4956 = vunpack.c.l.b16 %v4933
        %v4957 = vunpack.c.h.b16 %v4933
        %v4958 = vpack.c.b16 %v4942, %v4942
        %v4959 = vpack.c.b16 %v4943, %v4943
        %v4960 = vpack.c.b16 %v4944, %v4944
        %v4961 = vpack.c.b16 %v4945, %v4945
        %v4962 = vpack.c.b16 %v4946, %v4946
        %v4963 = vpack.c.b16 %v4947, %v4947
        %v4964 = vpack.c.b16 %v4948, %v4948
        %v4965 = vpack.c.b16 %v4949, %v4949
        %v4966 = vpack.c.b16 %v4950, %v4950
        %v4967 = vpack.c.b16 %v4951, %v4951
        %v4968 = vpack.c.b16 %v4952, %v4952
        %v4969 = vpack.c.b16 %v4953, %v4953
        %v4970 = vpack.c.b16 %v4954, %v4954
        %v4971 = vpack.c.b16 %v4955, %v4955
        %v4972 = vpack.c.b16 %v4956, %v4956
        %v4973 = vpack.c.b16 %v4957, %v4957
        %v4974 = vrot.slane %v4958, 5
        %v4975 = vrot.slane %v4974, 4
        %v4976 = vrot.slane %v4959, 5
        %v4977 = vsel %vm1198, %v4975, %v4976
        %v4978 = vrot.slane %v4960, 5
        %v4979 = vrot.slane %v4978, 4
        %v4980 = vrot.slane %v4961, 5
        %v4981 = vsel %vm1198, %v4979, %v4980
        %v4982 = vrot.slane %v4962, 5
        %v4983 = vrot.slane %v4982, 4
        %v4984 = vrot.slane %v4963, 5
        %v4985 = vsel %vm1198, %v4983, %v4984
        %v4986 = vrot.slane %v4964, 5
        %v4987 = vrot.slane %v4986, 4
        %v4988 = vrot.slane %v4965, 5
        %v4989 = vsel %vm1198, %v4987, %v4988
        %v4990 = vrot.slane %v4966, 5
        %v4991 = vrot.slane %v4990, 4
        %v4992 = vrot.slane %v4967, 5
        %v4993 = vsel %vm1198, %v4991, %v4992
        %v4994 = vrot.slane %v4968, 5
        %v4995 = vrot.slane %v4994, 4
        %v4996 = vrot.slane %v4969, 5
        %v4997 = vsel %vm1198, %v4995, %v4996
        %v4998 = vrot.slane %v4970, 5
        %v4999 = vrot.slane %v4998, 4
        %v5000 = vrot.slane %v4971, 5
        %v5001 = vsel %vm1198, %v4999, %v5000
        %v5002 = vrot.slane %v4972, 5
        %v5003 = vrot.slane %v5002, 4
        %v5004 = vrot.slane %v4973, 5
        %v5005 = vsel %vm1198, %v5003, %v5004
        %s5006 = scalar_lea.vmem [#allocation12], 512
        %v5007 = vld [vmem:[%s5006] sm:$0xf]
        %v5008 = vld [vmem:[%s5006 + $0x4] sm:$0xf]
        %v5009 = vld [vmem:[%s5006 + $0x8] sm:$0xf]
        %v5010 = vld [vmem:[%s5006 + $0xc] sm:$0xf]
        %v5011 = vld [vmem:[%s5006 + $0x10] sm:$0xf]
        %v5012 = vld [vmem:[%s5006 + $0x14] sm:$0xf]
        %v5013 = vld [vmem:[%s5006 + $0x18] sm:$0xf]
        %v5014 = vld [vmem:[%s5006 + $0x1c] sm:$0xf]
        %v5015 = vld [vmem:[%s5006 + $0x20] sm:$0xf]
        %v5016 = vld [vmem:[%s5006 + $0x24] sm:$0xf]
        %v5017 = vld [vmem:[%s5006 + $0x28] sm:$0xf]
        %v5018 = vld [vmem:[%s5006 + $0x2c] sm:$0xf]
        %v5019 = vld [vmem:[%s5006 + $0x30] sm:$0xf]
        %v5020 = vld [vmem:[%s5006 + $0x34] sm:$0xf]
        %v5021 = vld [vmem:[%s5006 + $0x38] sm:$0xf]
        %v5022 = vld [vmem:[%s5006 + $0x3c] sm:$0xf]
        %v5023 = vunpack.c.l.b16 %v4977
        %v5024 = vunpack.c.l.b16 %v4981
        %v5025 = vunpack.c.l.b16 %v4985
        %v5026 = vunpack.c.l.b16 %v4989
        %v5027 = vunpack.c.l.b16 %v4993
        %v5028 = vunpack.c.l.b16 %v4997
        %v5029 = vunpack.c.l.b16 %v5001
        %v5030 = vunpack.c.l.b16 %v5005
        %v5031 = vpack.c.b16 %v5024, %v5023
        %v5032 = vpack.c.b16 %v5026, %v5025
        %v5033 = vpack.c.b16 %v5028, %v5027
        %v5034 = vpack.c.b16 %v5030, %v5029
        %v5055 = vunpack.c.l.b16 %v5007
        %v5056 = vunpack.c.l.b16 %v5008
        %v5057 = vunpack.c.l.b16 %v5009
        %v5058 = vunpack.c.l.b16 %v5010
        %v5059 = vunpack.c.l.b16 %v5011
        %v5060 = vunpack.c.l.b16 %v5012
        %v5061 = vunpack.c.l.b16 %v5013
        %v5062 = vunpack.c.l.b16 %v5014
        %v5063 = vunpack.c.l.b16 %v5015
        %v5064 = vunpack.c.l.b16 %v5016
        %v5065 = vunpack.c.l.b16 %v5017
        %v5066 = vunpack.c.l.b16 %v5018
        %v5067 = vunpack.c.l.b16 %v5019
        %v5068 = vunpack.c.l.b16 %v5020
        %v5069 = vunpack.c.l.b16 %v5021
        %v5070 = vunpack.c.l.b16 %v5022
        %v5071 = vpack.c.b16 %v5056, %v5055
        %v5072 = vpack.c.b16 %v5058, %v5057
        %v5073 = vpack.c.b16 %v5060, %v5059
        %v5074 = vpack.c.b16 %v5062, %v5061
        %v5075 = vpack.c.b16 %v5064, %v5063
        %v5076 = vpack.c.b16 %v5066, %v5065
        %v5077 = vpack.c.b16 %v5068, %v5067
        %v5078 = vpack.c.b16 %v5070, %v5069
        %5087 = vmatprep.subr.bf16.mxu0 0
        %5088 = vmatpush1.bf16.msra.mxu0 %v5071
        %5089 = vmatprep.subr.bf16.mxu0 0
        %5090 = vmatpush1.bf16.msra.mxu0 %v5072
        %5091 = vmatprep.subr.bf16.mxu0 0
        %5092 = vmatpush1.bf16.msra.mxu0 %v5073
        %5093 = vmatprep.subr.bf16.mxu0 0
        %5094 = vmatpush1.bf16.msra.mxu0 %v5074
        %5095 = vmatprep.subr.bf16.mxu0 0
        %5096 = vmatpush1.bf16.msra.mxu0 %v5075
        %5097 = vmatprep.subr.bf16.mxu0 0
        %5098 = vmatpush1.bf16.msra.mxu0 %v5076
        %5099 = vmatprep.subr.bf16.mxu0 0
        %5100 = vmatpush1.bf16.msra.mxu0 %v5077
        %5101 = vmatprep.subr.bf16.mxu0 0
        %5102 = vmatpush1.bf16.msra.mxu0 %v5078
        %5103 = vmatprep.subr.bf16.mxu0 0
        %5104 = vmatpush1.bf16.msra.mxu0 0
        %5105 = vmatprep.subr.bf16.mxu0 0
        %5106 = vmatpush1.bf16.msra.mxu0 0
        %5107 = vmatprep.subr.bf16.mxu0 0
        %5108 = vmatpush1.bf16.msra.mxu0 0
        %5109 = vmatprep.subr.bf16.mxu0 0
        %5110 = vmatpush1.bf16.msra.mxu0 0
        %5111 = vmatprep.subr.bf16.mxu0 0
        %5112 = vmatpush1.bf16.msra.mxu0 0
        %5113 = vmatprep.subr.bf16.mxu0 0
        %5114 = vmatpush1.bf16.msra.mxu0 0
        %5115 = vmatprep.subr.bf16.mxu0 0
        %5116 = vmatpush1.bf16.msra.mxu0 0
        %5117 = vmatprep.subr.bf16.mxu0 0
        %5118 = vmatpush1.bf16.msra.mxu0 0
        %5119 = vmatprep.mubr.bf16.mxu0 0
        %5120 = vmatmul.mubr.bf16.gmra.mrb[0].mxu0 %v5031
        %v5121 = vpop.f32.mrb[0].mxu0
        %v5122 = vadd.f32 0.0, %v5121
        %v5123 = vpop.f32.mrb[0].mxu0
        %v5124 = vpop.f32.mrb[0].mxu0
        %v5125 = vadd.f32 0.0, %v5124
        %v5126 = vpop.f32.mrb[0].mxu0
        %5127 = vmatprep.mubr.bf16.mxu0 0
        %5128 = vmatmul.mubr.bf16.gmra.mrb[0].mxu0 %v5032
        %v5129 = vpop.f32.mrb[0].mxu0
        %v5130 = vadd.f32 0.0, %v5129
        %v5131 = vpop.f32.mrb[0].mxu0
        %v5132 = vpop.f32.mrb[0].mxu0
        %v5133 = vadd.f32 0.0, %v5132
        %v5134 = vpop.f32.mrb[0].mxu0
        %5135 = vmatprep.mubr.bf16.mxu0 0
        %5136 = vmatmul.mubr.bf16.gmra.mrb[0].mxu0 %v5033
        %v5137 = vpop.f32.mrb[0].mxu0
        %v5138 = vadd.f32 0.0, %v5137
        %v5139 = vpop.f32.mrb[0].mxu0
        %v5140 = vpop.f32.mrb[0].mxu0
        %v5141 = vadd.f32 0.0, %v5140
        %v5142 = vpop.f32.mrb[0].mxu0
        %5143 = vmatprep.mubr.bf16.mxu0 0
        %5144 = vmatmul.mubr.bf16.gmra.mrb[0].mxu0 %v5034
        %v5145 = vpop.f32.mrb[0].mxu0
        %v5146 = vadd.f32 0.0, %v5145
        %v5147 = vpop.f32.mrb[0].mxu0
        %v5148 = vpop.f32.mrb[0].mxu0
        %v5149 = vadd.f32 0.0, %v5148
        %v5150 = vpop.f32.mrb[0].mxu0
        %5151 = vdwg.mxu0
        %v5152 = vadd.f32 %v4918, %v5122
        %v5153 = vadd.f32 %v4919, %v5125
        %v5154 = vadd.f32 %v4920, %v5130
        %v5155 = vadd.f32 %v4921, %v5133
        %v5156 = vadd.f32 %v4922, %v5138
        %v5157 = vadd.f32 %v4923, %v5141
        %v5158 = vadd.f32 %v4924, %v5146
        %v5159 = vadd.f32 %v4925, %v5149
        %v5161 = vlaneseq
        %v5162 = vshrl.u32 %v5161, 7
        %v5163 = vsub.s32 0, %v5162
        %v5164 = vrot.slane %v3020, %v5163
        %v5166 = vmul.f32 %v5152, %v5164
        %v5167 = vmul.f32 %v5153, %v5164
        %v5168 = vmul.f32 %v5154, %v5164
        %v5169 = vmul.f32 %v5155, %v5164
        %v5170 = vmul.f32 %v5156, %v5164
        %v5171 = vmul.f32 %v5157, %v5164
        %v5172 = vmul.f32 %v5158, %v5164
        %v5173 = vmul.f32 %v5159, %v5164
        %v5175 = vlaneseq
        %v5176 = vshrl.u32 %v5175, 7
        %v5177 = vsub.s32 0, %v5176
        %v5178 = vrot.slane %v3021, %v5177
        %v5180 = vadd.f32 %v5166, %v5178
        %v5181 = vadd.f32 %v5167, %v5178
        %v5182 = vadd.f32 %v5168, %v5178
        %v5183 = vadd.f32 %v5169, %v5178
        %v5184 = vadd.f32 %v5170, %v5178
        %v5185 = vadd.f32 %v5171, %v5178
        %v5186 = vadd.f32 %v5172, %v5178
        %v5187 = vadd.f32 %v5173, %v5178
        %v5188 = vmax.f32 %v5180, 0.0
        %v5189 = vmax.f32 %v5181, 0.0
        %v5190 = vmax.f32 %v5182, 0.0
        %v5191 = vmax.f32 %v5183, 0.0
        %v5192 = vmax.f32 %v5184, 0.0
        %v5193 = vmax.f32 %v5185, 0.0
        %v5194 = vmax.f32 %v5186, 0.0
        %v5195 = vmax.f32 %v5187, 0.0
        %5196 = vxpose.xlu0.b32.start [1/16] %v5188, 128
        %5197 = vxpose.xlu0.b32.cont [2/16] %v5189, 128
        %5198 = vxpose.xlu0.b32.cont [3/16] %v5190, 128
        %5199 = vxpose.xlu0.b32.cont [4/16] %v5191, 128
        %5200 = vxpose.xlu0.b32.cont [5/16] %v5192, 128
        %5201 = vxpose.xlu0.b32.cont [6/16] %v5193, 128
        %5202 = vxpose.xlu0.b32.cont [7/16] %v5194, 128
        %5203 = vxpose.xlu0.b32.cont [8/16] %v5195, 128
        %5204 = vxpose.xlu0.b32.cont [9/16] 0.0, 128
        %5205 = vxpose.xlu0.b32.cont [10/16] 0.0, 128
        %5206 = vxpose.xlu0.b32.cont [11/16] 0.0, 128
        %5207 = vxpose.xlu0.b32.cont [12/16] 0.0, 128
        %5208 = vxpose.xlu0.b32.cont [13/16] 0.0, 128
        %5209 = vxpose.xlu0.b32.cont [14/16] 0.0, 128
        %5210 = vxpose.xlu0.b32.cont [15/16] 0.0, 128
        %5211 = vxpose.xlu0.b32.end [16/16] 0.0, 128
        %v5212 = vpop.trf.xlu0
        %v5213 = vpop.trf.xlu0
        %v5214 = vpop.trf.xlu0
        %v5215 = vpop.trf.xlu0
        %v5216 = vpop.trf.xlu0
        %v5217 = vpop.trf.xlu0
        %v5218 = vpop.trf.xlu0
        %v5219 = vpop.trf.xlu0
        %v5220 = vpop.trf.xlu0
        %v5221 = vpop.trf.xlu0
        %v5222 = vpop.trf.xlu0
        %v5223 = vpop.trf.xlu0
        %v5224 = vpop.trf.xlu0
        %v5225 = vpop.trf.xlu0
        %v5226 = vpop.trf.xlu0
        %v5227 = vpop.trf.xlu0
        %vm5228 = vcmask 523264
        %5229 = vst.msk [vmem:[%s375] sm:$0xff] %vm5228, %v5212
        %s5230 = sand.u32 %s187, 1
        %s5231 = scalar_lea.sflag [#allocation6], %s5230
        %s5232 = sand.u32 %s187, 1
        %s5233 = smul.addr %s5232, 8
        %s5234 = scalar_lea.vmem [#allocation16], %s5233
        // Predicated region
        $region77: #{tpu_custom_call.1} parent=47 // pred_check
          %p5235 = pneg %p197
        $region78: #{tpu_custom_call.1} parent=47 // pred_check_branch
          %5237 = sbr.rel (%p5235) target = $region80
        $region79: #{tpu_custom_call.1} parent=47 // pred_region
          %s5239 = ssub.s32 128, 128
          %5240 = vsyncadd %s5231, %s5239
          %s5241 = smul.addr %s27, 128
          %s5242 = scalar_lea.hbm %s7, %s5241
          %s5244 = sshll.u32 %s5234, 4
          %s5245 = int_to_ptr.vmem [resolvable:$true] %s5244
          %5247 = dma.vmem_to_hbm [thread:$0]  %s5245, 128, %s5242, %s5231
        $region80: #{tpu_custom_call.1} parent=47 // pred_fallthru
          _
      $region48: #{tpu_custom_call.1} parent=5 // pred_fallthru
        _
      %p5248 = scmp.le.s32.totalorder 2, %s22
      // Predicated region
      $region81: #{tpu_custom_call.1} parent=5 // pred_check
        %p5249 = pneg %p5248
      $region82: #{tpu_custom_call.1} parent=5 // pred_check_branch
        %5251 = sbr.rel (%p5249) target = $region84
      $region83: #{tpu_custom_call.1} parent=5 // pred_region
        %s5252 = ssub.s32 %s22, 2
        // Predicated region
        $region85: #{tpu_custom_call.1} parent=83 // pred_check
          %p5253 = pneg %p203
        $region86: #{tpu_custom_call.1} parent=83 // pred_check_branch
          %5255 = sbr.rel (%p5253) target = $region88
        $region87: #{tpu_custom_call.1} parent=83 // pred_region
          %s5256 = sand.u32 %s188, 1
          %s5257 = scalar_lea.sflag [#allocation6], %s5256
          %s5258 = sand.u32 %s188, 1
          %s5259 = smul.addr %s5258, 8
          %s5260 = scalar_lea.vmem [#allocation16], %s5259
          %5261 = dma.done %s5257, 128
        $region88: #{tpu_custom_call.1} parent=83 // pred_fallthru
          _
      $region84: #{tpu_custom_call.1} parent=5 // pred_fallthru
        _
    $region6: #{tpu_custom_call.1} parent=1 // loop_footer
      %s26 = sadd.s32 1, %s22
    $region7: #{tpu_custom_call.1} parent=1 // loop_footer_branch
      %21 = sbr.rel target = $region3
    $region8: #{tpu_custom_call.1} parent=1 // loop_exit
      _
    %5262 = vsyncpa [#allocation5], 1
    %s5263 = scalar_lea.sflag [#allocation5], 1
    %5264 = vsyncpa %s5263, 1
    %5265 = vsyncpa [#allocation8], 1
    %5266 = vsyncpa [#allocation11], 1
    %5267 = vsyncpa [#allocation14], 1
    %5268 = vsyncpa [#allocation6], 1
    %s5269 = scalar_lea.sflag [#allocation6], 1
    %5270 = vsyncpa %s5269, 1

</llo_original>
